<compile_context>
chip_gen: v6e
topology: v6e:2x2x1
jax: 0.10.0
libtpu: 0.0.40
codegen_flags: <defaults>
</compile_context>

<pallas_src>
import functools

import jax
import jax.numpy as jnp
from jax.experimental import pallas as pl
from jax.experimental.pallas import tpu as pltpu


# ----------------------------------------------------------------------------
# Fused decoder kernel (whole module, one batch element per grid step)
# ----------------------------------------------------------------------------

def _decoder_kernel(mem_ref, trg_ref, src_mask_ref, trg_mask_ref,
                    w_qkv_s, b_qkv_s, w_o_s, b_o_s,
                    w_q_c, b_q_c, w_kv_c, b_kv_c, w_o_c, b_o_c,
                    w1, b1, w2, b2,
                    ln1_g, ln1_b, ln2_g, ln2_b, ln3_g, ln3_b,
                    out_ref, attn_ref, *, n_heads, n_layers):
    f32 = jnp.float32
    bf16 = jnp.bfloat16

    x = trg_ref[0]                    # [S_trg, D] fp32
    mem = mem_ref[0]                  # [S_src, D] fp32
    trg_mask = trg_mask_ref[0, 0]     # [S_trg, S_trg]
    src_mask = src_mask_ref[0, 0]     # [S_trg, S_src]

    D = x.shape[-1]
    dh = D // n_heads
    scale = 1.0 / (float(dh) ** 0.5)

    def matmul(a, w_ref, bias_ref, relu=False):
        # bf16 MXU inputs, fp32 accumulation, fp32 bias epilogue (+ optional relu)
        y = jnp.dot(a.astype(bf16), w_ref[...],
                    preferred_element_type=f32) + bias_ref[...]
        if relu:
            y = jnp.maximum(y, 0.0)
        return y

    def layernorm(a, g_ref, b_ref):
        # PyTorch nn.LayerNorm semantics: biased variance, eps=1e-5, fp32.
        mu = jnp.mean(a, axis=-1, keepdims=True)
        var = jnp.mean((a - mu) ** 2, axis=-1, keepdims=True)
        return (a - mu) * jax.lax.rsqrt(var + 1e-5) * g_ref[...] + b_ref[...]

    def attend(q, k, v, mask, write_attn):
        # q: [Sq, D], k/v: [Sk, D], mask: [Sq, Sk]; heads via static lane slices.
        ctx_parts = []
        for h in range(n_heads):
            sl = slice(h * dh, (h + 1) * dh)
            qh = q[:, sl].astype(bf16)
            kh = k[:, sl].astype(bf16)
            vh = v[:, sl].astype(bf16)
            # Contract over dh without materializing k.T.
            s = jax.lax.dot_general(
                qh, kh, (((1,), (1,)), ((), ())),
                preferred_element_type=f32) * scale          # [Sq, Sk] fp32
            s = jnp.where(mask != 0.0, s, f32(-1e9))         # masked_fill(mask==0)
            s = s - jnp.max(s, axis=-1, keepdims=True)
            p = jnp.exp(s)
            p = p * pl.reciprocal(jnp.sum(p, axis=-1, keepdims=True), approx=True)
            ctx_parts.append(
                jnp.dot(p.astype(bf16), vh, preferred_element_type=f32))
            if write_attn:
                attn_ref[0, h] = p                           # only the final layer
        return jnp.concatenate(ctx_parts, axis=-1)           # [Sq, D]

    # Cross-attention K/V of `memory` are identical every layer (shared weights,
    # constant memory) — compute once and reuse.
    kv_mem = matmul(mem, w_kv_c, b_kv_c)                     # [S_src, 2D]
    mem_k = kv_mem[:, :D]
    mem_v = kv_mem[:, D:]

    for li in range(n_layers):                               # static unroll
        last = (li == n_layers - 1)

        # 1) masked self-attention + add & norm (fused QKV projection)
        qkv = matmul(x, w_qkv_s, b_qkv_s)                    # [Sq, 3D]
        sa = attend(qkv[:, :D], qkv[:, D:2 * D], qkv[:, 2 * D:],
                    trg_mask, write_attn=False)
        sa = matmul(sa, w_o_s, b_o_s)
        x = layernorm(sa + x, ln1_g, ln1_b)

        # 2) cross-attention over encoder memory + add & norm
        qc = matmul(x, w_q_c, b_q_c)
        ca = attend(qc, mem_k, mem_v, src_mask, write_attn=last)
        ca = matmul(ca, w_o_c, b_o_c)
        x2 = layernorm(ca + x, ln2_g, ln2_b)

        # 3) position-wise FFN + add & norm
        ff = matmul(x2, w1, b1, relu=True)
        ff = matmul(ff, w2, b2)
        x = layernorm(ff + x2, ln3_g, ln3_b)

    out_ref[0] = x


# ----------------------------------------------------------------------------
# Wrapper: one pallas_call for the whole decoder forward
# ----------------------------------------------------------------------------

_WEIGHT_ORDER = ("w_qkv_s", "b_qkv_s", "w_o_s", "b_o_s",
                 "w_q_c", "b_q_c", "w_kv_c", "b_kv_c", "w_o_c", "b_o_c",
                 "w1", "b1", "w2", "b2",
                 "ln1_g", "ln1_b", "ln2_g", "ln2_b", "ln3_g", "ln3_b")


def decoder_forward(memory, trg, src_mask, trg_mask, params, n_layers, n_heads):
    B, S_trg, D = trg.shape
    S_src = memory.shape[1]
    weights = [params[k] for k in _WEIGHT_ORDER]

    def rep_spec(arr):
        # Full-array block, same block every grid step (replicated weight).
        zeros = (0,) * arr.ndim
        return pl.BlockSpec(arr.shape, lambda b, _z=zeros: _z)

    in_specs = [
        pl.BlockSpec((1, S_src, D), lambda b: (b, 0, 0)),
        pl.BlockSpec((1, S_trg, D), lambda b: (b, 0, 0)),
        pl.BlockSpec((1, 1, S_trg, S_src), lambda b: (b, 0, 0, 0)),
        pl.BlockSpec((1, 1, S_trg, S_trg), lambda b: (b, 0, 0, 0)),
    ] + [rep_spec(w) for w in weights]

    out_specs = (
        pl.BlockSpec((1, S_trg, D), lambda b: (b, 0, 0)),
        pl.BlockSpec((1, n_heads, S_trg, S_src), lambda b: (b, 0, 0, 0)),
    )
    out_shape = (
        jax.ShapeDtypeStruct((B, S_trg, D), jnp.float32),
        jax.ShapeDtypeStruct((B, n_heads, S_trg, S_src), jnp.float32),
    )

    kernel = functools.partial(_decoder_kernel, n_heads=n_heads,
                               n_layers=n_layers)
    return pl.pallas_call(
        kernel,
        out_shape=out_shape,
        grid=(B,),
        in_specs=in_specs,
        out_specs=out_specs,
        compiler_params=pltpu.CompilerParams(
            dimension_semantics=("parallel",)),
    )(memory, trg, src_mask, trg_mask, *weights)


# ----------------------------------------------------------------------------
# Deterministic parameter init (fused QKV / KV layouts, bf16 weight matrices)
# ----------------------------------------------------------------------------

def init_params(key, d_model, d_ff):
    ks = jax.random.split(key, 10)
    n = lambda k, s: jax.random.normal(k, s, jnp.float32) * 0.02
    z = lambda s: jnp.zeros(s, jnp.float32)
    o = lambda s: jnp.ones(s, jnp.float32)

    p = {
        # self-attention: fused Q|K|V projection
        "w_qkv_s": jnp.concatenate([n(ks[0], (d_model, d_model)),
                                    n(ks[1], (d_model, d_model)),
                                    n(ks[2], (d_model, d_model))], axis=1),
        "b_qkv_s": z((1, 3 * d_model)),
        "w_o_s": n(ks[3], (d_model, d_model)),
        "b_o_s": z((1, d_model)),
        # cross-attention: Q separate, fused K|V (applied to memory)
        "w_q_c": n(ks[4], (d_model, d_model)),
        "b_q_c": z((1, d_model)),
        "w_kv_c": jnp.concatenate([n(ks[5], (d_model, d_model)),
                                   n(ks[6], (d_model, d_model))], axis=1),
        "b_kv_c": z((1, 2 * d_model)),
        "w_o_c": n(ks[7], (d_model, d_model)),
        "b_o_c": z((1, d_model)),
        # position-wise FFN
        "w1": n(ks[8], (d_model, d_ff)),
        "b1": z((1, d_ff)),
        "w2": n(ks[9], (d_ff, d_model)),
        "b2": z((1, d_model)),
        # layernorms
        "ln1_g": o((1, d_model)), "ln1_b": z((1, d_model)),
        "ln2_g": o((1, d_model)), "ln2_b": z((1, d_model)),
        "ln3_g": o((1, d_model)), "ln3_b": z((1, d_model)),
    }
    # Pre-cast weight matrices (MXU operands) to bf16 once; biases/LN stay fp32.
    for k in ("w_qkv_s", "w_o_s", "w_q_c", "w_kv_c", "w_o_c", "w1", "w2"):
        p[k] = p[k].astype(jnp.bfloat16)
    return p


# ----------------------------------------------------------------------------
# Main
# ----------------------------------------------------------------------------

if __name__ == "__main__":
    B, S_TRG, S_SRC = 2, 8, 8
    D_MODEL, N_HEADS, D_FF, N_LAYERS = 32, 2, 64, 2

    root = jax.random.PRNGKey(0)
    k_mem, k_trg, k_par = jax.random.split(root, 3)

    memory = jax.random.normal(k_mem, (B, S_SRC, D_MODEL), jnp.float32)
    trg = jax.random.normal(k_trg, (B, S_TRG, D_MODEL), jnp.float32)

    # src_mask: all valid; trg_mask: causal. (1.0 = attend, 0.0 = masked)
    src_mask = jnp.ones((B, 1, S_TRG, S_SRC), jnp.float32)
    causal = jnp.tril(jnp.ones((S_TRG, S_TRG), jnp.float32))
    trg_mask = jnp.broadcast_to(causal, (B, 1, S_TRG, S_TRG))

    params = init_params(k_par, D_MODEL, D_FF)

    out, attn = decoder_forward(memory, trg, src_mask, trg_mask,
                                params, N_LAYERS, N_HEADS)
    jax.block_until_ready((out, attn))

    assert out.shape == (B, S_TRG, D_MODEL)
    assert attn.shape == (B, N_HEADS, S_TRG, S_SRC)
    assert bool(jnp.all(jnp.isfinite(out))) and bool(jnp.all(jnp.isfinite(attn)))
    print("KERNEL_OK")
</pallas_src>

<mosaic_0001>
module attributes {stable_mosaic.version = 11 : i64} {
  func.func @_decoder_kernel(%arg0: i32, %arg1: memref<1x8x32xf32, #tpu.memory_space<vmem>>, %arg2: memref<1x8x32xf32, #tpu.memory_space<vmem>>, %arg3: memref<1x1x8x8xf32, #tpu.memory_space<vmem>>, %arg4: memref<1x1x8x8xf32, #tpu.memory_space<vmem>>, %arg5: memref<32x96xbf16, #tpu.memory_space<vmem>>, %arg6: memref<1x96xf32, #tpu.memory_space<vmem>>, %arg7: memref<32x32xbf16, #tpu.memory_space<vmem>>, %arg8: memref<1x32xf32, #tpu.memory_space<vmem>>, %arg9: memref<32x32xbf16, #tpu.memory_space<vmem>>, %arg10: memref<1x32xf32, #tpu.memory_space<vmem>>, %arg11: memref<32x64xbf16, #tpu.memory_space<vmem>>, %arg12: memref<1x64xf32, #tpu.memory_space<vmem>>, %arg13: memref<32x32xbf16, #tpu.memory_space<vmem>>, %arg14: memref<1x32xf32, #tpu.memory_space<vmem>>, %arg15: memref<32x64xbf16, #tpu.memory_space<vmem>>, %arg16: memref<1x64xf32, #tpu.memory_space<vmem>>, %arg17: memref<64x32xbf16, #tpu.memory_space<vmem>>, %arg18: memref<1x32xf32, #tpu.memory_space<vmem>>, %arg19: memref<1x32xf32, #tpu.memory_space<vmem>>, %arg20: memref<1x32xf32, #tpu.memory_space<vmem>>, %arg21: memref<1x32xf32, #tpu.memory_space<vmem>>, %arg22: memref<1x32xf32, #tpu.memory_space<vmem>>, %arg23: memref<1x32xf32, #tpu.memory_space<vmem>>, %arg24: memref<1x32xf32, #tpu.memory_space<vmem>>, %arg25: memref<1x8x32xf32, #tpu.memory_space<vmem>>, %arg26: memref<1x2x8x8xf32, #tpu.memory_space<vmem>>) attributes {dimension_semantics = [#tpu.dimension_semantics<parallel>], iteration_bounds = array<i64: 2>, scalar_prefetch = 0 : i64, scratch_operands = 0 : i64, tpu.core_type = #tpu.core_type<tc>, window_params = [{transform_indices = @transform_0, window_bounds = array<i64: 1, 8, 32>}, {transform_indices = @transform_1, window_bounds = array<i64: 1, 8, 32>}, {transform_indices = @transform_2, window_bounds = array<i64: 1, 1, 8, 8>}, {transform_indices = @transform_3, window_bounds = array<i64: 1, 1, 8, 8>}, {pipeline_mode = #tpu.pipeline_mode<synchronous>, transform_indices = @transform_4, window_bounds = array<i64: 32, 96>}, {pipeline_mode = #tpu.pipeline_mode<synchronous>, transform_indices = @transform_5, window_bounds = array<i64: 1, 96>}, {pipeline_mode = #tpu.pipeline_mode<synchronous>, transform_indices = @transform_6, window_bounds = array<i64: 32, 32>}, {pipeline_mode = #tpu.pipeline_mode<synchronous>, transform_indices = @transform_7, window_bounds = array<i64: 1, 32>}, {pipeline_mode = #tpu.pipeline_mode<synchronous>, transform_indices = @transform_8, window_bounds = array<i64: 32, 32>}, {pipeline_mode = #tpu.pipeline_mode<synchronous>, transform_indices = @transform_9, window_bounds = array<i64: 1, 32>}, {pipeline_mode = #tpu.pipeline_mode<synchronous>, transform_indices = @transform_10, window_bounds = array<i64: 32, 64>}, {pipeline_mode = #tpu.pipeline_mode<synchronous>, transform_indices = @transform_11, window_bounds = array<i64: 1, 64>}, {pipeline_mode = #tpu.pipeline_mode<synchronous>, transform_indices = @transform_12, window_bounds = array<i64: 32, 32>}, {pipeline_mode = #tpu.pipeline_mode<synchronous>, transform_indices = @transform_13, window_bounds = array<i64: 1, 32>}, {pipeline_mode = #tpu.pipeline_mode<synchronous>, transform_indices = @transform_14, window_bounds = array<i64: 32, 64>}, {pipeline_mode = #tpu.pipeline_mode<synchronous>, transform_indices = @transform_15, window_bounds = array<i64: 1, 64>}, {pipeline_mode = #tpu.pipeline_mode<synchronous>, transform_indices = @transform_16, window_bounds = array<i64: 64, 32>}, {pipeline_mode = #tpu.pipeline_mode<synchronous>, transform_indices = @transform_17, window_bounds = array<i64: 1, 32>}, {pipeline_mode = #tpu.pipeline_mode<synchronous>, transform_indices = @transform_18, window_bounds = array<i64: 1, 32>}, {pipeline_mode = #tpu.pipeline_mode<synchronous>, transform_indices = @transform_19, window_bounds = array<i64: 1, 32>}, {pipeline_mode = #tpu.pipeline_mode<synchronous>, transform_indices = @transform_20, window_bounds = array<i64: 1, 32>}, {pipeline_mode = #tpu.pipeline_mode<synchronous>, transform_indices = @transform_21, window_bounds = array<i64: 1, 32>}, {pipeline_mode = #tpu.pipeline_mode<synchronous>, transform_indices = @transform_22, window_bounds = array<i64: 1, 32>}, {pipeline_mode = #tpu.pipeline_mode<synchronous>, transform_indices = @transform_23, window_bounds = array<i64: 1, 32>}, {transform_indices = @transform_24, window_bounds = array<i64: 1, 8, 32>}, {transform_indices = @transform_25, window_bounds = array<i64: 1, 2, 8, 8>}]} {
    %c0 = arith.constant 0 : index
    %c0_0 = arith.constant 0 : index
    %c0_1 = arith.constant 0 : index
    %0 = vector.load %arg2[%c0, %c0_0, %c0_1] : memref<1x8x32xf32, #tpu.memory_space<vmem>>, vector<1x8x32xf32>
    %1 = vector.shape_cast %0 : vector<1x8x32xf32> to vector<8x32xf32>
    %c0_2 = arith.constant 0 : index
    %c0_3 = arith.constant 0 : index
    %c0_4 = arith.constant 0 : index
    %2 = vector.load %arg1[%c0_2, %c0_3, %c0_4] : memref<1x8x32xf32, #tpu.memory_space<vmem>>, vector<1x8x32xf32>
    %3 = vector.shape_cast %2 : vector<1x8x32xf32> to vector<8x32xf32>
    %c0_5 = arith.constant 0 : index
    %c0_6 = arith.constant 0 : index
    %c0_7 = arith.constant 0 : index
    %c0_8 = arith.constant 0 : index
    %4 = vector.load %arg4[%c0_5, %c0_6, %c0_7, %c0_8] : memref<1x1x8x8xf32, #tpu.memory_space<vmem>>, vector<1x1x8x8xf32>
    %5 = vector.shape_cast %4 : vector<1x1x8x8xf32> to vector<8x8xf32>
    %c0_9 = arith.constant 0 : index
    %c0_10 = arith.constant 0 : index
    %c0_11 = arith.constant 0 : index
    %c0_12 = arith.constant 0 : index
    %6 = vector.load %arg3[%c0_9, %c0_10, %c0_11, %c0_12] : memref<1x1x8x8xf32, #tpu.memory_space<vmem>>, vector<1x1x8x8xf32>
    %7 = vector.shape_cast %6 : vector<1x1x8x8xf32> to vector<8x8xf32>
    %8 = arith.truncf %3 : vector<8x32xf32> to vector<8x32xbf16>
    %c0_13 = arith.constant 0 : index
    %c0_14 = arith.constant 0 : index
    %9 = vector.load %arg11[%c0_13, %c0_14] : memref<32x64xbf16, #tpu.memory_space<vmem>>, vector<32x64xbf16>
    %cst = arith.constant dense<0.000000e+00> : vector<8x64xf32>
    %10 = tpu.matmul %8, %9, %cst {dimension_numbers = #tpu.dot_dimension_numbers<[1], [0], [0], [1], [0, 0, 1, 1], [], []>} : vector<8x32xbf16>, vector<32x64xbf16>, vector<8x64xf32> -> vector<8x64xf32>
    %c0_15 = arith.constant 0 : index
    %c0_16 = arith.constant 0 : index
    %11 = vector.load %arg12[%c0_15, %c0_16] : memref<1x64xf32, #tpu.memory_space<vmem>>, vector<1x64xf32>
    %12 = vector.broadcast %11 : vector<1x64xf32> to vector<8x64xf32>
    %13 = arith.addf %10, %12 : vector<8x64xf32>
    %14 = vector.extract_strided_slice %13 {offsets = [0, 0], sizes = [8, 32], strides = [1, 1]} : vector<8x64xf32> to vector<8x32xf32>
    %15 = vector.extract_strided_slice %13 {offsets = [0, 32], sizes = [8, 32], strides = [1, 1]} : vector<8x64xf32> to vector<8x32xf32>
    %16 = arith.truncf %1 : vector<8x32xf32> to vector<8x32xbf16>
    %c0_17 = arith.constant 0 : index
    %c0_18 = arith.constant 0 : index
    %17 = vector.load %arg5[%c0_17, %c0_18] : memref<32x96xbf16, #tpu.memory_space<vmem>>, vector<32x96xbf16>
    %cst_19 = arith.constant dense<0.000000e+00> : vector<8x96xf32>
    %18 = tpu.matmul %16, %17, %cst_19 {dimension_numbers = #tpu.dot_dimension_numbers<[1], [0], [0], [1], [0, 0, 1, 1], [], []>} : vector<8x32xbf16>, vector<32x96xbf16>, vector<8x96xf32> -> vector<8x96xf32>
    %c0_20 = arith.constant 0 : index
    %c0_21 = arith.constant 0 : index
    %19 = vector.load %arg6[%c0_20, %c0_21] : memref<1x96xf32, #tpu.memory_space<vmem>>, vector<1x96xf32>
    %20 = vector.broadcast %19 : vector<1x96xf32> to vector<8x96xf32>
    %21 = arith.addf %18, %20 : vector<8x96xf32>
    %22 = vector.extract_strided_slice %21 {offsets = [0, 0], sizes = [8, 32], strides = [1, 1]} : vector<8x96xf32> to vector<8x32xf32>
    %23 = vector.extract_strided_slice %21 {offsets = [0, 32], sizes = [8, 32], strides = [1, 1]} : vector<8x96xf32> to vector<8x32xf32>
    %24 = vector.extract_strided_slice %21 {offsets = [0, 64], sizes = [8, 32], strides = [1, 1]} : vector<8x96xf32> to vector<8x32xf32>
    %25 = vector.extract_strided_slice %22 {offsets = [0, 0], sizes = [8, 16], strides = [1, 1]} : vector<8x32xf32> to vector<8x16xf32>
    %26 = arith.truncf %25 : vector<8x16xf32> to vector<8x16xbf16>
    %27 = vector.extract_strided_slice %23 {offsets = [0, 0], sizes = [8, 16], strides = [1, 1]} : vector<8x32xf32> to vector<8x16xf32>
    %28 = arith.truncf %27 : vector<8x16xf32> to vector<8x16xbf16>
    %29 = vector.extract_strided_slice %24 {offsets = [0, 0], sizes = [8, 16], strides = [1, 1]} : vector<8x32xf32> to vector<8x16xf32>
    %30 = arith.truncf %29 : vector<8x16xf32> to vector<8x16xbf16>
    %cst_22 = arith.constant dense<0.000000e+00> : vector<8x8xf32>
    %31 = tpu.matmul %26, %28, %cst_22 {dimension_numbers = #tpu.dot_dimension_numbers<[1], [1], [0], [0], [0, 0, 1, 0], [], []>} : vector<8x16xbf16>, vector<8x16xbf16>, vector<8x8xf32> -> vector<8x8xf32>
    %cst_23 = arith.constant 2.500000e-01 : f32
    %32 = vector.broadcast %cst_23 : f32 to vector<8x8xf32>
    %33 = arith.mulf %31, %32 : vector<8x8xf32>
    %cst_24 = arith.constant 0.000000e+00 : f32
    %34 = vector.broadcast %cst_24 : f32 to vector<8x8xf32>
    %35 = arith.cmpf one, %5, %34 : vector<8x8xf32>
    %cst_25 = arith.constant -1.000000e+09 : f32
    %36 = vector.broadcast %cst_25 : f32 to vector<8x8xf32>
    %37 = arith.select %35, %33, %36 : vector<8x8xi1>, vector<8x8xf32>
    %cst_26 = arith.constant dense<0xFF800000> : vector<8xf32>
    %38 = vector.multi_reduction <maximumf>, %37, %cst_26 [1] : vector<8x8xf32> to vector<8xf32>
    %39 = vector.shape_cast %38 : vector<8xf32> to vector<8x1xf32>
    %40 = vector.broadcast %39 : vector<8x1xf32> to vector<8x8xf32>
    %41 = arith.subf %37, %40 : vector<8x8xf32>
    %42 = math.exp %41 : vector<8x8xf32>
    %cst_27 = arith.constant dense<0.000000e+00> : vector<8xf32>
    %43 = vector.multi_reduction <add>, %42, %cst_27 [1] : vector<8x8xf32> to vector<8xf32>
    %44 = vector.shape_cast %43 : vector<8xf32> to vector<8x1xf32>
    %45 = tpu.reciprocal %44 {approx = true} : vector<8x1xf32> -> vector<8x1xf32>
    %46 = vector.broadcast %45 : vector<8x1xf32> to vector<8x8xf32>
    %47 = arith.mulf %42, %46 : vector<8x8xf32>
    %48 = arith.truncf %47 : vector<8x8xf32> to vector<8x8xbf16>
    %cst_28 = arith.constant dense<0.000000e+00> : vector<8x16xf32>
    %49 = tpu.matmul %48, %30, %cst_28 {dimension_numbers = #tpu.dot_dimension_numbers<[1], [0], [0], [1], [0, 0, 1, 1], [], []>} : vector<8x8xbf16>, vector<8x16xbf16>, vector<8x16xf32> -> vector<8x16xf32>
    %50 = vector.extract_strided_slice %22 {offsets = [0, 16], sizes = [8, 16], strides = [1, 1]} : vector<8x32xf32> to vector<8x16xf32>
    %51 = arith.truncf %50 : vector<8x16xf32> to vector<8x16xbf16>
    %52 = vector.extract_strided_slice %23 {offsets = [0, 16], sizes = [8, 16], strides = [1, 1]} : vector<8x32xf32> to vector<8x16xf32>
    %53 = arith.truncf %52 : vector<8x16xf32> to vector<8x16xbf16>
    %54 = vector.extract_strided_slice %24 {offsets = [0, 16], sizes = [8, 16], strides = [1, 1]} : vector<8x32xf32> to vector<8x16xf32>
    %55 = arith.truncf %54 : vector<8x16xf32> to vector<8x16xbf16>
    %cst_29 = arith.constant dense<0.000000e+00> : vector<8x8xf32>
    %56 = tpu.matmul %51, %53, %cst_29 {dimension_numbers = #tpu.dot_dimension_numbers<[1], [1], [0], [0], [0, 0, 1, 0], [], []>} : vector<8x16xbf16>, vector<8x16xbf16>, vector<8x8xf32> -> vector<8x8xf32>
    %cst_30 = arith.constant 2.500000e-01 : f32
    %57 = vector.broadcast %cst_30 : f32 to vector<8x8xf32>
    %58 = arith.mulf %56, %57 : vector<8x8xf32>
    %cst_31 = arith.constant 0.000000e+00 : f32
    %59 = vector.broadcast %cst_31 : f32 to vector<8x8xf32>
    %60 = arith.cmpf one, %5, %59 : vector<8x8xf32>
    %cst_32 = arith.constant -1.000000e+09 : f32
    %61 = vector.broadcast %cst_32 : f32 to vector<8x8xf32>
    %62 = arith.select %60, %58, %61 : vector<8x8xi1>, vector<8x8xf32>
    %cst_33 = arith.constant dense<0xFF800000> : vector<8xf32>
    %63 = vector.multi_reduction <maximumf>, %62, %cst_33 [1] : vector<8x8xf32> to vector<8xf32>
    %64 = vector.shape_cast %63 : vector<8xf32> to vector<8x1xf32>
    %65 = vector.broadcast %64 : vector<8x1xf32> to vector<8x8xf32>
    %66 = arith.subf %62, %65 : vector<8x8xf32>
    %67 = math.exp %66 : vector<8x8xf32>
    %cst_34 = arith.constant dense<0.000000e+00> : vector<8xf32>
    %68 = vector.multi_reduction <add>, %67, %cst_34 [1] : vector<8x8xf32> to vector<8xf32>
    %69 = vector.shape_cast %68 : vector<8xf32> to vector<8x1xf32>
    %70 = tpu.reciprocal %69 {approx = true} : vector<8x1xf32> -> vector<8x1xf32>
    %71 = vector.broadcast %70 : vector<8x1xf32> to vector<8x8xf32>
    %72 = arith.mulf %67, %71 : vector<8x8xf32>
    %73 = arith.truncf %72 : vector<8x8xf32> to vector<8x8xbf16>
    %cst_35 = arith.constant dense<0.000000e+00> : vector<8x16xf32>
    %74 = tpu.matmul %73, %55, %cst_35 {dimension_numbers = #tpu.dot_dimension_numbers<[1], [0], [0], [1], [0, 0, 1, 1], [], []>} : vector<8x8xbf16>, vector<8x16xbf16>, vector<8x16xf32> -> vector<8x16xf32>
    %75 = tpu.concatenate %49, %74 in 1 : vector<8x16xf32>, vector<8x16xf32> -> vector<8x32xf32>
    %76 = arith.truncf %75 : vector<8x32xf32> to vector<8x32xbf16>
    %c0_36 = arith.constant 0 : index
    %c0_37 = arith.constant 0 : index
    %77 = vector.load %arg7[%c0_36, %c0_37] : memref<32x32xbf16, #tpu.memory_space<vmem>>, vector<32x32xbf16>
    %cst_38 = arith.constant dense<0.000000e+00> : vector<8x32xf32>
    %78 = tpu.matmul %76, %77, %cst_38 {dimension_numbers = #tpu.dot_dimension_numbers<[1], [0], [0], [1], [0, 0, 1, 1], [], []>} : vector<8x32xbf16>, vector<32x32xbf16>, vector<8x32xf32> -> vector<8x32xf32>
    %c0_39 = arith.constant 0 : index
    %c0_40 = arith.constant 0 : index
    %79 = vector.load %arg8[%c0_39, %c0_40] : memref<1x32xf32, #tpu.memory_space<vmem>>, vector<1x32xf32>
    %80 = vector.broadcast %79 : vector<1x32xf32> to vector<8x32xf32>
    %81 = arith.addf %78, %80 : vector<8x32xf32>
    %82 = arith.addf %81, %1 : vector<8x32xf32>
    %cst_41 = arith.constant dense<0.000000e+00> : vector<8xf32>
    %83 = vector.multi_reduction <add>, %82, %cst_41 [1] : vector<8x32xf32> to vector<8xf32>
    %84 = vector.shape_cast %83 : vector<8xf32> to vector<8x1xf32>
    %cst_42 = arith.constant 3.200000e+01 : f32
    %85 = vector.broadcast %cst_42 : f32 to vector<8x1xf32>
    %86 = arith.divf %84, %85 : vector<8x1xf32>
    %87 = vector.broadcast %86 : vector<8x1xf32> to vector<8x32xf32>
    %88 = arith.subf %82, %87 : vector<8x32xf32>
    %89 = arith.mulf %88, %88 : vector<8x32xf32>
    %cst_43 = arith.constant dense<0.000000e+00> : vector<8xf32>
    %90 = vector.multi_reduction <add>, %89, %cst_43 [1] : vector<8x32xf32> to vector<8xf32>
    %91 = vector.shape_cast %90 : vector<8xf32> to vector<8x1xf32>
    %cst_44 = arith.constant 3.200000e+01 : f32
    %92 = vector.broadcast %cst_44 : f32 to vector<8x1xf32>
    %93 = arith.divf %91, %92 : vector<8x1xf32>
    %94 = vector.broadcast %86 : vector<8x1xf32> to vector<8x32xf32>
    %95 = arith.subf %82, %94 : vector<8x32xf32>
    %cst_45 = arith.constant 9.99999974E-6 : f32
    %96 = vector.broadcast %cst_45 : f32 to vector<8x1xf32>
    %97 = arith.addf %93, %96 : vector<8x1xf32>
    %98 = math.rsqrt %97 : vector<8x1xf32>
    %99 = vector.broadcast %98 : vector<8x1xf32> to vector<8x32xf32>
    %100 = arith.mulf %95, %99 : vector<8x32xf32>
    %c0_46 = arith.constant 0 : index
    %c0_47 = arith.constant 0 : index
    %101 = vector.load %arg19[%c0_46, %c0_47] : memref<1x32xf32, #tpu.memory_space<vmem>>, vector<1x32xf32>
    %102 = vector.broadcast %101 : vector<1x32xf32> to vector<8x32xf32>
    %103 = arith.mulf %100, %102 : vector<8x32xf32>
    %c0_48 = arith.constant 0 : index
    %c0_49 = arith.constant 0 : index
    %104 = vector.load %arg20[%c0_48, %c0_49] : memref<1x32xf32, #tpu.memory_space<vmem>>, vector<1x32xf32>
    %105 = vector.broadcast %104 : vector<1x32xf32> to vector<8x32xf32>
    %106 = arith.addf %103, %105 : vector<8x32xf32>
    %107 = arith.truncf %106 : vector<8x32xf32> to vector<8x32xbf16>
    %c0_50 = arith.constant 0 : index
    %c0_51 = arith.constant 0 : index
    %108 = vector.load %arg9[%c0_50, %c0_51] : memref<32x32xbf16, #tpu.memory_space<vmem>>, vector<32x32xbf16>
    %cst_52 = arith.constant dense<0.000000e+00> : vector<8x32xf32>
    %109 = tpu.matmul %107, %108, %cst_52 {dimension_numbers = #tpu.dot_dimension_numbers<[1], [0], [0], [1], [0, 0, 1, 1], [], []>} : vector<8x32xbf16>, vector<32x32xbf16>, vector<8x32xf32> -> vector<8x32xf32>
    %c0_53 = arith.constant 0 : index
    %c0_54 = arith.constant 0 : index
    %110 = vector.load %arg10[%c0_53, %c0_54] : memref<1x32xf32, #tpu.memory_space<vmem>>, vector<1x32xf32>
    %111 = vector.broadcast %110 : vector<1x32xf32> to vector<8x32xf32>
    %112 = arith.addf %109, %111 : vector<8x32xf32>
    %113 = vector.extract_strided_slice %112 {offsets = [0, 0], sizes = [8, 16], strides = [1, 1]} : vector<8x32xf32> to vector<8x16xf32>
    %114 = arith.truncf %113 : vector<8x16xf32> to vector<8x16xbf16>
    %115 = vector.extract_strided_slice %14 {offsets = [0, 0], sizes = [8, 16], strides = [1, 1]} : vector<8x32xf32> to vector<8x16xf32>
    %116 = arith.truncf %115 : vector<8x16xf32> to vector<8x16xbf16>
    %117 = vector.extract_strided_slice %15 {offsets = [0, 0], sizes = [8, 16], strides = [1, 1]} : vector<8x32xf32> to vector<8x16xf32>
    %118 = arith.truncf %117 : vector<8x16xf32> to vector<8x16xbf16>
    %cst_55 = arith.constant dense<0.000000e+00> : vector<8x8xf32>
    %119 = tpu.matmul %114, %116, %cst_55 {dimension_numbers = #tpu.dot_dimension_numbers<[1], [1], [0], [0], [0, 0, 1, 0], [], []>} : vector<8x16xbf16>, vector<8x16xbf16>, vector<8x8xf32> -> vector<8x8xf32>
    %cst_56 = arith.constant 2.500000e-01 : f32
    %120 = vector.broadcast %cst_56 : f32 to vector<8x8xf32>
    %121 = arith.mulf %119, %120 : vector<8x8xf32>
    %cst_57 = arith.constant 0.000000e+00 : f32
    %122 = vector.broadcast %cst_57 : f32 to vector<8x8xf32>
    %123 = arith.cmpf one, %7, %122 : vector<8x8xf32>
    %cst_58 = arith.constant -1.000000e+09 : f32
    %124 = vector.broadcast %cst_58 : f32 to vector<8x8xf32>
    %125 = arith.select %123, %121, %124 : vector<8x8xi1>, vector<8x8xf32>
    %cst_59 = arith.constant dense<0xFF800000> : vector<8xf32>
    %126 = vector.multi_reduction <maximumf>, %125, %cst_59 [1] : vector<8x8xf32> to vector<8xf32>
    %127 = vector.shape_cast %126 : vector<8xf32> to vector<8x1xf32>
    %128 = vector.broadcast %127 : vector<8x1xf32> to vector<8x8xf32>
    %129 = arith.subf %125, %128 : vector<8x8xf32>
    %130 = math.exp %129 : vector<8x8xf32>
    %cst_60 = arith.constant dense<0.000000e+00> : vector<8xf32>
    %131 = vector.multi_reduction <add>, %130, %cst_60 [1] : vector<8x8xf32> to vector<8xf32>
    %132 = vector.shape_cast %131 : vector<8xf32> to vector<8x1xf32>
    %133 = tpu.reciprocal %132 {approx = true} : vector<8x1xf32> -> vector<8x1xf32>
    %134 = vector.broadcast %133 : vector<8x1xf32> to vector<8x8xf32>
    %135 = arith.mulf %130, %134 : vector<8x8xf32>
    %136 = arith.truncf %135 : vector<8x8xf32> to vector<8x8xbf16>
    %cst_61 = arith.constant dense<0.000000e+00> : vector<8x16xf32>
    %137 = tpu.matmul %136, %118, %cst_61 {dimension_numbers = #tpu.dot_dimension_numbers<[1], [0], [0], [1], [0, 0, 1, 1], [], []>} : vector<8x8xbf16>, vector<8x16xbf16>, vector<8x16xf32> -> vector<8x16xf32>
    %138 = vector.extract_strided_slice %112 {offsets = [0, 16], sizes = [8, 16], strides = [1, 1]} : vector<8x32xf32> to vector<8x16xf32>
    %139 = arith.truncf %138 : vector<8x16xf32> to vector<8x16xbf16>
    %140 = vector.extract_strided_slice %14 {offsets = [0, 16], sizes = [8, 16], strides = [1, 1]} : vector<8x32xf32> to vector<8x16xf32>
    %141 = arith.truncf %140 : vector<8x16xf32> to vector<8x16xbf16>
    %142 = vector.extract_strided_slice %15 {offsets = [0, 16], sizes = [8, 16], strides = [1, 1]} : vector<8x32xf32> to vector<8x16xf32>
    %143 = arith.truncf %142 : vector<8x16xf32> to vector<8x16xbf16>
    %cst_62 = arith.constant dense<0.000000e+00> : vector<8x8xf32>
    %144 = tpu.matmul %139, %141, %cst_62 {dimension_numbers = #tpu.dot_dimension_numbers<[1], [1], [0], [0], [0, 0, 1, 0], [], []>} : vector<8x16xbf16>, vector<8x16xbf16>, vector<8x8xf32> -> vector<8x8xf32>
    %cst_63 = arith.constant 2.500000e-01 : f32
    %145 = vector.broadcast %cst_63 : f32 to vector<8x8xf32>
    %146 = arith.mulf %144, %145 : vector<8x8xf32>
    %cst_64 = arith.constant 0.000000e+00 : f32
    %147 = vector.broadcast %cst_64 : f32 to vector<8x8xf32>
    %148 = arith.cmpf one, %7, %147 : vector<8x8xf32>
    %cst_65 = arith.constant -1.000000e+09 : f32
    %149 = vector.broadcast %cst_65 : f32 to vector<8x8xf32>
    %150 = arith.select %148, %146, %149 : vector<8x8xi1>, vector<8x8xf32>
    %cst_66 = arith.constant dense<0xFF800000> : vector<8xf32>
    %151 = vector.multi_reduction <maximumf>, %150, %cst_66 [1] : vector<8x8xf32> to vector<8xf32>
    %152 = vector.shape_cast %151 : vector<8xf32> to vector<8x1xf32>
    %153 = vector.broadcast %152 : vector<8x1xf32> to vector<8x8xf32>
    %154 = arith.subf %150, %153 : vector<8x8xf32>
    %155 = math.exp %154 : vector<8x8xf32>
    %cst_67 = arith.constant dense<0.000000e+00> : vector<8xf32>
    %156 = vector.multi_reduction <add>, %155, %cst_67 [1] : vector<8x8xf32> to vector<8xf32>
    %157 = vector.shape_cast %156 : vector<8xf32> to vector<8x1xf32>
    %158 = tpu.reciprocal %157 {approx = true} : vector<8x1xf32> -> vector<8x1xf32>
    %159 = vector.broadcast %158 : vector<8x1xf32> to vector<8x8xf32>
    %160 = arith.mulf %155, %159 : vector<8x8xf32>
    %161 = arith.truncf %160 : vector<8x8xf32> to vector<8x8xbf16>
    %cst_68 = arith.constant dense<0.000000e+00> : vector<8x16xf32>
    %162 = tpu.matmul %161, %143, %cst_68 {dimension_numbers = #tpu.dot_dimension_numbers<[1], [0], [0], [1], [0, 0, 1, 1], [], []>} : vector<8x8xbf16>, vector<8x16xbf16>, vector<8x16xf32> -> vector<8x16xf32>
    %163 = tpu.concatenate %137, %162 in 1 : vector<8x16xf32>, vector<8x16xf32> -> vector<8x32xf32>
    %164 = arith.truncf %163 : vector<8x32xf32> to vector<8x32xbf16>
    %c0_69 = arith.constant 0 : index
    %c0_70 = arith.constant 0 : index
    %165 = vector.load %arg13[%c0_69, %c0_70] : memref<32x32xbf16, #tpu.memory_space<vmem>>, vector<32x32xbf16>
    %cst_71 = arith.constant dense<0.000000e+00> : vector<8x32xf32>
    %166 = tpu.matmul %164, %165, %cst_71 {dimension_numbers = #tpu.dot_dimension_numbers<[1], [0], [0], [1], [0, 0, 1, 1], [], []>} : vector<8x32xbf16>, vector<32x32xbf16>, vector<8x32xf32> -> vector<8x32xf32>
    %c0_72 = arith.constant 0 : index
    %c0_73 = arith.constant 0 : index
    %167 = vector.load %arg14[%c0_72, %c0_73] : memref<1x32xf32, #tpu.memory_space<vmem>>, vector<1x32xf32>
    %168 = vector.broadcast %167 : vector<1x32xf32> to vector<8x32xf32>
    %169 = arith.addf %166, %168 : vector<8x32xf32>
    %170 = arith.addf %169, %106 : vector<8x32xf32>
    %cst_74 = arith.constant dense<0.000000e+00> : vector<8xf32>
    %171 = vector.multi_reduction <add>, %170, %cst_74 [1] : vector<8x32xf32> to vector<8xf32>
    %172 = vector.shape_cast %171 : vector<8xf32> to vector<8x1xf32>
    %cst_75 = arith.constant 3.200000e+01 : f32
    %173 = vector.broadcast %cst_75 : f32 to vector<8x1xf32>
    %174 = arith.divf %172, %173 : vector<8x1xf32>
    %175 = vector.broadcast %174 : vector<8x1xf32> to vector<8x32xf32>
    %176 = arith.subf %170, %175 : vector<8x32xf32>
    %177 = arith.mulf %176, %176 : vector<8x32xf32>
    %cst_76 = arith.constant dense<0.000000e+00> : vector<8xf32>
    %178 = vector.multi_reduction <add>, %177, %cst_76 [1] : vector<8x32xf32> to vector<8xf32>
    %179 = vector.shape_cast %178 : vector<8xf32> to vector<8x1xf32>
    %cst_77 = arith.constant 3.200000e+01 : f32
    %180 = vector.broadcast %cst_77 : f32 to vector<8x1xf32>
    %181 = arith.divf %179, %180 : vector<8x1xf32>
    %182 = vector.broadcast %174 : vector<8x1xf32> to vector<8x32xf32>
    %183 = arith.subf %170, %182 : vector<8x32xf32>
    %cst_78 = arith.constant 9.99999974E-6 : f32
    %184 = vector.broadcast %cst_78 : f32 to vector<8x1xf32>
    %185 = arith.addf %181, %184 : vector<8x1xf32>
    %186 = math.rsqrt %185 : vector<8x1xf32>
    %187 = vector.broadcast %186 : vector<8x1xf32> to vector<8x32xf32>
    %188 = arith.mulf %183, %187 : vector<8x32xf32>
    %c0_79 = arith.constant 0 : index
    %c0_80 = arith.constant 0 : index
    %189 = vector.load %arg21[%c0_79, %c0_80] : memref<1x32xf32, #tpu.memory_space<vmem>>, vector<1x32xf32>
    %190 = vector.broadcast %189 : vector<1x32xf32> to vector<8x32xf32>
    %191 = arith.mulf %188, %190 : vector<8x32xf32>
    %c0_81 = arith.constant 0 : index
    %c0_82 = arith.constant 0 : index
    %192 = vector.load %arg22[%c0_81, %c0_82] : memref<1x32xf32, #tpu.memory_space<vmem>>, vector<1x32xf32>
    %193 = vector.broadcast %192 : vector<1x32xf32> to vector<8x32xf32>
    %194 = arith.addf %191, %193 : vector<8x32xf32>
    %195 = arith.truncf %194 : vector<8x32xf32> to vector<8x32xbf16>
    %c0_83 = arith.constant 0 : index
    %c0_84 = arith.constant 0 : index
    %196 = vector.load %arg15[%c0_83, %c0_84] : memref<32x64xbf16, #tpu.memory_space<vmem>>, vector<32x64xbf16>
    %cst_85 = arith.constant dense<0.000000e+00> : vector<8x64xf32>
    %197 = tpu.matmul %195, %196, %cst_85 {dimension_numbers = #tpu.dot_dimension_numbers<[1], [0], [0], [1], [0, 0, 1, 1], [], []>} : vector<8x32xbf16>, vector<32x64xbf16>, vector<8x64xf32> -> vector<8x64xf32>
    %c0_86 = arith.constant 0 : index
    %c0_87 = arith.constant 0 : index
    %198 = vector.load %arg16[%c0_86, %c0_87] : memref<1x64xf32, #tpu.memory_space<vmem>>, vector<1x64xf32>
    %199 = vector.broadcast %198 : vector<1x64xf32> to vector<8x64xf32>
    %200 = arith.addf %197, %199 : vector<8x64xf32>
    %cst_88 = arith.constant 0.000000e+00 : f32
    %201 = vector.broadcast %cst_88 : f32 to vector<8x64xf32>
    %202 = arith.maximumf %200, %201 : vector<8x64xf32>
    %203 = arith.truncf %202 : vector<8x64xf32> to vector<8x64xbf16>
    %c0_89 = arith.constant 0 : index
    %c0_90 = arith.constant 0 : index
    %204 = vector.load %arg17[%c0_89, %c0_90] : memref<64x32xbf16, #tpu.memory_space<vmem>>, vector<64x32xbf16>
    %cst_91 = arith.constant dense<0.000000e+00> : vector<8x32xf32>
    %205 = tpu.matmul %203, %204, %cst_91 {dimension_numbers = #tpu.dot_dimension_numbers<[1], [0], [0], [1], [0, 0, 1, 1], [], []>} : vector<8x64xbf16>, vector<64x32xbf16>, vector<8x32xf32> -> vector<8x32xf32>
    %c0_92 = arith.constant 0 : index
    %c0_93 = arith.constant 0 : index
    %206 = vector.load %arg18[%c0_92, %c0_93] : memref<1x32xf32, #tpu.memory_space<vmem>>, vector<1x32xf32>
    %207 = vector.broadcast %206 : vector<1x32xf32> to vector<8x32xf32>
    %208 = arith.addf %205, %207 : vector<8x32xf32>
    %209 = arith.addf %208, %194 : vector<8x32xf32>
    %cst_94 = arith.constant dense<0.000000e+00> : vector<8xf32>
    %210 = vector.multi_reduction <add>, %209, %cst_94 [1] : vector<8x32xf32> to vector<8xf32>
    %211 = vector.shape_cast %210 : vector<8xf32> to vector<8x1xf32>
    %cst_95 = arith.constant 3.200000e+01 : f32
    %212 = vector.broadcast %cst_95 : f32 to vector<8x1xf32>
    %213 = arith.divf %211, %212 : vector<8x1xf32>
    %214 = vector.broadcast %213 : vector<8x1xf32> to vector<8x32xf32>
    %215 = arith.subf %209, %214 : vector<8x32xf32>
    %216 = arith.mulf %215, %215 : vector<8x32xf32>
    %cst_96 = arith.constant dense<0.000000e+00> : vector<8xf32>
    %217 = vector.multi_reduction <add>, %216, %cst_96 [1] : vector<8x32xf32> to vector<8xf32>
    %218 = vector.shape_cast %217 : vector<8xf32> to vector<8x1xf32>
    %cst_97 = arith.constant 3.200000e+01 : f32
    %219 = vector.broadcast %cst_97 : f32 to vector<8x1xf32>
    %220 = arith.divf %218, %219 : vector<8x1xf32>
    %221 = vector.broadcast %213 : vector<8x1xf32> to vector<8x32xf32>
    %222 = arith.subf %209, %221 : vector<8x32xf32>
    %cst_98 = arith.constant 9.99999974E-6 : f32
    %223 = vector.broadcast %cst_98 : f32 to vector<8x1xf32>
    %224 = arith.addf %220, %223 : vector<8x1xf32>
    %225 = math.rsqrt %224 : vector<8x1xf32>
    %226 = vector.broadcast %225 : vector<8x1xf32> to vector<8x32xf32>
    %227 = arith.mulf %222, %226 : vector<8x32xf32>
    %c0_99 = arith.constant 0 : index
    %c0_100 = arith.constant 0 : index
    %228 = vector.load %arg23[%c0_99, %c0_100] : memref<1x32xf32, #tpu.memory_space<vmem>>, vector<1x32xf32>
    %229 = vector.broadcast %228 : vector<1x32xf32> to vector<8x32xf32>
    %230 = arith.mulf %227, %229 : vector<8x32xf32>
    %c0_101 = arith.constant 0 : index
    %c0_102 = arith.constant 0 : index
    %231 = vector.load %arg24[%c0_101, %c0_102] : memref<1x32xf32, #tpu.memory_space<vmem>>, vector<1x32xf32>
    %232 = vector.broadcast %231 : vector<1x32xf32> to vector<8x32xf32>
    %233 = arith.addf %230, %232 : vector<8x32xf32>
    %234 = arith.truncf %233 : vector<8x32xf32> to vector<8x32xbf16>
    %c0_103 = arith.constant 0 : index
    %c0_104 = arith.constant 0 : index
    %235 = vector.load %arg5[%c0_103, %c0_104] : memref<32x96xbf16, #tpu.memory_space<vmem>>, vector<32x96xbf16>
    %cst_105 = arith.constant dense<0.000000e+00> : vector<8x96xf32>
    %236 = tpu.matmul %234, %235, %cst_105 {dimension_numbers = #tpu.dot_dimension_numbers<[1], [0], [0], [1], [0, 0, 1, 1], [], []>} : vector<8x32xbf16>, vector<32x96xbf16>, vector<8x96xf32> -> vector<8x96xf32>
    %c0_106 = arith.constant 0 : index
    %c0_107 = arith.constant 0 : index
    %237 = vector.load %arg6[%c0_106, %c0_107] : memref<1x96xf32, #tpu.memory_space<vmem>>, vector<1x96xf32>
    %238 = vector.broadcast %237 : vector<1x96xf32> to vector<8x96xf32>
    %239 = arith.addf %236, %238 : vector<8x96xf32>
    %240 = vector.extract_strided_slice %239 {offsets = [0, 0], sizes = [8, 32], strides = [1, 1]} : vector<8x96xf32> to vector<8x32xf32>
    %241 = vector.extract_strided_slice %239 {offsets = [0, 32], sizes = [8, 32], strides = [1, 1]} : vector<8x96xf32> to vector<8x32xf32>
    %242 = vector.extract_strided_slice %239 {offsets = [0, 64], sizes = [8, 32], strides = [1, 1]} : vector<8x96xf32> to vector<8x32xf32>
    %243 = vector.extract_strided_slice %240 {offsets = [0, 0], sizes = [8, 16], strides = [1, 1]} : vector<8x32xf32> to vector<8x16xf32>
    %244 = arith.truncf %243 : vector<8x16xf32> to vector<8x16xbf16>
    %245 = vector.extract_strided_slice %241 {offsets = [0, 0], sizes = [8, 16], strides = [1, 1]} : vector<8x32xf32> to vector<8x16xf32>
    %246 = arith.truncf %245 : vector<8x16xf32> to vector<8x16xbf16>
    %247 = vector.extract_strided_slice %242 {offsets = [0, 0], sizes = [8, 16], strides = [1, 1]} : vector<8x32xf32> to vector<8x16xf32>
    %248 = arith.truncf %247 : vector<8x16xf32> to vector<8x16xbf16>
    %cst_108 = arith.constant dense<0.000000e+00> : vector<8x8xf32>
    %249 = tpu.matmul %244, %246, %cst_108 {dimension_numbers = #tpu.dot_dimension_numbers<[1], [1], [0], [0], [0, 0, 1, 0], [], []>} : vector<8x16xbf16>, vector<8x16xbf16>, vector<8x8xf32> -> vector<8x8xf32>
    %cst_109 = arith.constant 2.500000e-01 : f32
    %250 = vector.broadcast %cst_109 : f32 to vector<8x8xf32>
    %251 = arith.mulf %249, %250 : vector<8x8xf32>
    %cst_110 = arith.constant 0.000000e+00 : f32
    %252 = vector.broadcast %cst_110 : f32 to vector<8x8xf32>
    %253 = arith.cmpf one, %5, %252 : vector<8x8xf32>
    %cst_111 = arith.constant -1.000000e+09 : f32
    %254 = vector.broadcast %cst_111 : f32 to vector<8x8xf32>
    %255 = arith.select %253, %251, %254 : vector<8x8xi1>, vector<8x8xf32>
    %cst_112 = arith.constant dense<0xFF800000> : vector<8xf32>
    %256 = vector.multi_reduction <maximumf>, %255, %cst_112 [1] : vector<8x8xf32> to vector<8xf32>
    %257 = vector.shape_cast %256 : vector<8xf32> to vector<8x1xf32>
    %258 = vector.broadcast %257 : vector<8x1xf32> to vector<8x8xf32>
    %259 = arith.subf %255, %258 : vector<8x8xf32>
    %260 = math.exp %259 : vector<8x8xf32>
    %cst_113 = arith.constant dense<0.000000e+00> : vector<8xf32>
    %261 = vector.multi_reduction <add>, %260, %cst_113 [1] : vector<8x8xf32> to vector<8xf32>
    %262 = vector.shape_cast %261 : vector<8xf32> to vector<8x1xf32>
    %263 = tpu.reciprocal %262 {approx = true} : vector<8x1xf32> -> vector<8x1xf32>
    %264 = vector.broadcast %263 : vector<8x1xf32> to vector<8x8xf32>
    %265 = arith.mulf %260, %264 : vector<8x8xf32>
    %266 = arith.truncf %265 : vector<8x8xf32> to vector<8x8xbf16>
    %cst_114 = arith.constant dense<0.000000e+00> : vector<8x16xf32>
    %267 = tpu.matmul %266, %248, %cst_114 {dimension_numbers = #tpu.dot_dimension_numbers<[1], [0], [0], [1], [0, 0, 1, 1], [], []>} : vector<8x8xbf16>, vector<8x16xbf16>, vector<8x16xf32> -> vector<8x16xf32>
    %268 = vector.extract_strided_slice %240 {offsets = [0, 16], sizes = [8, 16], strides = [1, 1]} : vector<8x32xf32> to vector<8x16xf32>
    %269 = arith.truncf %268 : vector<8x16xf32> to vector<8x16xbf16>
    %270 = vector.extract_strided_slice %241 {offsets = [0, 16], sizes = [8, 16], strides = [1, 1]} : vector<8x32xf32> to vector<8x16xf32>
    %271 = arith.truncf %270 : vector<8x16xf32> to vector<8x16xbf16>
    %272 = vector.extract_strided_slice %242 {offsets = [0, 16], sizes = [8, 16], strides = [1, 1]} : vector<8x32xf32> to vector<8x16xf32>
    %273 = arith.truncf %272 : vector<8x16xf32> to vector<8x16xbf16>
    %cst_115 = arith.constant dense<0.000000e+00> : vector<8x8xf32>
    %274 = tpu.matmul %269, %271, %cst_115 {dimension_numbers = #tpu.dot_dimension_numbers<[1], [1], [0], [0], [0, 0, 1, 0], [], []>} : vector<8x16xbf16>, vector<8x16xbf16>, vector<8x8xf32> -> vector<8x8xf32>
    %cst_116 = arith.constant 2.500000e-01 : f32
    %275 = vector.broadcast %cst_116 : f32 to vector<8x8xf32>
    %276 = arith.mulf %274, %275 : vector<8x8xf32>
    %cst_117 = arith.constant 0.000000e+00 : f32
    %277 = vector.broadcast %cst_117 : f32 to vector<8x8xf32>
    %278 = arith.cmpf one, %5, %277 : vector<8x8xf32>
    %cst_118 = arith.constant -1.000000e+09 : f32
    %279 = vector.broadcast %cst_118 : f32 to vector<8x8xf32>
    %280 = arith.select %278, %276, %279 : vector<8x8xi1>, vector<8x8xf32>
    %cst_119 = arith.constant dense<0xFF800000> : vector<8xf32>
    %281 = vector.multi_reduction <maximumf>, %280, %cst_119 [1] : vector<8x8xf32> to vector<8xf32>
    %282 = vector.shape_cast %281 : vector<8xf32> to vector<8x1xf32>
    %283 = vector.broadcast %282 : vector<8x1xf32> to vector<8x8xf32>
    %284 = arith.subf %280, %283 : vector<8x8xf32>
    %285 = math.exp %284 : vector<8x8xf32>
    %cst_120 = arith.constant dense<0.000000e+00> : vector<8xf32>
    %286 = vector.multi_reduction <add>, %285, %cst_120 [1] : vector<8x8xf32> to vector<8xf32>
    %287 = vector.shape_cast %286 : vector<8xf32> to vector<8x1xf32>
    %288 = tpu.reciprocal %287 {approx = true} : vector<8x1xf32> -> vector<8x1xf32>
    %289 = vector.broadcast %288 : vector<8x1xf32> to vector<8x8xf32>
    %290 = arith.mulf %285, %289 : vector<8x8xf32>
    %291 = arith.truncf %290 : vector<8x8xf32> to vector<8x8xbf16>
    %cst_121 = arith.constant dense<0.000000e+00> : vector<8x16xf32>
    %292 = tpu.matmul %291, %273, %cst_121 {dimension_numbers = #tpu.dot_dimension_numbers<[1], [0], [0], [1], [0, 0, 1, 1], [], []>} : vector<8x8xbf16>, vector<8x16xbf16>, vector<8x16xf32> -> vector<8x16xf32>
    %293 = tpu.concatenate %267, %292 in 1 : vector<8x16xf32>, vector<8x16xf32> -> vector<8x32xf32>
    %294 = arith.truncf %293 : vector<8x32xf32> to vector<8x32xbf16>
    %c0_122 = arith.constant 0 : index
    %c0_123 = arith.constant 0 : index
    %295 = vector.load %arg7[%c0_122, %c0_123] : memref<32x32xbf16, #tpu.memory_space<vmem>>, vector<32x32xbf16>
    %cst_124 = arith.constant dense<0.000000e+00> : vector<8x32xf32>
    %296 = tpu.matmul %294, %295, %cst_124 {dimension_numbers = #tpu.dot_dimension_numbers<[1], [0], [0], [1], [0, 0, 1, 1], [], []>} : vector<8x32xbf16>, vector<32x32xbf16>, vector<8x32xf32> -> vector<8x32xf32>
    %c0_125 = arith.constant 0 : index
    %c0_126 = arith.constant 0 : index
    %297 = vector.load %arg8[%c0_125, %c0_126] : memref<1x32xf32, #tpu.memory_space<vmem>>, vector<1x32xf32>
    %298 = vector.broadcast %297 : vector<1x32xf32> to vector<8x32xf32>
    %299 = arith.addf %296, %298 : vector<8x32xf32>
    %300 = arith.addf %299, %233 : vector<8x32xf32>
    %cst_127 = arith.constant dense<0.000000e+00> : vector<8xf32>
    %301 = vector.multi_reduction <add>, %300, %cst_127 [1] : vector<8x32xf32> to vector<8xf32>
    %302 = vector.shape_cast %301 : vector<8xf32> to vector<8x1xf32>
    %cst_128 = arith.constant 3.200000e+01 : f32
    %303 = vector.broadcast %cst_128 : f32 to vector<8x1xf32>
    %304 = arith.divf %302, %303 : vector<8x1xf32>
    %305 = vector.broadcast %304 : vector<8x1xf32> to vector<8x32xf32>
    %306 = arith.subf %300, %305 : vector<8x32xf32>
    %307 = arith.mulf %306, %306 : vector<8x32xf32>
    %cst_129 = arith.constant dense<0.000000e+00> : vector<8xf32>
    %308 = vector.multi_reduction <add>, %307, %cst_129 [1] : vector<8x32xf32> to vector<8xf32>
    %309 = vector.shape_cast %308 : vector<8xf32> to vector<8x1xf32>
    %cst_130 = arith.constant 3.200000e+01 : f32
    %310 = vector.broadcast %cst_130 : f32 to vector<8x1xf32>
    %311 = arith.divf %309, %310 : vector<8x1xf32>
    %312 = vector.broadcast %304 : vector<8x1xf32> to vector<8x32xf32>
    %313 = arith.subf %300, %312 : vector<8x32xf32>
    %cst_131 = arith.constant 9.99999974E-6 : f32
    %314 = vector.broadcast %cst_131 : f32 to vector<8x1xf32>
    %315 = arith.addf %311, %314 : vector<8x1xf32>
    %316 = math.rsqrt %315 : vector<8x1xf32>
    %317 = vector.broadcast %316 : vector<8x1xf32> to vector<8x32xf32>
    %318 = arith.mulf %313, %317 : vector<8x32xf32>
    %c0_132 = arith.constant 0 : index
    %c0_133 = arith.constant 0 : index
    %319 = vector.load %arg19[%c0_132, %c0_133] : memref<1x32xf32, #tpu.memory_space<vmem>>, vector<1x32xf32>
    %320 = vector.broadcast %319 : vector<1x32xf32> to vector<8x32xf32>
    %321 = arith.mulf %318, %320 : vector<8x32xf32>
    %c0_134 = arith.constant 0 : index
    %c0_135 = arith.constant 0 : index
    %322 = vector.load %arg20[%c0_134, %c0_135] : memref<1x32xf32, #tpu.memory_space<vmem>>, vector<1x32xf32>
    %323 = vector.broadcast %322 : vector<1x32xf32> to vector<8x32xf32>
    %324 = arith.addf %321, %323 : vector<8x32xf32>
    %325 = arith.truncf %324 : vector<8x32xf32> to vector<8x32xbf16>
    %c0_136 = arith.constant 0 : index
    %c0_137 = arith.constant 0 : index
    %326 = vector.load %arg9[%c0_136, %c0_137] : memref<32x32xbf16, #tpu.memory_space<vmem>>, vector<32x32xbf16>
    %cst_138 = arith.constant dense<0.000000e+00> : vector<8x32xf32>
    %327 = tpu.matmul %325, %326, %cst_138 {dimension_numbers = #tpu.dot_dimension_numbers<[1], [0], [0], [1], [0, 0, 1, 1], [], []>} : vector<8x32xbf16>, vector<32x32xbf16>, vector<8x32xf32> -> vector<8x32xf32>
    %c0_139 = arith.constant 0 : index
    %c0_140 = arith.constant 0 : index
    %328 = vector.load %arg10[%c0_139, %c0_140] : memref<1x32xf32, #tpu.memory_space<vmem>>, vector<1x32xf32>
    %329 = vector.broadcast %328 : vector<1x32xf32> to vector<8x32xf32>
    %330 = arith.addf %327, %329 : vector<8x32xf32>
    %331 = vector.extract_strided_slice %330 {offsets = [0, 0], sizes = [8, 16], strides = [1, 1]} : vector<8x32xf32> to vector<8x16xf32>
    %332 = arith.truncf %331 : vector<8x16xf32> to vector<8x16xbf16>
    %333 = vector.extract_strided_slice %14 {offsets = [0, 0], sizes = [8, 16], strides = [1, 1]} : vector<8x32xf32> to vector<8x16xf32>
    %334 = arith.truncf %333 : vector<8x16xf32> to vector<8x16xbf16>
    %335 = vector.extract_strided_slice %15 {offsets = [0, 0], sizes = [8, 16], strides = [1, 1]} : vector<8x32xf32> to vector<8x16xf32>
    %336 = arith.truncf %335 : vector<8x16xf32> to vector<8x16xbf16>
    %cst_141 = arith.constant dense<0.000000e+00> : vector<8x8xf32>
    %337 = tpu.matmul %332, %334, %cst_141 {dimension_numbers = #tpu.dot_dimension_numbers<[1], [1], [0], [0], [0, 0, 1, 0], [], []>} : vector<8x16xbf16>, vector<8x16xbf16>, vector<8x8xf32> -> vector<8x8xf32>
    %cst_142 = arith.constant 2.500000e-01 : f32
    %338 = vector.broadcast %cst_142 : f32 to vector<8x8xf32>
    %339 = arith.mulf %337, %338 : vector<8x8xf32>
    %cst_143 = arith.constant 0.000000e+00 : f32
    %340 = vector.broadcast %cst_143 : f32 to vector<8x8xf32>
    %341 = arith.cmpf one, %7, %340 : vector<8x8xf32>
    %cst_144 = arith.constant -1.000000e+09 : f32
    %342 = vector.broadcast %cst_144 : f32 to vector<8x8xf32>
    %343 = arith.select %341, %339, %342 : vector<8x8xi1>, vector<8x8xf32>
    %cst_145 = arith.constant dense<0xFF800000> : vector<8xf32>
    %344 = vector.multi_reduction <maximumf>, %343, %cst_145 [1] : vector<8x8xf32> to vector<8xf32>
    %345 = vector.shape_cast %344 : vector<8xf32> to vector<8x1xf32>
    %346 = vector.broadcast %345 : vector<8x1xf32> to vector<8x8xf32>
    %347 = arith.subf %343, %346 : vector<8x8xf32>
    %348 = math.exp %347 : vector<8x8xf32>
    %cst_146 = arith.constant dense<0.000000e+00> : vector<8xf32>
    %349 = vector.multi_reduction <add>, %348, %cst_146 [1] : vector<8x8xf32> to vector<8xf32>
    %350 = vector.shape_cast %349 : vector<8xf32> to vector<8x1xf32>
    %351 = tpu.reciprocal %350 {approx = true} : vector<8x1xf32> -> vector<8x1xf32>
    %352 = vector.broadcast %351 : vector<8x1xf32> to vector<8x8xf32>
    %353 = arith.mulf %348, %352 : vector<8x8xf32>
    %354 = arith.truncf %353 : vector<8x8xf32> to vector<8x8xbf16>
    %cst_147 = arith.constant dense<0.000000e+00> : vector<8x16xf32>
    %355 = tpu.matmul %354, %336, %cst_147 {dimension_numbers = #tpu.dot_dimension_numbers<[1], [0], [0], [1], [0, 0, 1, 1], [], []>} : vector<8x8xbf16>, vector<8x16xbf16>, vector<8x16xf32> -> vector<8x16xf32>
    %c0_148 = arith.constant 0 : index
    %c0_149 = arith.constant 0 : index
    %c0_150 = arith.constant 0 : index
    %c0_151 = arith.constant 0 : index
    %356 = vector.load %arg26[%c0_148, %c0_149, %c0_150, %c0_151] : memref<1x2x8x8xf32, #tpu.memory_space<vmem>>, vector<1x1x8x8xf32>
    %357 = vector.shape_cast %356 : vector<1x1x8x8xf32> to vector<8x8xf32>
    %358 = vector.shape_cast %353 : vector<8x8xf32> to vector<1x1x8x8xf32>
    tpu.vector_store %arg26[%c0_148, %c0_149, %c0_150, %c0_151], %358 {strides = array<i32>} : memref<1x2x8x8xf32, #tpu.memory_space<vmem>>, vector<1x1x8x8xf32>,
    %359 = vector.extract_strided_slice %330 {offsets = [0, 16], sizes = [8, 16], strides = [1, 1]} : vector<8x32xf32> to vector<8x16xf32>
    %360 = arith.truncf %359 : vector<8x16xf32> to vector<8x16xbf16>
    %361 = vector.extract_strided_slice %14 {offsets = [0, 16], sizes = [8, 16], strides = [1, 1]} : vector<8x32xf32> to vector<8x16xf32>
    %362 = arith.truncf %361 : vector<8x16xf32> to vector<8x16xbf16>
    %363 = vector.extract_strided_slice %15 {offsets = [0, 16], sizes = [8, 16], strides = [1, 1]} : vector<8x32xf32> to vector<8x16xf32>
    %364 = arith.truncf %363 : vector<8x16xf32> to vector<8x16xbf16>
    %cst_152 = arith.constant dense<0.000000e+00> : vector<8x8xf32>
    %365 = tpu.matmul %360, %362, %cst_152 {dimension_numbers = #tpu.dot_dimension_numbers<[1], [1], [0], [0], [0, 0, 1, 0], [], []>} : vector<8x16xbf16>, vector<8x16xbf16>, vector<8x8xf32> -> vector<8x8xf32>
    %cst_153 = arith.constant 2.500000e-01 : f32
    %366 = vector.broadcast %cst_153 : f32 to vector<8x8xf32>
    %367 = arith.mulf %365, %366 : vector<8x8xf32>
    %cst_154 = arith.constant 0.000000e+00 : f32
    %368 = vector.broadcast %cst_154 : f32 to vector<8x8xf32>
    %369 = arith.cmpf one, %7, %368 : vector<8x8xf32>
    %cst_155 = arith.constant -1.000000e+09 : f32
    %370 = vector.broadcast %cst_155 : f32 to vector<8x8xf32>
    %371 = arith.select %369, %367, %370 : vector<8x8xi1>, vector<8x8xf32>
    %cst_156 = arith.constant dense<0xFF800000> : vector<8xf32>
    %372 = vector.multi_reduction <maximumf>, %371, %cst_156 [1] : vector<8x8xf32> to vector<8xf32>
    %373 = vector.shape_cast %372 : vector<8xf32> to vector<8x1xf32>
    %374 = vector.broadcast %373 : vector<8x1xf32> to vector<8x8xf32>
    %375 = arith.subf %371, %374 : vector<8x8xf32>
    %376 = math.exp %375 : vector<8x8xf32>
    %cst_157 = arith.constant dense<0.000000e+00> : vector<8xf32>
    %377 = vector.multi_reduction <add>, %376, %cst_157 [1] : vector<8x8xf32> to vector<8xf32>
    %378 = vector.shape_cast %377 : vector<8xf32> to vector<8x1xf32>
    %379 = tpu.reciprocal %378 {approx = true} : vector<8x1xf32> -> vector<8x1xf32>
    %380 = vector.broadcast %379 : vector<8x1xf32> to vector<8x8xf32>
    %381 = arith.mulf %376, %380 : vector<8x8xf32>
    %382 = arith.truncf %381 : vector<8x8xf32> to vector<8x8xbf16>
    %cst_158 = arith.constant dense<0.000000e+00> : vector<8x16xf32>
    %383 = tpu.matmul %382, %364, %cst_158 {dimension_numbers = #tpu.dot_dimension_numbers<[1], [0], [0], [1], [0, 0, 1, 1], [], []>} : vector<8x8xbf16>, vector<8x16xbf16>, vector<8x16xf32> -> vector<8x16xf32>
    %c0_159 = arith.constant 0 : index
    %c1 = arith.constant 1 : index
    %c0_160 = arith.constant 0 : index
    %c0_161 = arith.constant 0 : index
    %384 = vector.load %arg26[%c0_159, %c1, %c0_160, %c0_161] : memref<1x2x8x8xf32, #tpu.memory_space<vmem>>, vector<1x1x8x8xf32>
    %385 = vector.shape_cast %384 : vector<1x1x8x8xf32> to vector<8x8xf32>
    %386 = vector.shape_cast %381 : vector<8x8xf32> to vector<1x1x8x8xf32>
    tpu.vector_store %arg26[%c0_159, %c1, %c0_160, %c0_161], %386 {strides = array<i32>} : memref<1x2x8x8xf32, #tpu.memory_space<vmem>>, vector<1x1x8x8xf32>,
    %387 = tpu.concatenate %355, %383 in 1 : vector<8x16xf32>, vector<8x16xf32> -> vector<8x32xf32>
    %388 = arith.truncf %387 : vector<8x32xf32> to vector<8x32xbf16>
    %c0_162 = arith.constant 0 : index
    %c0_163 = arith.constant 0 : index
    %389 = vector.load %arg13[%c0_162, %c0_163] : memref<32x32xbf16, #tpu.memory_space<vmem>>, vector<32x32xbf16>
    %cst_164 = arith.constant dense<0.000000e+00> : vector<8x32xf32>
    %390 = tpu.matmul %388, %389, %cst_164 {dimension_numbers = #tpu.dot_dimension_numbers<[1], [0], [0], [1], [0, 0, 1, 1], [], []>} : vector<8x32xbf16>, vector<32x32xbf16>, vector<8x32xf32> -> vector<8x32xf32>
    %c0_165 = arith.constant 0 : index
    %c0_166 = arith.constant 0 : index
    %391 = vector.load %arg14[%c0_165, %c0_166] : memref<1x32xf32, #tpu.memory_space<vmem>>, vector<1x32xf32>
    %392 = vector.broadcast %391 : vector<1x32xf32> to vector<8x32xf32>
    %393 = arith.addf %390, %392 : vector<8x32xf32>
    %394 = arith.addf %393, %324 : vector<8x32xf32>
    %cst_167 = arith.constant dense<0.000000e+00> : vector<8xf32>
    %395 = vector.multi_reduction <add>, %394, %cst_167 [1] : vector<8x32xf32> to vector<8xf32>
    %396 = vector.shape_cast %395 : vector<8xf32> to vector<8x1xf32>
    %cst_168 = arith.constant 3.200000e+01 : f32
    %397 = vector.broadcast %cst_168 : f32 to vector<8x1xf32>
    %398 = arith.divf %396, %397 : vector<8x1xf32>
    %399 = vector.broadcast %398 : vector<8x1xf32> to vector<8x32xf32>
    %400 = arith.subf %394, %399 : vector<8x32xf32>
    %401 = arith.mulf %400, %400 : vector<8x32xf32>
    %cst_169 = arith.constant dense<0.000000e+00> : vector<8xf32>
    %402 = vector.multi_reduction <add>, %401, %cst_169 [1] : vector<8x32xf32> to vector<8xf32>
    %403 = vector.shape_cast %402 : vector<8xf32> to vector<8x1xf32>
    %cst_170 = arith.constant 3.200000e+01 : f32
    %404 = vector.broadcast %cst_170 : f32 to vector<8x1xf32>
    %405 = arith.divf %403, %404 : vector<8x1xf32>
    %406 = vector.broadcast %398 : vector<8x1xf32> to vector<8x32xf32>
    %407 = arith.subf %394, %406 : vector<8x32xf32>
    %cst_171 = arith.constant 9.99999974E-6 : f32
    %408 = vector.broadcast %cst_171 : f32 to vector<8x1xf32>
    %409 = arith.addf %405, %408 : vector<8x1xf32>
    %410 = math.rsqrt %409 : vector<8x1xf32>
    %411 = vector.broadcast %410 : vector<8x1xf32> to vector<8x32xf32>
    %412 = arith.mulf %407, %411 : vector<8x32xf32>
    %c0_172 = arith.constant 0 : index
    %c0_173 = arith.constant 0 : index
    %413 = vector.load %arg21[%c0_172, %c0_173] : memref<1x32xf32, #tpu.memory_space<vmem>>, vector<1x32xf32>
    %414 = vector.broadcast %413 : vector<1x32xf32> to vector<8x32xf32>
    %415 = arith.mulf %412, %414 : vector<8x32xf32>
    %c0_174 = arith.constant 0 : index
    %c0_175 = arith.constant 0 : index
    %416 = vector.load %arg22[%c0_174, %c0_175] : memref<1x32xf32, #tpu.memory_space<vmem>>, vector<1x32xf32>
    %417 = vector.broadcast %416 : vector<1x32xf32> to vector<8x32xf32>
    %418 = arith.addf %415, %417 : vector<8x32xf32>
    %419 = arith.truncf %418 : vector<8x32xf32> to vector<8x32xbf16>
    %c0_176 = arith.constant 0 : index
    %c0_177 = arith.constant 0 : index
    %420 = vector.load %arg15[%c0_176, %c0_177] : memref<32x64xbf16, #tpu.memory_space<vmem>>, vector<32x64xbf16>
    %cst_178 = arith.constant dense<0.000000e+00> : vector<8x64xf32>
    %421 = tpu.matmul %419, %420, %cst_178 {dimension_numbers = #tpu.dot_dimension_numbers<[1], [0], [0], [1], [0, 0, 1, 1], [], []>} : vector<8x32xbf16>, vector<32x64xbf16>, vector<8x64xf32> -> vector<8x64xf32>
    %c0_179 = arith.constant 0 : index
    %c0_180 = arith.constant 0 : index
    %422 = vector.load %arg16[%c0_179, %c0_180] : memref<1x64xf32, #tpu.memory_space<vmem>>, vector<1x64xf32>
    %423 = vector.broadcast %422 : vector<1x64xf32> to vector<8x64xf32>
    %424 = arith.addf %421, %423 : vector<8x64xf32>
    %cst_181 = arith.constant 0.000000e+00 : f32
    %425 = vector.broadcast %cst_181 : f32 to vector<8x64xf32>
    %426 = arith.maximumf %424, %425 : vector<8x64xf32>
    %427 = arith.truncf %426 : vector<8x64xf32> to vector<8x64xbf16>
    %c0_182 = arith.constant 0 : index
    %c0_183 = arith.constant 0 : index
    %428 = vector.load %arg17[%c0_182, %c0_183] : memref<64x32xbf16, #tpu.memory_space<vmem>>, vector<64x32xbf16>
    %cst_184 = arith.constant dense<0.000000e+00> : vector<8x32xf32>
    %429 = tpu.matmul %427, %428, %cst_184 {dimension_numbers = #tpu.dot_dimension_numbers<[1], [0], [0], [1], [0, 0, 1, 1], [], []>} : vector<8x64xbf16>, vector<64x32xbf16>, vector<8x32xf32> -> vector<8x32xf32>
    %c0_185 = arith.constant 0 : index
    %c0_186 = arith.constant 0 : index
    %430 = vector.load %arg18[%c0_185, %c0_186] : memref<1x32xf32, #tpu.memory_space<vmem>>, vector<1x32xf32>
    %431 = vector.broadcast %430 : vector<1x32xf32> to vector<8x32xf32>
    %432 = arith.addf %429, %431 : vector<8x32xf32>
    %433 = arith.addf %432, %418 : vector<8x32xf32>
    %cst_187 = arith.constant dense<0.000000e+00> : vector<8xf32>
    %434 = vector.multi_reduction <add>, %433, %cst_187 [1] : vector<8x32xf32> to vector<8xf32>
    %435 = vector.shape_cast %434 : vector<8xf32> to vector<8x1xf32>
    %cst_188 = arith.constant 3.200000e+01 : f32
    %436 = vector.broadcast %cst_188 : f32 to vector<8x1xf32>
    %437 = arith.divf %435, %436 : vector<8x1xf32>
    %438 = vector.broadcast %437 : vector<8x1xf32> to vector<8x32xf32>
    %439 = arith.subf %433, %438 : vector<8x32xf32>
    %440 = arith.mulf %439, %439 : vector<8x32xf32>
    %cst_189 = arith.constant dense<0.000000e+00> : vector<8xf32>
    %441 = vector.multi_reduction <add>, %440, %cst_189 [1] : vector<8x32xf32> to vector<8xf32>
    %442 = vector.shape_cast %441 : vector<8xf32> to vector<8x1xf32>
    %cst_190 = arith.constant 3.200000e+01 : f32
    %443 = vector.broadcast %cst_190 : f32 to vector<8x1xf32>
    %444 = arith.divf %442, %443 : vector<8x1xf32>
    %445 = vector.broadcast %437 : vector<8x1xf32> to vector<8x32xf32>
    %446 = arith.subf %433, %445 : vector<8x32xf32>
    %cst_191 = arith.constant 9.99999974E-6 : f32
    %447 = vector.broadcast %cst_191 : f32 to vector<8x1xf32>
    %448 = arith.addf %444, %447 : vector<8x1xf32>
    %449 = math.rsqrt %448 : vector<8x1xf32>
    %450 = vector.broadcast %449 : vector<8x1xf32> to vector<8x32xf32>
    %451 = arith.mulf %446, %450 : vector<8x32xf32>
    %c0_192 = arith.constant 0 : index
    %c0_193 = arith.constant 0 : index
    %452 = vector.load %arg23[%c0_192, %c0_193] : memref<1x32xf32, #tpu.memory_space<vmem>>, vector<1x32xf32>
    %453 = vector.broadcast %452 : vector<1x32xf32> to vector<8x32xf32>
    %454 = arith.mulf %451, %453 : vector<8x32xf32>
    %c0_194 = arith.constant 0 : index
    %c0_195 = arith.constant 0 : index
    %455 = vector.load %arg24[%c0_194, %c0_195] : memref<1x32xf32, #tpu.memory_space<vmem>>, vector<1x32xf32>
    %456 = vector.broadcast %455 : vector<1x32xf32> to vector<8x32xf32>
    %457 = arith.addf %454, %456 : vector<8x32xf32>
    %c0_196 = arith.constant 0 : index
    %c0_197 = arith.constant 0 : index
    %c0_198 = arith.constant 0 : index
    %458 = vector.load %arg25[%c0_196, %c0_197, %c0_198] : memref<1x8x32xf32, #tpu.memory_space<vmem>>, vector<1x8x32xf32>
    %459 = vector.shape_cast %458 : vector<1x8x32xf32> to vector<8x32xf32>
    %460 = vector.shape_cast %457 : vector<8x32xf32> to vector<1x8x32xf32>
    tpu.vector_store %arg25[%c0_196, %c0_197, %c0_198], %460 {strides = array<i32>} : memref<1x8x32xf32, #tpu.memory_space<vmem>>, vector<1x8x32xf32>,
    return
  }
  func.func @transform_0(%arg0: i32) -> (i32, i32, i32) {
    %c0_i32 = arith.constant 0 : i32
    %c0_i32_0 = arith.constant 0 : i32
    %c0_i32_1 = arith.constant 0 : i32
    return %arg0, %c0_i32, %c0_i32_0 : i32, i32, i32
  }
  func.func @transform_1(%arg0: i32) -> (i32, i32, i32) {
    %c0_i32 = arith.constant 0 : i32
    %c0_i32_0 = arith.constant 0 : i32
    %c0_i32_1 = arith.constant 0 : i32
    return %arg0, %c0_i32, %c0_i32_0 : i32, i32, i32
  }
  func.func @transform_2(%arg0: i32) -> (i32, i32, i32, i32) {
    %c0_i32 = arith.constant 0 : i32
    %c0_i32_0 = arith.constant 0 : i32
    %c0_i32_1 = arith.constant 0 : i32
    %c0_i32_2 = arith.constant 0 : i32
    return %arg0, %c0_i32, %c0_i32_0, %c0_i32_1 : i32, i32, i32, i32
  }
  func.func @transform_3(%arg0: i32) -> (i32, i32, i32, i32) {
    %c0_i32 = arith.constant 0 : i32
    %c0_i32_0 = arith.constant 0 : i32
    %c0_i32_1 = arith.constant 0 : i32
    %c0_i32_2 = arith.constant 0 : i32
    return %arg0, %c0_i32, %c0_i32_0, %c0_i32_1 : i32, i32, i32, i32
  }
  func.func @transform_4(%arg0: i32) -> (i32, i32) {
    %c0_i32 = arith.constant 0 : i32
    %c0_i32_0 = arith.constant 0 : i32
    %c0_i32_1 = arith.constant 0 : i32
    return %c0_i32, %c0_i32_0 : i32, i32
  }
  func.func @transform_5(%arg0: i32) -> (i32, i32) {
    %c0_i32 = arith.constant 0 : i32
    %c0_i32_0 = arith.constant 0 : i32
    %c0_i32_1 = arith.constant 0 : i32
    return %c0_i32, %c0_i32_0 : i32, i32
  }
  func.func @transform_6(%arg0: i32) -> (i32, i32) {
    %c0_i32 = arith.constant 0 : i32
    %c0_i32_0 = arith.constant 0 : i32
    %c0_i32_1 = arith.constant 0 : i32
    return %c0_i32, %c0_i32_0 : i32, i32
  }
  func.func @transform_7(%arg0: i32) -> (i32, i32) {
    %c0_i32 = arith.constant 0 : i32
    %c0_i32_0 = arith.constant 0 : i32
    %c0_i32_1 = arith.constant 0 : i32
    return %c0_i32, %c0_i32_0 : i32, i32
  }
  func.func @transform_8(%arg0: i32) -> (i32, i32) {
    %c0_i32 = arith.constant 0 : i32
    %c0_i32_0 = arith.constant 0 : i32
    %c0_i32_1 = arith.constant 0 : i32
    return %c0_i32, %c0_i32_0 : i32, i32
  }
  func.func @transform_9(%arg0: i32) -> (i32, i32) {
    %c0_i32 = arith.constant 0 : i32
    %c0_i32_0 = arith.constant 0 : i32
    %c0_i32_1 = arith.constant 0 : i32
    return %c0_i32, %c0_i32_0 : i32, i32
  }
  func.func @transform_10(%arg0: i32) -> (i32, i32) {
    %c0_i32 = arith.constant 0 : i32
    %c0_i32_0 = arith.constant 0 : i32
    %c0_i32_1 = arith.constant 0 : i32
    return %c0_i32, %c0_i32_0 : i32, i32
  }
  func.func @transform_11(%arg0: i32) -> (i32, i32) {
    %c0_i32 = arith.constant 0 : i32
    %c0_i32_0 = arith.constant 0 : i32
    %c0_i32_1 = arith.constant 0 : i32
    return %c0_i32, %c0_i32_0 : i32, i32
  }
  func.func @transform_12(%arg0: i32) -> (i32, i32) {
    %c0_i32 = arith.constant 0 : i32
    %c0_i32_0 = arith.constant 0 : i32
    %c0_i32_1 = arith.constant 0 : i32
    return %c0_i32, %c0_i32_0 : i32, i32
  }
  func.func @transform_13(%arg0: i32) -> (i32, i32) {
    %c0_i32 = arith.constant 0 : i32
    %c0_i32_0 = arith.constant 0 : i32
    %c0_i32_1 = arith.constant 0 : i32
    return %c0_i32, %c0_i32_0 : i32, i32
  }
  func.func @transform_14(%arg0: i32) -> (i32, i32) {
    %c0_i32 = arith.constant 0 : i32
    %c0_i32_0 = arith.constant 0 : i32
    %c0_i32_1 = arith.constant 0 : i32
    return %c0_i32, %c0_i32_0 : i32, i32
  }
  func.func @transform_15(%arg0: i32) -> (i32, i32) {
    %c0_i32 = arith.constant 0 : i32
    %c0_i32_0 = arith.constant 0 : i32
    %c0_i32_1 = arith.constant 0 : i32
    return %c0_i32, %c0_i32_0 : i32, i32
  }
  func.func @transform_16(%arg0: i32) -> (i32, i32) {
    %c0_i32 = arith.constant 0 : i32
    %c0_i32_0 = arith.constant 0 : i32
    %c0_i32_1 = arith.constant 0 : i32
    return %c0_i32, %c0_i32_0 : i32, i32
  }
  func.func @transform_17(%arg0: i32) -> (i32, i32) {
    %c0_i32 = arith.constant 0 : i32
    %c0_i32_0 = arith.constant 0 : i32
    %c0_i32_1 = arith.constant 0 : i32
    return %c0_i32, %c0_i32_0 : i32, i32
  }
  func.func @transform_18(%arg0: i32) -> (i32, i32) {
    %c0_i32 = arith.constant 0 : i32
    %c0_i32_0 = arith.constant 0 : i32
    %c0_i32_1 = arith.constant 0 : i32
    return %c0_i32, %c0_i32_0 : i32, i32
  }
  func.func @transform_19(%arg0: i32) -> (i32, i32) {
    %c0_i32 = arith.constant 0 : i32
    %c0_i32_0 = arith.constant 0 : i32
    %c0_i32_1 = arith.constant 0 : i32
    return %c0_i32, %c0_i32_0 : i32, i32
  }
  func.func @transform_20(%arg0: i32) -> (i32, i32) {
    %c0_i32 = arith.constant 0 : i32
    %c0_i32_0 = arith.constant 0 : i32
    %c0_i32_1 = arith.constant 0 : i32
    return %c0_i32, %c0_i32_0 : i32, i32
  }
  func.func @transform_21(%arg0: i32) -> (i32, i32) {
    %c0_i32 = arith.constant 0 : i32
    %c0_i32_0 = arith.constant 0 : i32
    %c0_i32_1 = arith.constant 0 : i32
    return %c0_i32, %c0_i32_0 : i32, i32
  }
  func.func @transform_22(%arg0: i32) -> (i32, i32) {
    %c0_i32 = arith.constant 0 : i32
    %c0_i32_0 = arith.constant 0 : i32
    %c0_i32_1 = arith.constant 0 : i32
    return %c0_i32, %c0_i32_0 : i32, i32
  }
  func.func @transform_23(%arg0: i32) -> (i32, i32) {
    %c0_i32 = arith.constant 0 : i32
    %c0_i32_0 = arith.constant 0 : i32
    %c0_i32_1 = arith.constant 0 : i32
    return %c0_i32, %c0_i32_0 : i32, i32
  }
  func.func @transform_24(%arg0: i32) -> (i32, i32, i32) {
    %c0_i32 = arith.constant 0 : i32
    %c0_i32_0 = arith.constant 0 : i32
    %c0_i32_1 = arith.constant 0 : i32
    return %arg0, %c0_i32, %c0_i32_0 : i32, i32, i32
  }
  func.func @transform_25(%arg0: i32) -> (i32, i32, i32, i32) {
    %c0_i32 = arith.constant 0 : i32
    %c0_i32_0 = arith.constant 0 : i32
    %c0_i32_1 = arith.constant 0 : i32
    %c0_i32_2 = arith.constant 0 : i32
    return %arg0, %c0_i32, %c0_i32_0, %c0_i32_1 : i32, i32, i32, i32
  }
}

</mosaic_0001>

<llo_original>
// kernel: tpu_custom_call.1
$region0: #{tpu_custom_call.1}
  #allocation0 [shape = 'u32[]', space=smem, size = 0x4, offset = 0x4, fixed_abs, tag = 'smem constant byte address 0x4 - core index']
  #allocation1 [shape = 'u32[144,128]{1,0:T(1,128)}', space=vmem, size = 0x12000, scoped, tag = 'internal scratch']
  %s0 = inlined_call_operand.vmem [shape: f32[2,8,32], index: 0, kind: input, shape index: {}]
  %s1 = inlined_call_operand.vmem [shape: f32[2,8,32], index: 1, kind: input, shape index: {}]
  %s2 = inlined_call_operand.vmem [shape: f32[2,1,8,8], index: 2, kind: input, shape index: {}]
  %s3 = inlined_call_operand.hbm [shape: f32[2,1,8,8], index: 3, kind: input, shape index: {}]
  %s4 = inlined_call_operand.hbm [shape: bf16[32,96], index: 4, kind: input, shape index: {}]
  %s5 = inlined_call_operand.vmem [shape: f32[1,96], index: 5, kind: input, shape index: {}]
  %s6 = inlined_call_operand.hbm [shape: bf16[32,32], index: 6, kind: input, shape index: {}]
  %s7 = inlined_call_operand.vmem [shape: f32[1,32], index: 7, kind: input, shape index: {}]
  %s8 = inlined_call_operand.hbm [shape: bf16[32,32], index: 8, kind: input, shape index: {}]
  %s9 = inlined_call_operand.vmem [shape: f32[1,32], index: 9, kind: input, shape index: {}]
  %s10 = inlined_call_operand.hbm [shape: bf16[32,64], index: 10, kind: input, shape index: {}]
  %s11 = inlined_call_operand.vmem [shape: f32[1,64], index: 11, kind: input, shape index: {}]
  %s12 = inlined_call_operand.hbm [shape: bf16[32,32], index: 12, kind: input, shape index: {}]
  %s13 = inlined_call_operand.vmem [shape: f32[1,32], index: 13, kind: input, shape index: {}]
  %s14 = inlined_call_operand.hbm [shape: bf16[32,64], index: 14, kind: input, shape index: {}]
  %s15 = inlined_call_operand.vmem [shape: f32[1,64], index: 15, kind: input, shape index: {}]
  %s16 = inlined_call_operand.vmem [shape: bf16[64,32], index: 16, kind: input, shape index: {}]
  %s17 = inlined_call_operand.vmem [shape: f32[1,32], index: 17, kind: input, shape index: {}]
  %s18 = inlined_call_operand.vmem [shape: f32[1,32], index: 18, kind: input, shape index: {}]
  %s19 = inlined_call_operand.vmem [shape: f32[1,32], index: 19, kind: input, shape index: {}]
  %s20 = inlined_call_operand.vmem [shape: f32[1,32], index: 20, kind: input, shape index: {}]
  %s21 = inlined_call_operand.vmem [shape: f32[1,32], index: 21, kind: input, shape index: {}]
  %s22 = inlined_call_operand.vmem [shape: f32[1,32], index: 22, kind: input, shape index: {}]
  %s23 = inlined_call_operand.vmem [shape: f32[1,32], index: 23, kind: input, shape index: {}]
  %s24 = inlined_call_operand.hbm [shape: f32[2,8,32], index: 24, kind: output, shape index: {0}]
  %s25 = inlined_call_operand.hbm [shape: f32[2,2,8,8], index: 25, kind: output, shape index: {1}]
  %26 = xla_tuple %s24, %s25
  %s27 = sld [smem:[#allocation0]]
  $region165: #{tpu_custom_call.1} parent=0
    _
  %s29 = ssub.s32 1, %s27
  %s30 = scalar_select 0, %s29, %s27
  $region1: #{tpu_custom_call.1} parent=0
    #allocation2 [shape = 'u8[8192]{0}', space=vmem, size = 0x2000, scoped, tag = 'input window, operand 3']
    #allocation3 [shape = 's32[2]{0}', space=sflag, size = 0x8, scoped, tag = 'scoped memory for tpu_custom_call.1']
    #allocation4 [shape = 's32[2]{0}', space=sflag, size = 0x8, scoped, tag = 'scoped memory for tpu_custom_call.1']
    #allocation5 [shape = 'u8[8192]{0}', space=vmem, size = 0x2000, scoped, tag = 'input window, operand 4, single buffered']
    #allocation6 [shape = 's32[1]{0}', space=sflag, size = 0x4, scoped, tag = 'scoped memory for tpu_custom_call.1']
    #allocation7 [shape = 'u8[8192]{0}', space=vmem, size = 0x2000, scoped, tag = 'input window, operand 6, single buffered']
    #allocation8 [shape = 'u8[8192]{0}', space=vmem, size = 0x2000, scoped, tag = 'input window, operand 8, single buffered']
    #allocation9 [shape = 's32[1]{0}', space=sflag, size = 0x4, scoped, tag = 'scoped memory for tpu_custom_call.1']
    #allocation10 [shape = 'u8[8192]{0}', space=vmem, size = 0x2000, scoped, tag = 'input window, operand 10, single buffered']
    #allocation11 [shape = 'u8[8192]{0}', space=vmem, size = 0x2000, scoped, tag = 'input window, operand 12, single buffered']
    #allocation12 [shape = 's32[1]{0}', space=sflag, size = 0x4, scoped, tag = 'scoped memory for tpu_custom_call.1']
    #allocation13 [shape = 'u8[8192]{0}', space=vmem, size = 0x2000, scoped, tag = 'input window, operand 14, single buffered']
    #allocation14 [shape = 'u8[8192]{0}', space=vmem, size = 0x2000, scoped, tag = 'output window, operand 0']
    #allocation15 [shape = 'u8[16384]{0}', space=vmem, size = 0x4000, scoped, tag = 'output window, operand 1']
    #allocation16 [shape = 's32[2]{0}', space=sflag, size = 0x8, scoped, tag = 'scoped memory for tpu_custom_call.1']
    %31 = vsyncpa [#allocation3], 0
    %s32 = scalar_lea.sflag [#allocation3], 1
    %33 = vsyncpa %s32, 0
    %34 = vsyncpa [#allocation6], 0
    %35 = vsyncpa [#allocation9], 0
    %36 = vsyncpa [#allocation12], 0
    %37 = vsyncpa [#allocation4], 0
    %s38 = scalar_lea.sflag [#allocation4], 1
    %39 = vsyncpa %s38, 0
    %40 = vsyncpa [#allocation16], 0
    %s41 = scalar_lea.sflag [#allocation16], 1
    %42 = vsyncpa %s41, 0
    loop: start=0, step=1, limit=4
    $region2: #{tpu_custom_call.1} parent=1 // loop_pre_header
      _
    $region3: #{tpu_custom_call.1} parent=1 // loop_header
      %s44 = sphi 0, %s48
      %p45 = scmp.ge.s32.totalorder %s44, 4
      %s54 = sphi 0, %s56
      %s57 = sphi 0, %s54
      %s58 = sphi 0, %s57
      %s74 = sphi 0, %s58
      %s80 = sphi 0, %s82
      %s83 = sphi 0, %s80
      %s84 = sphi 0, %s83
      %s100 = sphi 0, %s84
      %s106 = sphi 0, %s108
      %s109 = sphi 0, %s106
      %s110 = sphi 0, %s109
      %s126 = sphi 0, %s110
      %s132 = sphi 0, %s134
      %s135 = sphi 0, %s132
      %s136 = sphi 0, %s135
      %s152 = sphi 0, %s136
      %s156 = sphi 0, %s156
      %s158 = sphi 0, %s156
      %s159 = sphi 0, %s158
      %s173 = sphi 0, %s159
      %s177 = sphi 0, %s177
      %s179 = sphi 0, %s177
      %s180 = sphi 0, %s179
      %s194 = sphi 0, %s180
      %s198 = sphi 0, %s198
      %s200 = sphi 0, %s198
      %s201 = sphi 0, %s200
      %s215 = sphi 0, %s201
      %s219 = sphi 0, %s219
      %s221 = sphi 0, %s219
      %s222 = sphi 0, %s221
      %s236 = sphi 0, %s222
      %s240 = sphi 0, %s240
      %s242 = sphi 0, %s240
      %s243 = sphi 0, %s242
      %s257 = sphi 0, %s243
      %s261 = sphi 0, %s261
      %s263 = sphi 0, %s261
      %s264 = sphi 0, %s263
      %s278 = sphi 0, %s264
      %s282 = sphi 0, %s282
      %s284 = sphi 0, %s282
      %s285 = sphi 0, %s284
      %s299 = sphi 0, %s285
      %s303 = sphi 0, %s303
      %s305 = sphi 0, %s303
      %s306 = sphi 0, %s305
      %s320 = sphi 0, %s306
      %s324 = sphi 0, %s324
      %s326 = sphi 0, %s324
      %s327 = sphi 0, %s326
      %s341 = sphi 0, %s327
      %s345 = sphi 0, %s345
      %s347 = sphi 0, %s345
      %s348 = sphi 0, %s347
      %s362 = sphi 0, %s348
      %s366 = sphi 0, %s366
      %s368 = sphi 0, %s366
      %s369 = sphi 0, %s368
      %s383 = sphi 0, %s369
      %s387 = sphi 0, %s387
      %s389 = sphi 0, %s387
      %s390 = sphi 0, %s389
      %s404 = sphi 0, %s390
      %s408 = sphi 0, %s408
      %s410 = sphi 0, %s408
      %s411 = sphi 0, %s410
      %s425 = sphi 0, %s411
      %s429 = sphi 0, %s429
      %s431 = sphi 0, %s429
      %s432 = sphi 0, %s431
      %s446 = sphi 0, %s432
      %s450 = sphi 0, %s450
      %s452 = sphi 0, %s450
      %s453 = sphi 0, %s452
      %s467 = sphi 0, %s453
      %s471 = sphi 0, %s471
      %s473 = sphi 0, %s471
      %s474 = sphi 0, %s473
      %s488 = sphi 0, %s474
      %s492 = sphi 0, %s492
      %s494 = sphi 0, %s492
      %s495 = sphi 0, %s494
      %s509 = sphi 0, %s495
      %s513 = sphi 0, %s513
      %s515 = sphi 0, %s513
      %s516 = sphi 0, %s515
      %s530 = sphi 0, %s516
      %s534 = sphi 0, %s534
      %s536 = sphi 0, %s534
      %s537 = sphi 0, %s536
      %s551 = sphi 0, %s537
      %s555 = sphi 0, %s555
      %s557 = sphi 0, %s555
      %s558 = sphi 0, %s557
      %s572 = sphi 0, %s558
      %s578 = sphi 0, %s580
      %s581 = sphi 0, %s578
      %s582 = sphi 0, %s581
      %s598 = sphi 0, %s582
      %s604 = sphi 0, %s606
      %s607 = sphi 0, %s604
      %s608 = sphi 0, %s607
      %s624 = sphi 0, %s608
    $region4: #{tpu_custom_call.1} parent=1 // loop_header_branch
      %47 = sbr.rel (%p45) target = $region8
    $region5: #{tpu_custom_call.1} parent=1 // loop_body
      %s49 = ssub.s32 %s44, 1
      %s50 = ssub.s32 %s44, 2
      %s51 = sadd.s32 %s44, 1
      %s52 = ssub.s32 %s44, %s51
      %p53 = scmp.eq.s32.totalorder %s52, 0
      %s55 = sadd.s32 %s54, 1
      %s56 = scalar_select %p53, %s54, %s55
      %p59 = pneg %p53
      %p60 = scmp.eq.s32.totalorder %s44, 1
      %p61 = por %p59, %p60
      %p62 = scmp.ne.s32.totalorder %s54, %s57
      %p63 = scmp.eq.s32.totalorder %s44, 0
      %p64 = por %p62, %p63
      %p65 = scmp.ne.s32.totalorder %s54, %s57
      %p66 = scmp.eq.s32.totalorder %s49, 1
      %p67 = por %p65, %p66
      %p68 = scmp.ne.s32.totalorder %s57, %s58
      %p69 = scmp.eq.s32.totalorder %s49, 0
      %p70 = por %p68, %p69
      %p71 = scmp.ne.s32.totalorder %s57, %s58
      %p72 = scmp.eq.s32.totalorder %s50, 1
      %p73 = por %p71, %p72
      %p75 = scmp.ne.s32.totalorder %s58, %s74
      %p76 = scmp.eq.s32.totalorder %s50, 0
      %p77 = por %p75, %p76
      %s78 = ssub.s32 %s44, %s51
      %p79 = scmp.eq.s32.totalorder %s78, 0
      %s81 = sadd.s32 %s80, 1
      %s82 = scalar_select %p79, %s80, %s81
      %p85 = pneg %p79
      %p86 = scmp.eq.s32.totalorder %s44, 1
      %p87 = por %p85, %p86
      %p88 = scmp.ne.s32.totalorder %s80, %s83
      %p89 = scmp.eq.s32.totalorder %s44, 0
      %p90 = por %p88, %p89
      %p91 = scmp.ne.s32.totalorder %s80, %s83
      %p92 = scmp.eq.s32.totalorder %s49, 1
      %p93 = por %p91, %p92
      %p94 = scmp.ne.s32.totalorder %s83, %s84
      %p95 = scmp.eq.s32.totalorder %s49, 0
      %p96 = por %p94, %p95
      %p97 = scmp.ne.s32.totalorder %s83, %s84
      %p98 = scmp.eq.s32.totalorder %s50, 1
      %p99 = por %p97, %p98
      %p101 = scmp.ne.s32.totalorder %s84, %s100
      %p102 = scmp.eq.s32.totalorder %s50, 0
      %p103 = por %p101, %p102
      %s104 = ssub.s32 %s44, %s51
      %p105 = scmp.eq.s32.totalorder %s104, 0
      %s107 = sadd.s32 %s106, 1
      %s108 = scalar_select %p105, %s106, %s107
      %p111 = pneg %p105
      %p112 = scmp.eq.s32.totalorder %s44, 1
      %p113 = por %p111, %p112
      %p114 = scmp.ne.s32.totalorder %s106, %s109
      %p115 = scmp.eq.s32.totalorder %s44, 0
      %p116 = por %p114, %p115
      %p117 = scmp.ne.s32.totalorder %s106, %s109
      %p118 = scmp.eq.s32.totalorder %s49, 1
      %p119 = por %p117, %p118
      %p120 = scmp.ne.s32.totalorder %s109, %s110
      %p121 = scmp.eq.s32.totalorder %s49, 0
      %p122 = por %p120, %p121
      %p123 = scmp.ne.s32.totalorder %s109, %s110
      %p124 = scmp.eq.s32.totalorder %s50, 1
      %p125 = por %p123, %p124
      %p127 = scmp.ne.s32.totalorder %s110, %s126
      %p128 = scmp.eq.s32.totalorder %s50, 0
      %p129 = por %p127, %p128
      %s130 = ssub.s32 %s44, %s51
      %p131 = scmp.eq.s32.totalorder %s130, 0
      %s133 = sadd.s32 %s132, 1
      %s134 = scalar_select %p131, %s132, %s133
      %p137 = pneg %p131
      %p138 = scmp.eq.s32.totalorder %s44, 1
      %p139 = por %p137, %p138
      %p140 = scmp.ne.s32.totalorder %s132, %s135
      %p141 = scmp.eq.s32.totalorder %s44, 0
      %p142 = por %p140, %p141
      %p143 = scmp.ne.s32.totalorder %s132, %s135
      %p144 = scmp.eq.s32.totalorder %s49, 1
      %p145 = por %p143, %p144
      %p146 = scmp.ne.s32.totalorder %s135, %s136
      %p147 = scmp.eq.s32.totalorder %s49, 0
      %p148 = por %p146, %p147
      %p149 = scmp.ne.s32.totalorder %s135, %s136
      %p150 = scmp.eq.s32.totalorder %s50, 1
      %p151 = por %p149, %p150
      %p153 = scmp.ne.s32.totalorder %s136, %s152
      %p154 = scmp.eq.s32.totalorder %s50, 0
      %p155 = por %p153, %p154
      %s157 = sadd.s32 %s156, 1
      %p160 = scmp.eq.s32.totalorder %s44, 1
      %p161 = scmp.ne.s32.totalorder %s156, %s158
      %p162 = scmp.eq.s32.totalorder %s44, 0
      %p163 = por %p161, %p162
      %p164 = scmp.ne.s32.totalorder %s156, %s158
      %p165 = scmp.eq.s32.totalorder %s49, 1
      %p166 = por %p164, %p165
      %p167 = scmp.ne.s32.totalorder %s158, %s159
      %p168 = scmp.eq.s32.totalorder %s49, 0
      %p169 = por %p167, %p168
      %p170 = scmp.ne.s32.totalorder %s158, %s159
      %p171 = scmp.eq.s32.totalorder %s50, 1
      %p172 = por %p170, %p171
      %p174 = scmp.ne.s32.totalorder %s159, %s173
      %p175 = scmp.eq.s32.totalorder %s50, 0
      %p176 = por %p174, %p175
      %s178 = sadd.s32 %s177, 1
      %p181 = scmp.eq.s32.totalorder %s44, 1
      %p182 = scmp.ne.s32.totalorder %s177, %s179
      %p183 = scmp.eq.s32.totalorder %s44, 0
      %p184 = por %p182, %p183
      %p185 = scmp.ne.s32.totalorder %s177, %s179
      %p186 = scmp.eq.s32.totalorder %s49, 1
      %p187 = por %p185, %p186
      %p188 = scmp.ne.s32.totalorder %s179, %s180
      %p189 = scmp.eq.s32.totalorder %s49, 0
      %p190 = por %p188, %p189
      %p191 = scmp.ne.s32.totalorder %s179, %s180
      %p192 = scmp.eq.s32.totalorder %s50, 1
      %p193 = por %p191, %p192
      %p195 = scmp.ne.s32.totalorder %s180, %s194
      %p196 = scmp.eq.s32.totalorder %s50, 0
      %p197 = por %p195, %p196
      %s199 = sadd.s32 %s198, 1
      %p202 = scmp.eq.s32.totalorder %s44, 1
      %p203 = scmp.ne.s32.totalorder %s198, %s200
      %p204 = scmp.eq.s32.totalorder %s44, 0
      %p205 = por %p203, %p204
      %p206 = scmp.ne.s32.totalorder %s198, %s200
      %p207 = scmp.eq.s32.totalorder %s49, 1
      %p208 = por %p206, %p207
      %p209 = scmp.ne.s32.totalorder %s200, %s201
      %p210 = scmp.eq.s32.totalorder %s49, 0
      %p211 = por %p209, %p210
      %p212 = scmp.ne.s32.totalorder %s200, %s201
      %p213 = scmp.eq.s32.totalorder %s50, 1
      %p214 = por %p212, %p213
      %p216 = scmp.ne.s32.totalorder %s201, %s215
      %p217 = scmp.eq.s32.totalorder %s50, 0
      %p218 = por %p216, %p217
      %s220 = sadd.s32 %s219, 1
      %p223 = scmp.eq.s32.totalorder %s44, 1
      %p224 = scmp.ne.s32.totalorder %s219, %s221
      %p225 = scmp.eq.s32.totalorder %s44, 0
      %p226 = por %p224, %p225
      %p227 = scmp.ne.s32.totalorder %s219, %s221
      %p228 = scmp.eq.s32.totalorder %s49, 1
      %p229 = por %p227, %p228
      %p230 = scmp.ne.s32.totalorder %s221, %s222
      %p231 = scmp.eq.s32.totalorder %s49, 0
      %p232 = por %p230, %p231
      %p233 = scmp.ne.s32.totalorder %s221, %s222
      %p234 = scmp.eq.s32.totalorder %s50, 1
      %p235 = por %p233, %p234
      %p237 = scmp.ne.s32.totalorder %s222, %s236
      %p238 = scmp.eq.s32.totalorder %s50, 0
      %p239 = por %p237, %p238
      %s241 = sadd.s32 %s240, 1
      %p244 = scmp.eq.s32.totalorder %s44, 1
      %p245 = scmp.ne.s32.totalorder %s240, %s242
      %p246 = scmp.eq.s32.totalorder %s44, 0
      %p247 = por %p245, %p246
      %p248 = scmp.ne.s32.totalorder %s240, %s242
      %p249 = scmp.eq.s32.totalorder %s49, 1
      %p250 = por %p248, %p249
      %p251 = scmp.ne.s32.totalorder %s242, %s243
      %p252 = scmp.eq.s32.totalorder %s49, 0
      %p253 = por %p251, %p252
      %p254 = scmp.ne.s32.totalorder %s242, %s243
      %p255 = scmp.eq.s32.totalorder %s50, 1
      %p256 = por %p254, %p255
      %p258 = scmp.ne.s32.totalorder %s243, %s257
      %p259 = scmp.eq.s32.totalorder %s50, 0
      %p260 = por %p258, %p259
      %s262 = sadd.s32 %s261, 1
      %p265 = scmp.eq.s32.totalorder %s44, 1
      %p266 = scmp.ne.s32.totalorder %s261, %s263
      %p267 = scmp.eq.s32.totalorder %s44, 0
      %p268 = por %p266, %p267
      %p269 = scmp.ne.s32.totalorder %s261, %s263
      %p270 = scmp.eq.s32.totalorder %s49, 1
      %p271 = por %p269, %p270
      %p272 = scmp.ne.s32.totalorder %s263, %s264
      %p273 = scmp.eq.s32.totalorder %s49, 0
      %p274 = por %p272, %p273
      %p275 = scmp.ne.s32.totalorder %s263, %s264
      %p276 = scmp.eq.s32.totalorder %s50, 1
      %p277 = por %p275, %p276
      %p279 = scmp.ne.s32.totalorder %s264, %s278
      %p280 = scmp.eq.s32.totalorder %s50, 0
      %p281 = por %p279, %p280
      %s283 = sadd.s32 %s282, 1
      %p286 = scmp.eq.s32.totalorder %s44, 1
      %p287 = scmp.ne.s32.totalorder %s282, %s284
      %p288 = scmp.eq.s32.totalorder %s44, 0
      %p289 = por %p287, %p288
      %p290 = scmp.ne.s32.totalorder %s282, %s284
      %p291 = scmp.eq.s32.totalorder %s49, 1
      %p292 = por %p290, %p291
      %p293 = scmp.ne.s32.totalorder %s284, %s285
      %p294 = scmp.eq.s32.totalorder %s49, 0
      %p295 = por %p293, %p294
      %p296 = scmp.ne.s32.totalorder %s284, %s285
      %p297 = scmp.eq.s32.totalorder %s50, 1
      %p298 = por %p296, %p297
      %p300 = scmp.ne.s32.totalorder %s285, %s299
      %p301 = scmp.eq.s32.totalorder %s50, 0
      %p302 = por %p300, %p301
      %s304 = sadd.s32 %s303, 1
      %p307 = scmp.eq.s32.totalorder %s44, 1
      %p308 = scmp.ne.s32.totalorder %s303, %s305
      %p309 = scmp.eq.s32.totalorder %s44, 0
      %p310 = por %p308, %p309
      %p311 = scmp.ne.s32.totalorder %s303, %s305
      %p312 = scmp.eq.s32.totalorder %s49, 1
      %p313 = por %p311, %p312
      %p314 = scmp.ne.s32.totalorder %s305, %s306
      %p315 = scmp.eq.s32.totalorder %s49, 0
      %p316 = por %p314, %p315
      %p317 = scmp.ne.s32.totalorder %s305, %s306
      %p318 = scmp.eq.s32.totalorder %s50, 1
      %p319 = por %p317, %p318
      %p321 = scmp.ne.s32.totalorder %s306, %s320
      %p322 = scmp.eq.s32.totalorder %s50, 0
      %p323 = por %p321, %p322
      %s325 = sadd.s32 %s324, 1
      %p328 = scmp.eq.s32.totalorder %s44, 1
      %p329 = scmp.ne.s32.totalorder %s324, %s326
      %p330 = scmp.eq.s32.totalorder %s44, 0
      %p331 = por %p329, %p330
      %p332 = scmp.ne.s32.totalorder %s324, %s326
      %p333 = scmp.eq.s32.totalorder %s49, 1
      %p334 = por %p332, %p333
      %p335 = scmp.ne.s32.totalorder %s326, %s327
      %p336 = scmp.eq.s32.totalorder %s49, 0
      %p337 = por %p335, %p336
      %p338 = scmp.ne.s32.totalorder %s326, %s327
      %p339 = scmp.eq.s32.totalorder %s50, 1
      %p340 = por %p338, %p339
      %p342 = scmp.ne.s32.totalorder %s327, %s341
      %p343 = scmp.eq.s32.totalorder %s50, 0
      %p344 = por %p342, %p343
      %s346 = sadd.s32 %s345, 1
      %p349 = scmp.eq.s32.totalorder %s44, 1
      %p350 = scmp.ne.s32.totalorder %s345, %s347
      %p351 = scmp.eq.s32.totalorder %s44, 0
      %p352 = por %p350, %p351
      %p353 = scmp.ne.s32.totalorder %s345, %s347
      %p354 = scmp.eq.s32.totalorder %s49, 1
      %p355 = por %p353, %p354
      %p356 = scmp.ne.s32.totalorder %s347, %s348
      %p357 = scmp.eq.s32.totalorder %s49, 0
      %p358 = por %p356, %p357
      %p359 = scmp.ne.s32.totalorder %s347, %s348
      %p360 = scmp.eq.s32.totalorder %s50, 1
      %p361 = por %p359, %p360
      %p363 = scmp.ne.s32.totalorder %s348, %s362
      %p364 = scmp.eq.s32.totalorder %s50, 0
      %p365 = por %p363, %p364
      %s367 = sadd.s32 %s366, 1
      %p370 = scmp.eq.s32.totalorder %s44, 1
      %p371 = scmp.ne.s32.totalorder %s366, %s368
      %p372 = scmp.eq.s32.totalorder %s44, 0
      %p373 = por %p371, %p372
      %p374 = scmp.ne.s32.totalorder %s366, %s368
      %p375 = scmp.eq.s32.totalorder %s49, 1
      %p376 = por %p374, %p375
      %p377 = scmp.ne.s32.totalorder %s368, %s369
      %p378 = scmp.eq.s32.totalorder %s49, 0
      %p379 = por %p377, %p378
      %p380 = scmp.ne.s32.totalorder %s368, %s369
      %p381 = scmp.eq.s32.totalorder %s50, 1
      %p382 = por %p380, %p381
      %p384 = scmp.ne.s32.totalorder %s369, %s383
      %p385 = scmp.eq.s32.totalorder %s50, 0
      %p386 = por %p384, %p385
      %s388 = sadd.s32 %s387, 1
      %p391 = scmp.eq.s32.totalorder %s44, 1
      %p392 = scmp.ne.s32.totalorder %s387, %s389
      %p393 = scmp.eq.s32.totalorder %s44, 0
      %p394 = por %p392, %p393
      %p395 = scmp.ne.s32.totalorder %s387, %s389
      %p396 = scmp.eq.s32.totalorder %s49, 1
      %p397 = por %p395, %p396
      %p398 = scmp.ne.s32.totalorder %s389, %s390
      %p399 = scmp.eq.s32.totalorder %s49, 0
      %p400 = por %p398, %p399
      %p401 = scmp.ne.s32.totalorder %s389, %s390
      %p402 = scmp.eq.s32.totalorder %s50, 1
      %p403 = por %p401, %p402
      %p405 = scmp.ne.s32.totalorder %s390, %s404
      %p406 = scmp.eq.s32.totalorder %s50, 0
      %p407 = por %p405, %p406
      %s409 = sadd.s32 %s408, 1
      %p412 = scmp.eq.s32.totalorder %s44, 1
      %p413 = scmp.ne.s32.totalorder %s408, %s410
      %p414 = scmp.eq.s32.totalorder %s44, 0
      %p415 = por %p413, %p414
      %p416 = scmp.ne.s32.totalorder %s408, %s410
      %p417 = scmp.eq.s32.totalorder %s49, 1
      %p418 = por %p416, %p417
      %p419 = scmp.ne.s32.totalorder %s410, %s411
      %p420 = scmp.eq.s32.totalorder %s49, 0
      %p421 = por %p419, %p420
      %p422 = scmp.ne.s32.totalorder %s410, %s411
      %p423 = scmp.eq.s32.totalorder %s50, 1
      %p424 = por %p422, %p423
      %p426 = scmp.ne.s32.totalorder %s411, %s425
      %p427 = scmp.eq.s32.totalorder %s50, 0
      %p428 = por %p426, %p427
      %s430 = sadd.s32 %s429, 1
      %p433 = scmp.eq.s32.totalorder %s44, 1
      %p434 = scmp.ne.s32.totalorder %s429, %s431
      %p435 = scmp.eq.s32.totalorder %s44, 0
      %p436 = por %p434, %p435
      %p437 = scmp.ne.s32.totalorder %s429, %s431
      %p438 = scmp.eq.s32.totalorder %s49, 1
      %p439 = por %p437, %p438
      %p440 = scmp.ne.s32.totalorder %s431, %s432
      %p441 = scmp.eq.s32.totalorder %s49, 0
      %p442 = por %p440, %p441
      %p443 = scmp.ne.s32.totalorder %s431, %s432
      %p444 = scmp.eq.s32.totalorder %s50, 1
      %p445 = por %p443, %p444
      %p447 = scmp.ne.s32.totalorder %s432, %s446
      %p448 = scmp.eq.s32.totalorder %s50, 0
      %p449 = por %p447, %p448
      %s451 = sadd.s32 %s450, 1
      %p454 = scmp.eq.s32.totalorder %s44, 1
      %p455 = scmp.ne.s32.totalorder %s450, %s452
      %p456 = scmp.eq.s32.totalorder %s44, 0
      %p457 = por %p455, %p456
      %p458 = scmp.ne.s32.totalorder %s450, %s452
      %p459 = scmp.eq.s32.totalorder %s49, 1
      %p460 = por %p458, %p459
      %p461 = scmp.ne.s32.totalorder %s452, %s453
      %p462 = scmp.eq.s32.totalorder %s49, 0
      %p463 = por %p461, %p462
      %p464 = scmp.ne.s32.totalorder %s452, %s453
      %p465 = scmp.eq.s32.totalorder %s50, 1
      %p466 = por %p464, %p465
      %p468 = scmp.ne.s32.totalorder %s453, %s467
      %p469 = scmp.eq.s32.totalorder %s50, 0
      %p470 = por %p468, %p469
      %s472 = sadd.s32 %s471, 1
      %p475 = scmp.eq.s32.totalorder %s44, 1
      %p476 = scmp.ne.s32.totalorder %s471, %s473
      %p477 = scmp.eq.s32.totalorder %s44, 0
      %p478 = por %p476, %p477
      %p479 = scmp.ne.s32.totalorder %s471, %s473
      %p480 = scmp.eq.s32.totalorder %s49, 1
      %p481 = por %p479, %p480
      %p482 = scmp.ne.s32.totalorder %s473, %s474
      %p483 = scmp.eq.s32.totalorder %s49, 0
      %p484 = por %p482, %p483
      %p485 = scmp.ne.s32.totalorder %s473, %s474
      %p486 = scmp.eq.s32.totalorder %s50, 1
      %p487 = por %p485, %p486
      %p489 = scmp.ne.s32.totalorder %s474, %s488
      %p490 = scmp.eq.s32.totalorder %s50, 0
      %p491 = por %p489, %p490
      %s493 = sadd.s32 %s492, 1
      %p496 = scmp.eq.s32.totalorder %s44, 1
      %p497 = scmp.ne.s32.totalorder %s492, %s494
      %p498 = scmp.eq.s32.totalorder %s44, 0
      %p499 = por %p497, %p498
      %p500 = scmp.ne.s32.totalorder %s492, %s494
      %p501 = scmp.eq.s32.totalorder %s49, 1
      %p502 = por %p500, %p501
      %p503 = scmp.ne.s32.totalorder %s494, %s495
      %p504 = scmp.eq.s32.totalorder %s49, 0
      %p505 = por %p503, %p504
      %p506 = scmp.ne.s32.totalorder %s494, %s495
      %p507 = scmp.eq.s32.totalorder %s50, 1
      %p508 = por %p506, %p507
      %p510 = scmp.ne.s32.totalorder %s495, %s509
      %p511 = scmp.eq.s32.totalorder %s50, 0
      %p512 = por %p510, %p511
      %s514 = sadd.s32 %s513, 1
      %p517 = scmp.eq.s32.totalorder %s44, 1
      %p518 = scmp.ne.s32.totalorder %s513, %s515
      %p519 = scmp.eq.s32.totalorder %s44, 0
      %p520 = por %p518, %p519
      %p521 = scmp.ne.s32.totalorder %s513, %s515
      %p522 = scmp.eq.s32.totalorder %s49, 1
      %p523 = por %p521, %p522
      %p524 = scmp.ne.s32.totalorder %s515, %s516
      %p525 = scmp.eq.s32.totalorder %s49, 0
      %p526 = por %p524, %p525
      %p527 = scmp.ne.s32.totalorder %s515, %s516
      %p528 = scmp.eq.s32.totalorder %s50, 1
      %p529 = por %p527, %p528
      %p531 = scmp.ne.s32.totalorder %s516, %s530
      %p532 = scmp.eq.s32.totalorder %s50, 0
      %p533 = por %p531, %p532
      %s535 = sadd.s32 %s534, 1
      %p538 = scmp.eq.s32.totalorder %s44, 1
      %p539 = scmp.ne.s32.totalorder %s534, %s536
      %p540 = scmp.eq.s32.totalorder %s44, 0
      %p541 = por %p539, %p540
      %p542 = scmp.ne.s32.totalorder %s534, %s536
      %p543 = scmp.eq.s32.totalorder %s49, 1
      %p544 = por %p542, %p543
      %p545 = scmp.ne.s32.totalorder %s536, %s537
      %p546 = scmp.eq.s32.totalorder %s49, 0
      %p547 = por %p545, %p546
      %p548 = scmp.ne.s32.totalorder %s536, %s537
      %p549 = scmp.eq.s32.totalorder %s50, 1
      %p550 = por %p548, %p549
      %p552 = scmp.ne.s32.totalorder %s537, %s551
      %p553 = scmp.eq.s32.totalorder %s50, 0
      %p554 = por %p552, %p553
      %s556 = sadd.s32 %s555, 1
      %p559 = scmp.eq.s32.totalorder %s44, 1
      %p560 = scmp.ne.s32.totalorder %s555, %s557
      %p561 = scmp.eq.s32.totalorder %s44, 0
      %p562 = por %p560, %p561
      %p563 = scmp.ne.s32.totalorder %s555, %s557
      %p564 = scmp.eq.s32.totalorder %s49, 1
      %p565 = por %p563, %p564
      %p566 = scmp.ne.s32.totalorder %s557, %s558
      %p567 = scmp.eq.s32.totalorder %s49, 0
      %p568 = por %p566, %p567
      %p569 = scmp.ne.s32.totalorder %s557, %s558
      %p570 = scmp.eq.s32.totalorder %s50, 1
      %p571 = por %p569, %p570
      %p573 = scmp.ne.s32.totalorder %s558, %s572
      %p574 = scmp.eq.s32.totalorder %s50, 0
      %p575 = por %p573, %p574
      %s576 = ssub.s32 %s44, %s51
      %p577 = scmp.eq.s32.totalorder %s576, 0
      %s579 = sadd.s32 %s578, 1
      %s580 = scalar_select %p577, %s578, %s579
      %p583 = pneg %p577
      %p584 = scmp.eq.s32.totalorder %s44, 1
      %p585 = por %p583, %p584
      %p586 = scmp.ne.s32.totalorder %s578, %s581
      %p587 = scmp.eq.s32.totalorder %s44, 0
      %p588 = por %p586, %p587
      %p589 = scmp.ne.s32.totalorder %s578, %s581
      %p590 = scmp.eq.s32.totalorder %s49, 1
      %p591 = por %p589, %p590
      %p592 = scmp.ne.s32.totalorder %s581, %s582
      %p593 = scmp.eq.s32.totalorder %s49, 0
      %p594 = por %p592, %p593
      %p595 = scmp.ne.s32.totalorder %s581, %s582
      %p596 = scmp.eq.s32.totalorder %s50, 1
      %p597 = por %p595, %p596
      %p599 = scmp.ne.s32.totalorder %s582, %s598
      %p600 = scmp.eq.s32.totalorder %s50, 0
      %p601 = por %p599, %p600
      %s602 = ssub.s32 %s44, %s51
      %p603 = scmp.eq.s32.totalorder %s602, 0
      %s605 = sadd.s32 %s604, 1
      %s606 = scalar_select %p603, %s604, %s605
      %p609 = pneg %p603
      %p610 = scmp.eq.s32.totalorder %s44, 1
      %p611 = por %p609, %p610
      %p612 = scmp.ne.s32.totalorder %s604, %s607
      %p613 = scmp.eq.s32.totalorder %s44, 0
      %p614 = por %p612, %p613
      %p615 = scmp.ne.s32.totalorder %s604, %s607
      %p616 = scmp.eq.s32.totalorder %s49, 1
      %p617 = por %p615, %p616
      %p618 = scmp.ne.s32.totalorder %s607, %s608
      %p619 = scmp.eq.s32.totalorder %s49, 0
      %p620 = por %p618, %p619
      %p621 = scmp.ne.s32.totalorder %s607, %s608
      %p622 = scmp.eq.s32.totalorder %s50, 1
      %p623 = por %p621, %p622
      %p625 = scmp.ne.s32.totalorder %s608, %s624
      %p626 = scmp.eq.s32.totalorder %s50, 0
      %p627 = por %p625, %p626
      %p628 = scmp.le.s32.totalorder 1, %s44
      %p629 = scmp.lt.s32.totalorder %s44, 3
      %p630 = pnand %p628, %p629
      %p631 = pneg %p630
      // Predicated region
      $region9: #{tpu_custom_call.1} parent=5 // pred_check
        _
      $region10: #{tpu_custom_call.1} parent=5 // pred_check_branch
        %633 = sbr.rel (%p630) target = $region12
      $region11: #{tpu_custom_call.1} parent=5 // pred_region
        %s634 = ssub.s32 %s44, 1
        // Predicated region
        $region13: #{tpu_custom_call.1} parent=11 // pred_check
          %p635 = pneg %p169
        $region14: #{tpu_custom_call.1} parent=11 // pred_check_branch
          %637 = sbr.rel (%p635) target = $region16
        $region15: #{tpu_custom_call.1} parent=11 // pred_region
          %s639 = ssub.s32 256, 256
          %640 = vsyncadd [#allocation6], %s639
          %s641 = sshll.u32 [#allocation5], 4
          %s642 = int_to_ptr.vmem [resolvable:$true] %s641
          %647 = dma.hbm_to_vmem [thread:$0]  %s4, 256, %s642, [#allocation6], 64, 64, 4
        $region16: #{tpu_custom_call.1} parent=11 // pred_fallthru
          _
        // Predicated region
        $region17: #{tpu_custom_call.1} parent=11 // pred_check
          %p648 = pneg %p190
        $region18: #{tpu_custom_call.1} parent=11 // pred_check_branch
          %650 = sbr.rel (%p648) target = $region20
        $region19: #{tpu_custom_call.1} parent=11 // pred_region
          _
        $region20: #{tpu_custom_call.1} parent=11 // pred_fallthru
          _
        // Predicated region
        $region21: #{tpu_custom_call.1} parent=11 // pred_check
          %p651 = pneg %p211
        $region22: #{tpu_custom_call.1} parent=11 // pred_check_branch
          %653 = sbr.rel (%p651) target = $region24
        $region23: #{tpu_custom_call.1} parent=11 // pred_region
          %s655 = ssub.s32 256, 256
          %656 = vsyncadd [#allocation6], %s655
          %s657 = sshll.u32 [#allocation7], 4
          %s658 = int_to_ptr.vmem [resolvable:$true] %s657
          %663 = dma.hbm_to_vmem [thread:$0]  %s6, 256, %s658, [#allocation6], 64, 64, 4
        $region24: #{tpu_custom_call.1} parent=11 // pred_fallthru
          _
        // Predicated region
        $region25: #{tpu_custom_call.1} parent=11 // pred_check
          %p664 = pneg %p232
        $region26: #{tpu_custom_call.1} parent=11 // pred_check_branch
          %666 = sbr.rel (%p664) target = $region28
        $region27: #{tpu_custom_call.1} parent=11 // pred_region
          _
        $region28: #{tpu_custom_call.1} parent=11 // pred_fallthru
          _
        // Predicated region
        $region29: #{tpu_custom_call.1} parent=11 // pred_check
          %p667 = pneg %p253
        $region30: #{tpu_custom_call.1} parent=11 // pred_check_branch
          %669 = sbr.rel (%p667) target = $region32
        $region31: #{tpu_custom_call.1} parent=11 // pred_region
          %s671 = ssub.s32 256, 256
          %672 = vsyncadd [#allocation9], %s671
          %s673 = sshll.u32 [#allocation8], 4
          %s674 = int_to_ptr.vmem [resolvable:$true] %s673
          %679 = dma.hbm_to_vmem [thread:$0]  %s8, 256, %s674, [#allocation9], 64, 64, 4
        $region32: #{tpu_custom_call.1} parent=11 // pred_fallthru
          _
        // Predicated region
        $region33: #{tpu_custom_call.1} parent=11 // pred_check
          %p680 = pneg %p274
        $region34: #{tpu_custom_call.1} parent=11 // pred_check_branch
          %682 = sbr.rel (%p680) target = $region36
        $region35: #{tpu_custom_call.1} parent=11 // pred_region
          _
        $region36: #{tpu_custom_call.1} parent=11 // pred_fallthru
          _
        // Predicated region
        $region37: #{tpu_custom_call.1} parent=11 // pred_check
          %p683 = pneg %p295
        $region38: #{tpu_custom_call.1} parent=11 // pred_check_branch
          %685 = sbr.rel (%p683) target = $region40
        $region39: #{tpu_custom_call.1} parent=11 // pred_region
          %s687 = ssub.s32 256, 256
          %688 = vsyncadd [#allocation9], %s687
          %s689 = sshll.u32 [#allocation10], 4
          %s690 = int_to_ptr.vmem [resolvable:$true] %s689
          %695 = dma.hbm_to_vmem [thread:$0]  %s10, 256, %s690, [#allocation9], 64, 64, 4
        $region40: #{tpu_custom_call.1} parent=11 // pred_fallthru
          _
        // Predicated region
        $region41: #{tpu_custom_call.1} parent=11 // pred_check
          %p696 = pneg %p316
        $region42: #{tpu_custom_call.1} parent=11 // pred_check_branch
          %698 = sbr.rel (%p696) target = $region44
        $region43: #{tpu_custom_call.1} parent=11 // pred_region
          _
        $region44: #{tpu_custom_call.1} parent=11 // pred_fallthru
          _
        // Predicated region
        $region45: #{tpu_custom_call.1} parent=11 // pred_check
          %p699 = pneg %p337
        $region46: #{tpu_custom_call.1} parent=11 // pred_check_branch
          %701 = sbr.rel (%p699) target = $region48
        $region47: #{tpu_custom_call.1} parent=11 // pred_region
          %s703 = ssub.s32 256, 256
          %704 = vsyncadd [#allocation12], %s703
          %s705 = sshll.u32 [#allocation11], 4
          %s706 = int_to_ptr.vmem [resolvable:$true] %s705
          %711 = dma.hbm_to_vmem [thread:$0]  %s12, 256, %s706, [#allocation12], 64, 64, 4
        $region48: #{tpu_custom_call.1} parent=11 // pred_fallthru
          _
        // Predicated region
        $region49: #{tpu_custom_call.1} parent=11 // pred_check
          %p712 = pneg %p358
        $region50: #{tpu_custom_call.1} parent=11 // pred_check_branch
          %714 = sbr.rel (%p712) target = $region52
        $region51: #{tpu_custom_call.1} parent=11 // pred_region
          _
        $region52: #{tpu_custom_call.1} parent=11 // pred_fallthru
          _
        // Predicated region
        $region53: #{tpu_custom_call.1} parent=11 // pred_check
          %p715 = pneg %p379
        $region54: #{tpu_custom_call.1} parent=11 // pred_check_branch
          %717 = sbr.rel (%p715) target = $region56
        $region55: #{tpu_custom_call.1} parent=11 // pred_region
          %s719 = ssub.s32 256, 256
          %720 = vsyncadd [#allocation12], %s719
          %s721 = sshll.u32 [#allocation13], 4
          %s722 = int_to_ptr.vmem [resolvable:$true] %s721
          %727 = dma.hbm_to_vmem [thread:$0]  %s14, 256, %s722, [#allocation12], 64, 64, 4
        $region56: #{tpu_custom_call.1} parent=11 // pred_fallthru
          _
        // Predicated region
        $region57: #{tpu_custom_call.1} parent=11 // pred_check
          %p728 = pneg %p400
        $region58: #{tpu_custom_call.1} parent=11 // pred_check_branch
          %730 = sbr.rel (%p728) target = $region60
        $region59: #{tpu_custom_call.1} parent=11 // pred_region
          _
        $region60: #{tpu_custom_call.1} parent=11 // pred_fallthru
          _
        // Predicated region
        $region61: #{tpu_custom_call.1} parent=11 // pred_check
          %p731 = pneg %p421
        $region62: #{tpu_custom_call.1} parent=11 // pred_check_branch
          %733 = sbr.rel (%p731) target = $region64
        $region63: #{tpu_custom_call.1} parent=11 // pred_region
          _
        $region64: #{tpu_custom_call.1} parent=11 // pred_fallthru
          _
        // Predicated region
        $region65: #{tpu_custom_call.1} parent=11 // pred_check
          %p734 = pneg %p442
        $region66: #{tpu_custom_call.1} parent=11 // pred_check_branch
          %736 = sbr.rel (%p734) target = $region68
        $region67: #{tpu_custom_call.1} parent=11 // pred_region
          _
        $region68: #{tpu_custom_call.1} parent=11 // pred_fallthru
          _
        // Predicated region
        $region69: #{tpu_custom_call.1} parent=11 // pred_check
          %p737 = pneg %p463
        $region70: #{tpu_custom_call.1} parent=11 // pred_check_branch
          %739 = sbr.rel (%p737) target = $region72
        $region71: #{tpu_custom_call.1} parent=11 // pred_region
          _
        $region72: #{tpu_custom_call.1} parent=11 // pred_fallthru
          _
        // Predicated region
        $region73: #{tpu_custom_call.1} parent=11 // pred_check
          %p740 = pneg %p484
        $region74: #{tpu_custom_call.1} parent=11 // pred_check_branch
          %742 = sbr.rel (%p740) target = $region76
        $region75: #{tpu_custom_call.1} parent=11 // pred_region
          _
        $region76: #{tpu_custom_call.1} parent=11 // pred_fallthru
          _
        // Predicated region
        $region77: #{tpu_custom_call.1} parent=11 // pred_check
          %p743 = pneg %p505
        $region78: #{tpu_custom_call.1} parent=11 // pred_check_branch
          %745 = sbr.rel (%p743) target = $region80
        $region79: #{tpu_custom_call.1} parent=11 // pred_region
          _
        $region80: #{tpu_custom_call.1} parent=11 // pred_fallthru
          _
        // Predicated region
        $region81: #{tpu_custom_call.1} parent=11 // pred_check
          %p746 = pneg %p526
        $region82: #{tpu_custom_call.1} parent=11 // pred_check_branch
          %748 = sbr.rel (%p746) target = $region84
        $region83: #{tpu_custom_call.1} parent=11 // pred_region
          _
        $region84: #{tpu_custom_call.1} parent=11 // pred_fallthru
          _
        // Predicated region
        $region85: #{tpu_custom_call.1} parent=11 // pred_check
          %p749 = pneg %p547
        $region86: #{tpu_custom_call.1} parent=11 // pred_check_branch
          %751 = sbr.rel (%p749) target = $region88
        $region87: #{tpu_custom_call.1} parent=11 // pred_region
          _
        $region88: #{tpu_custom_call.1} parent=11 // pred_fallthru
          _
        // Predicated region
        $region89: #{tpu_custom_call.1} parent=11 // pred_check
          %p752 = pneg %p568
        $region90: #{tpu_custom_call.1} parent=11 // pred_check_branch
          %754 = sbr.rel (%p752) target = $region92
        $region91: #{tpu_custom_call.1} parent=11 // pred_region
          _
        $region92: #{tpu_custom_call.1} parent=11 // pred_fallthru
          _
      $region12: #{tpu_custom_call.1} parent=5 // pred_fallthru
        _
      %p755 = scmp.lt.s32.totalorder %s44, 2
      // Predicated region
      $region93: #{tpu_custom_call.1} parent=5 // pred_check
        %p756 = pneg %p755
      $region94: #{tpu_custom_call.1} parent=5 // pred_check_branch
        %758 = sbr.rel (%p756) target = $region96
      $region95: #{tpu_custom_call.1} parent=5 // pred_region
        // Predicated region
        $region97: #{tpu_custom_call.1} parent=95 // pred_check
          %p759 = pneg %p64
        $region98: #{tpu_custom_call.1} parent=95 // pred_check_branch
          %761 = sbr.rel (%p759) target = $region100
        $region99: #{tpu_custom_call.1} parent=95 // pred_region
          %p762 = scmp.lt.s32.totalorder %s44, 1
          %s763 = scalar_select %p762, %s44, 1
          %s764 = smul.addr %s763, 8
          %s765 = scalar_lea.vmem %s0, %s764
        $region100: #{tpu_custom_call.1} parent=95 // pred_fallthru
          _
        // Predicated region
        $region101: #{tpu_custom_call.1} parent=95 // pred_check
          %p766 = pneg %p90
        $region102: #{tpu_custom_call.1} parent=95 // pred_check_branch
          %768 = sbr.rel (%p766) target = $region104
        $region103: #{tpu_custom_call.1} parent=95 // pred_region
          %p769 = scmp.lt.s32.totalorder %s44, 1
          %s770 = scalar_select %p769, %s44, 1
          %s771 = smul.addr %s770, 8
          %s772 = scalar_lea.vmem %s1, %s771
        $region104: #{tpu_custom_call.1} parent=95 // pred_fallthru
          _
        // Predicated region
        $region105: #{tpu_custom_call.1} parent=95 // pred_check
          %p773 = pneg %p116
        $region106: #{tpu_custom_call.1} parent=95 // pred_check_branch
          %775 = sbr.rel (%p773) target = $region108
        $region107: #{tpu_custom_call.1} parent=95 // pred_region
          %p776 = scmp.lt.s32.totalorder %s44, 1
          %s777 = scalar_select %p776, %s44, 1
          %s778 = smul.addr %s777, 8
          %s779 = scalar_lea.vmem %s2, %s778
        $region108: #{tpu_custom_call.1} parent=95 // pred_fallthru
          _
        // Predicated region
        $region109: #{tpu_custom_call.1} parent=95 // pred_check
          %p780 = pneg %p142
        $region110: #{tpu_custom_call.1} parent=95 // pred_check_branch
          %782 = sbr.rel (%p780) target = $region112
        $region111: #{tpu_custom_call.1} parent=95 // pred_region
          %s783 = sand.u32 %s132, 1
          %s784 = scalar_lea.sflag [#allocation3], %s783
          %s785 = sand.u32 %s132, 1
          %s786 = smul.addr %s785, 8
          %s787 = scalar_lea.vmem [#allocation2], %s786
          %s789 = ssub.s32 128, 128
          %790 = vsyncadd %s784, %s789
          %s791 = smul.addr %s44, 128
          %s792 = scalar_lea.hbm %s3, %s791
          %s794 = sshll.u32 %s787, 4
          %s795 = int_to_ptr.vmem [resolvable:$true] %s794
          %797 = dma.hbm_to_vmem [thread:$0]  %s792, 128, %s795, %s784
        $region112: #{tpu_custom_call.1} parent=95 // pred_fallthru
          _
      $region96: #{tpu_custom_call.1} parent=5 // pred_fallthru
        _
      %p798 = scmp.le.s32.totalorder 1, %s44
      %p799 = scmp.lt.s32.totalorder %s44, 3
      %p800 = pnand %p798, %p799
      %p801 = pneg %p800
      // Predicated region
      $region113: #{tpu_custom_call.1} parent=5 // pred_check
        _
      $region114: #{tpu_custom_call.1} parent=5 // pred_check_branch
        %803 = sbr.rel (%p800) target = $region116
      $region115: #{tpu_custom_call.1} parent=5 // pred_region
        %s804 = ssub.s32 %s44, 1
        %s805 = sand.u32 %s135, 1
        %s806 = scalar_lea.sflag [#allocation3], %s805
        %s807 = sand.u32 %s135, 1
        %s808 = smul.addr %s807, 8
        %s809 = scalar_lea.vmem [#allocation2], %s808
        // Predicated region
        $region117: #{tpu_custom_call.1} parent=115 // pred_check
          %p810 = pneg %p148
        $region118: #{tpu_custom_call.1} parent=115 // pred_check_branch
          %812 = sbr.rel (%p810) target = $region120
        $region119: #{tpu_custom_call.1} parent=115 // pred_region
          %813 = dma.done %s806, 128
        $region120: #{tpu_custom_call.1} parent=115 // pred_fallthru
          _
        // Predicated region
        $region121: #{tpu_custom_call.1} parent=115 // pred_check
          %p814 = pneg %p169
        $region122: #{tpu_custom_call.1} parent=115 // pred_check_branch
          %816 = sbr.rel (%p814) target = $region124
        $region123: #{tpu_custom_call.1} parent=115 // pred_region
          %817 = dma.done [#allocation6], 256
        $region124: #{tpu_custom_call.1} parent=115 // pred_fallthru
          _
        // Predicated region
        $region125: #{tpu_custom_call.1} parent=115 // pred_check
          %p818 = pneg %p211
        $region126: #{tpu_custom_call.1} parent=115 // pred_check_branch
          %820 = sbr.rel (%p818) target = $region128
        $region127: #{tpu_custom_call.1} parent=115 // pred_region
          %821 = dma.done [#allocation6], 256
        $region128: #{tpu_custom_call.1} parent=115 // pred_fallthru
          _
        // Predicated region
        $region129: #{tpu_custom_call.1} parent=115 // pred_check
          %p822 = pneg %p253
        $region130: #{tpu_custom_call.1} parent=115 // pred_check_branch
          %824 = sbr.rel (%p822) target = $region132
        $region131: #{tpu_custom_call.1} parent=115 // pred_region
          %825 = dma.done [#allocation9], 256
        $region132: #{tpu_custom_call.1} parent=115 // pred_fallthru
          _
        // Predicated region
        $region133: #{tpu_custom_call.1} parent=115 // pred_check
          %p826 = pneg %p295
        $region134: #{tpu_custom_call.1} parent=115 // pred_check_branch
          %828 = sbr.rel (%p826) target = $region136
        $region135: #{tpu_custom_call.1} parent=115 // pred_region
          %829 = dma.done [#allocation9], 256
        $region136: #{tpu_custom_call.1} parent=115 // pred_fallthru
          _
        // Predicated region
        $region137: #{tpu_custom_call.1} parent=115 // pred_check
          %p830 = pneg %p337
        $region138: #{tpu_custom_call.1} parent=115 // pred_check_branch
          %832 = sbr.rel (%p830) target = $region140
        $region139: #{tpu_custom_call.1} parent=115 // pred_region
          %833 = dma.done [#allocation12], 256
        $region140: #{tpu_custom_call.1} parent=115 // pred_fallthru
          _
        // Predicated region
        $region141: #{tpu_custom_call.1} parent=115 // pred_check
          %p834 = pneg %p379
        $region142: #{tpu_custom_call.1} parent=115 // pred_check_branch
          %836 = sbr.rel (%p834) target = $region144
        $region143: #{tpu_custom_call.1} parent=115 // pred_region
          %837 = dma.done [#allocation12], 256
        $region144: #{tpu_custom_call.1} parent=115 // pred_fallthru
          _
        %p838 = scmp.lt.s32.totalorder %s49, 1
        %s839 = scalar_select %p838, %s49, 1
        %s840 = smul.addr %s839, 8
        %s841 = scalar_lea.vmem %s0, %s840
        %p842 = pneg %p70
        %p843 = pneg %p67
        %p844 = scmp.lt.s32.totalorder %s49, 1
        %s845 = scalar_select %p844, %s49, 1
        %s846 = smul.addr %s845, 8
        %s847 = scalar_lea.vmem %s1, %s846
        %p848 = pneg %p96
        %p849 = pneg %p93
        %p850 = scmp.lt.s32.totalorder %s49, 1
        %s851 = scalar_select %p850, %s49, 1
        %s852 = smul.addr %s851, 8
        %s853 = scalar_lea.vmem %s2, %s852
        %p854 = pneg %p122
        %p855 = pneg %p119
        %s856 = sand.u32 %s135, 1
        %s857 = scalar_lea.sflag [#allocation3], %s856
        %s858 = sand.u32 %s135, 1
        %s859 = smul.addr %s858, 8
        %s860 = scalar_lea.vmem [#allocation2], %s859
        %p861 = pneg %p148
        %p862 = pneg %p145
        %p863 = pneg %p169
        %p864 = pneg %p166
        %p865 = pneg %p190
        %p866 = pneg %p187
        %p867 = pneg %p211
        %p868 = pneg %p208
        %p869 = pneg %p232
        %p870 = pneg %p229
        %p871 = pneg %p253
        %p872 = pneg %p250
        %p873 = pneg %p274
        %p874 = pneg %p271
        %p875 = pneg %p295
        %p876 = pneg %p292
        %p877 = pneg %p316
        %p878 = pneg %p313
        %p879 = pneg %p337
        %p880 = pneg %p334
        %p881 = pneg %p358
        %p882 = pneg %p355
        %p883 = pneg %p379
        %p884 = pneg %p376
        %p885 = pneg %p400
        %p886 = pneg %p397
        %p887 = pneg %p421
        %p888 = pneg %p418
        %p889 = pneg %p442
        %p890 = pneg %p439
        %p891 = pneg %p463
        %p892 = pneg %p460
        %p893 = pneg %p484
        %p894 = pneg %p481
        %p895 = pneg %p505
        %p896 = pneg %p502
        %p897 = pneg %p526
        %p898 = pneg %p523
        %p899 = pneg %p547
        %p900 = pneg %p544
        %p901 = pneg %p568
        %p902 = pneg %p565
        %p903 = pneg %p594
        %p904 = pneg %p591
        %s905 = sand.u32 %s581, 1
        %s906 = scalar_lea.sflag [#allocation4], %s905
        %s907 = sand.u32 %s581, 1
        %s908 = smul.addr %s907, 8
        %s909 = scalar_lea.vmem [#allocation14], %s908
        %p910 = pneg %p620
        %p911 = pneg %p617
        %s912 = sand.u32 %s607, 1
        %s913 = scalar_lea.sflag [#allocation16], %s912
        %s914 = sand.u32 %s607, 1
        %s915 = smul.addr %s914, 16
        %s916 = scalar_lea.vmem [#allocation15], %s915
        %p917 = scmp.lt.s32.totalorder %s49, 1
        %s918 = scalar_select %p917, %s49, 1
        %s919 = smul.addr %s918, 8
        %s920 = scalar_lea.vmem %s0, %s919
        %p921 = scmp.lt.s32.totalorder %s49, 1
        %s922 = scalar_select %p921, %s49, 1
        %s923 = smul.addr %s922, 8
        %s924 = scalar_lea.vmem %s1, %s923
        %p925 = scmp.lt.s32.totalorder %s49, 1
        %s926 = scalar_select %p925, %s49, 1
        %s927 = smul.addr %s926, 8
        %s928 = scalar_lea.vmem %s2, %s927
        %v930 = vld [vmem:[%s924] sm:$0xff]
        %v931 = vld [vmem:[%s920] sm:$0xff]
        %v932 = vld [vmem:[%s809] sm:$0xff]
        %v933 = vld [vmem:[%s928] sm:$0xff]
        %v934 = vpack.c.bf16 %v931, %v931
        %v935 = vld [vmem:[#allocation10] sm:$0xf]
        %v936 = vld [vmem:[#allocation10 + $0x4] sm:$0xf]
        %v937 = vld [vmem:[#allocation10 + $0x8] sm:$0xf]
        %v938 = vld [vmem:[#allocation10 + $0xc] sm:$0xf]
        %v939 = vld [vmem:[%s11] sm:$0x1]
        %v941 = vlaneseq
        %v942 = vshrl.u32 %v941, 7
        %v943 = vsub.s32 0, %v942
        %v944 = vrot.slane %v939, %v943
        %v950 = vunpack.c.l.b16 %v935
        %v951 = vunpack.c.l.b16 %v936
        %v952 = vunpack.c.l.b16 %v937
        %v953 = vunpack.c.l.b16 %v938
        %v954 = vpack.c.b16 %v951, %v950
        %v955 = vpack.c.b16 %v953, %v952
        %vm958 = vcmask 261120
        %v960 = vsel %vm958, %v934, 0
        %962 = vmatprep.subr.bf16.mxu0 0
        %963 = vmatpush1.bf16.msra.mxu0 0
        %964 = vmatprep.subr.bf16.mxu0 0
        %965 = vmatpush1.bf16.msra.mxu0 0
        %966 = vmatprep.subr.bf16.mxu0 0
        %967 = vmatpush1.bf16.msra.mxu0 0
        %968 = vmatprep.subr.bf16.mxu0 0
        %969 = vmatpush1.bf16.msra.mxu0 0
        %970 = vmatprep.subr.bf16.mxu0 0
        %971 = vmatpush1.bf16.msra.mxu0 0
        %972 = vmatprep.subr.bf16.mxu0 0
        %973 = vmatpush1.bf16.msra.mxu0 0
        %974 = vmatprep.subr.bf16.mxu0 0
        %975 = vmatpush1.bf16.msra.mxu0 %v955
        %976 = vmatprep.subr.bf16.mxu0 0
        %977 = vmatpush1.bf16.msra.mxu0 %v954
        %978 = vmatprep.subr.bf16.mxu0 0
        %979 = vmatpush2.bf16.msra.mxu0 0
        %980 = vmatprep.subr.bf16.mxu0 0
        %981 = vmatpush2.bf16.msra.mxu0 0
        %982 = vmatprep.subr.bf16.mxu0 0
        %983 = vmatpush2.bf16.msra.mxu0 0
        %984 = vmatprep.subr.bf16.mxu0 0
        %985 = vmatpush2.bf16.msra.mxu0 0
        %986 = vmatprep.subr.bf16.mxu0 0
        %987 = vmatpush2.bf16.msra.mxu0 0
        %988 = vmatprep.subr.bf16.mxu0 0
        %989 = vmatpush2.bf16.msra.mxu0 0
        %990 = vmatprep.subr.bf16.mxu0 0
        %991 = vmatpush2.bf16.msra.mxu0 0
        %992 = vmatprep.subr.bf16.mxu0 0
        %993 = vmatpush2.bf16.msra.mxu0 0
        %994 = vmatprep.mubr.bf16.mxu0 0
        %995 = vmatmul.mubr.bf16.gmra.mxu0 %v960
        %v996 = vpop.f32.mrf.mxu0
        %v997 = vadd.f32 %v944, %v996
        %v998 = vpop.f32.mrf.mxu0
        %v999 = vpop.f32.mrf.mxu0
        %v1000 = vpop.f32.mrf.mxu0
        %1001 = vdwg.mxu0
        %v1002 = vpack.c.bf16 %v930, %v930
        %v1003 = vld [vmem:[#allocation5] sm:$0xf]
        %v1004 = vld [vmem:[#allocation5 + $0x4] sm:$0xf]
        %v1005 = vld [vmem:[#allocation5 + $0x8] sm:$0xf]
        %v1006 = vld [vmem:[#allocation5 + $0xc] sm:$0xf]
        %v1007 = vld [vmem:[%s5] sm:$0x1]
        %v1009 = vlaneseq
        %v1010 = vshrl.u32 %v1009, 7
        %v1011 = vsub.s32 0, %v1010
        %v1012 = vrot.slane %v1007, %v1011
        %v1018 = vunpack.c.l.b16 %v1003
        %v1019 = vunpack.c.l.b16 %v1004
        %v1020 = vunpack.c.l.b16 %v1005
        %v1021 = vunpack.c.l.b16 %v1006
        %v1022 = vpack.c.b16 %v1019, %v1018
        %v1023 = vpack.c.b16 %v1021, %v1020
        %v1027 = vsel %vm958, %v1002, 0
        %1029 = vmatprep.subr.bf16.mxu0 0
        %1030 = vmatpush1.bf16.msra.mxu0 0
        %1031 = vmatprep.subr.bf16.mxu0 0
        %1032 = vmatpush1.bf16.msra.mxu0 0
        %1033 = vmatprep.subr.bf16.mxu0 0
        %1034 = vmatpush1.bf16.msra.mxu0 0
        %1035 = vmatprep.subr.bf16.mxu0 0
        %1036 = vmatpush1.bf16.msra.mxu0 0
        %1037 = vmatprep.subr.bf16.mxu0 0
        %1038 = vmatpush1.bf16.msra.mxu0 0
        %1039 = vmatprep.subr.bf16.mxu0 0
        %1040 = vmatpush1.bf16.msra.mxu0 0
        %1041 = vmatprep.subr.bf16.mxu0 0
        %1042 = vmatpush1.bf16.msra.mxu0 %v1023
        %1043 = vmatprep.subr.bf16.mxu0 0
        %1044 = vmatpush1.bf16.msra.mxu0 %v1022
        %1045 = vmatprep.subr.bf16.mxu0 0
        %1046 = vmatpush2.bf16.msra.mxu0 0
        %1047 = vmatprep.subr.bf16.mxu0 0
        %1048 = vmatpush2.bf16.msra.mxu0 0
        %1049 = vmatprep.subr.bf16.mxu0 0
        %1050 = vmatpush2.bf16.msra.mxu0 0
        %1051 = vmatprep.subr.bf16.mxu0 0
        %1052 = vmatpush2.bf16.msra.mxu0 0
        %1053 = vmatprep.subr.bf16.mxu0 0
        %1054 = vmatpush2.bf16.msra.mxu0 0
        %1055 = vmatprep.subr.bf16.mxu0 0
        %1056 = vmatpush2.bf16.msra.mxu0 0
        %1057 = vmatprep.subr.bf16.mxu0 0
        %1058 = vmatpush2.bf16.msra.mxu0 0
        %1059 = vmatprep.subr.bf16.mxu0 0
        %1060 = vmatpush2.bf16.msra.mxu0 0
        %1061 = vmatprep.mubr.bf16.mxu0 0
        %1062 = vmatmul.mubr.bf16.gmra.mxu0 %v1027
        %v1063 = vpop.f32.mrf.mxu0
        %v1064 = vadd.f32 %v1012, %v1063
        %v1065 = vpop.f32.mrf.mxu0
        %v1066 = vpop.f32.mrf.mxu0
        %v1067 = vpop.f32.mrf.mxu0
        %1068 = vdwg.mxu0
        %v1069 = vpack.c.bf16 %v1064, %v1064
        %1071 = vrot.lane.b32.xlu0 %v1069, 96
        %v1072 = vpop.permute.xlu0 %1071
        %vm1073 = vcmask 130048
        %v1075 = vsel %vm1073, %v1069, 0
        %v1078 = vsel %vm1073, %v1072, 0
        %1080 = vmatprep.subr.bf16.mxu0 0
        %1081 = vmatpush1.bf16.xpose.msra.mxu0 0
        %1082 = vmatprep.subr.bf16.mxu0 0
        %1083 = vmatpush1.bf16.xpose.msra.mxu0 0
        %1084 = vmatprep.subr.bf16.mxu0 0
        %1085 = vmatpush1.bf16.xpose.msra.mxu0 0
        %1086 = vmatprep.subr.bf16.mxu0 0
        %1087 = vmatpush1.bf16.xpose.msra.mxu0 0
        %1088 = vmatprep.subr.bf16.mxu0 0
        %1089 = vmatpush1.bf16.xpose.msra.mxu0 0
        %1090 = vmatprep.subr.bf16.mxu0 0
        %1091 = vmatpush1.bf16.xpose.msra.mxu0 0
        %1092 = vmatprep.subr.bf16.mxu0 0
        %1093 = vmatpush1.bf16.xpose.msra.mxu0 0
        %1094 = vmatprep.subr.bf16.mxu0 0
        %1095 = vmatpush1.bf16.xpose.msra.mxu0 %v1078
        %1096 = vmatprep.subr.bf16.mxu0 0
        %1097 = vmatpush2.bf16.xpose.msra.mxu0 0
        %1098 = vmatprep.subr.bf16.mxu0 0
        %1099 = vmatpush2.bf16.xpose.msra.mxu0 0
        %1100 = vmatprep.subr.bf16.mxu0 0
        %1101 = vmatpush2.bf16.xpose.msra.mxu0 0
        %1102 = vmatprep.subr.bf16.mxu0 0
        %1103 = vmatpush2.bf16.xpose.msra.mxu0 0
        %1104 = vmatprep.subr.bf16.mxu0 0
        %1105 = vmatpush2.bf16.xpose.msra.mxu0 0
        %1106 = vmatprep.subr.bf16.mxu0 0
        %1107 = vmatpush2.bf16.xpose.msra.mxu0 0
        %1108 = vmatprep.subr.bf16.mxu0 0
        %1109 = vmatpush2.bf16.xpose.msra.mxu0 0
        %1110 = vmatprep.subr.bf16.mxu0 0
        %1111 = vmatpush2.bf16.xpose.msra.mxu0 0
        %1112 = vmatprep.mubr.bf16.mxu0 0
        %1113 = vmatmul.mubr.bf16.gmra.mxu0 %v1075
        %v1114 = vpop.f32.mrf.mxu0
        %v1115 = vadd.f32 0.0, %v1114
        %v1116 = vpop.f32.mrf.mxu0
        %v1117 = vpop.f32.mrf.mxu0
        %v1118 = vpop.f32.mrf.mxu0
        %1119 = vdwg.mxu0
        %v1120 = vmul.f32 %v1115, 0.25
        %vm1121 = vcmp.ne.f32.partialorder %v932, 0.0
        %v1122 = vsel %vm1121, %v1120, -1e+09
        %vm1123 = vcmask 64512
        %v1124 = vsel %vm1123, %v1122, -inf
        %1125 = vmax.xlane.f32.xlu0 %v1124
        %v1126 = vpop.xlane.xlu0 %1125
        %v1127 = vsub.f32 %v1122, %v1126
        %v1128 = vmul.f32 %v1127, 1.442695
        %v1129 = vpow.pop %v1128
        %v1130 = vsel %vm1123, %v1129, 0.0
        %1131 = vadd.xlane.f32.xlu0 %v1130
        %v1132 = vpop.xlane.xlu0 %1131
        %v1133 = vrcp.pop %v1132
        %v1134 = vmul.f32 %v1129, %v1133
        %v1135 = vpack.c.bf16 %v1134, %v1134
        %1136 = vrot.lane.b32.xlu0 %v1069, 64
        %v1137 = vpop.permute.xlu0 %1136
        %v1139 = vsel %vm1123, %v1135, 0
        %vm1141 = vcmask 1043456
        %v1143 = vsel %vm1141, %v1137, 0
        %1145 = vmatprep.subr.bf16.mxu0 0
        %1146 = vmatpush1.bf16.msra.mxu0 0
        %1147 = vmatprep.subr.bf16.mxu0 0
        %1148 = vmatpush1.bf16.msra.mxu0 0
        %1149 = vmatprep.subr.bf16.mxu0 0
        %1150 = vmatpush1.bf16.msra.mxu0 0
        %1151 = vmatprep.subr.bf16.mxu0 0
        %1152 = vmatpush1.bf16.msra.mxu0 0
        %1153 = vmatprep.subr.bf16.mxu0 0
        %1154 = vmatpush1.bf16.msra.mxu0 0
        %1155 = vmatprep.subr.bf16.mxu0 0
        %1156 = vmatpush1.bf16.msra.mxu0 0
        %1157 = vmatprep.subr.bf16.mxu0 0
        %1158 = vmatpush1.bf16.msra.mxu0 0
        %1159 = vmatprep.subr.bf16.mxu0 0
        %1160 = vmatpush1.bf16.msra.mxu0 %v1143
        %1161 = vmatprep.subr.bf16.mxu0 0
        %1162 = vmatpush2.bf16.msra.mxu0 0
        %1163 = vmatprep.subr.bf16.mxu0 0
        %1164 = vmatpush2.bf16.msra.mxu0 0
        %1165 = vmatprep.subr.bf16.mxu0 0
        %1166 = vmatpush2.bf16.msra.mxu0 0
        %1167 = vmatprep.subr.bf16.mxu0 0
        %1168 = vmatpush2.bf16.msra.mxu0 0
        %1169 = vmatprep.subr.bf16.mxu0 0
        %1170 = vmatpush2.bf16.msra.mxu0 0
        %1171 = vmatprep.subr.bf16.mxu0 0
        %1172 = vmatpush2.bf16.msra.mxu0 0
        %1173 = vmatprep.subr.bf16.mxu0 0
        %1174 = vmatpush2.bf16.msra.mxu0 0
        %1175 = vmatprep.subr.bf16.mxu0 0
        %1176 = vmatpush2.bf16.msra.mxu0 0
        %1177 = vmatprep.mubr.bf16.mxu0 0
        %1178 = vmatmul.mubr.bf16.gmra.mxu0 %v1139
        %v1179 = vpop.f32.mrf.mxu0
        %v1180 = vadd.f32 0.0, %v1179
        %v1181 = vpop.f32.mrf.mxu0
        %v1182 = vpop.f32.mrf.mxu0
        %v1183 = vpop.f32.mrf.mxu0
        %1184 = vdwg.mxu0
        %1185 = vrot.lane.b32.xlu0 %v1069, 112
        %v1186 = vpop.permute.xlu0 %1185
        %1187 = vrot.lane.b32.xlu0 %v1069, 80
        %v1188 = vpop.permute.xlu0 %1187
        %v1190 = vsel %vm1073, %v1186, 0
        %v1193 = vsel %vm1073, %v1188, 0
        %1195 = vmatprep.subr.bf16.mxu0 0
        %1196 = vmatpush1.bf16.xpose.msra.mxu0 0
        %1197 = vmatprep.subr.bf16.mxu0 0
        %1198 = vmatpush1.bf16.xpose.msra.mxu0 0
        %1199 = vmatprep.subr.bf16.mxu0 0
        %1200 = vmatpush1.bf16.xpose.msra.mxu0 0
        %1201 = vmatprep.subr.bf16.mxu0 0
        %1202 = vmatpush1.bf16.xpose.msra.mxu0 0
        %1203 = vmatprep.subr.bf16.mxu0 0
        %1204 = vmatpush1.bf16.xpose.msra.mxu0 0
        %1205 = vmatprep.subr.bf16.mxu0 0
        %1206 = vmatpush1.bf16.xpose.msra.mxu0 0
        %1207 = vmatprep.subr.bf16.mxu0 0
        %1208 = vmatpush1.bf16.xpose.msra.mxu0 0
        %1209 = vmatprep.subr.bf16.mxu0 0
        %1210 = vmatpush1.bf16.xpose.msra.mxu0 %v1193
        %1211 = vmatprep.subr.bf16.mxu0 0
        %1212 = vmatpush2.bf16.xpose.msra.mxu0 0
        %1213 = vmatprep.subr.bf16.mxu0 0
        %1214 = vmatpush2.bf16.xpose.msra.mxu0 0
        %1215 = vmatprep.subr.bf16.mxu0 0
        %1216 = vmatpush2.bf16.xpose.msra.mxu0 0
        %1217 = vmatprep.subr.bf16.mxu0 0
        %1218 = vmatpush2.bf16.xpose.msra.mxu0 0
        %1219 = vmatprep.subr.bf16.mxu0 0
        %1220 = vmatpush2.bf16.xpose.msra.mxu0 0
        %1221 = vmatprep.subr.bf16.mxu0 0
        %1222 = vmatpush2.bf16.xpose.msra.mxu0 0
        %1223 = vmatprep.subr.bf16.mxu0 0
        %1224 = vmatpush2.bf16.xpose.msra.mxu0 0
        %1225 = vmatprep.subr.bf16.mxu0 0
        %1226 = vmatpush2.bf16.xpose.msra.mxu0 0
        %1227 = vmatprep.mubr.bf16.mxu0 0
        %1228 = vmatmul.mubr.bf16.gmra.mxu0 %v1190
        %v1229 = vpop.f32.mrf.mxu0
        %v1230 = vadd.f32 0.0, %v1229
        %v1231 = vpop.f32.mrf.mxu0
        %v1232 = vpop.f32.mrf.mxu0
        %v1233 = vpop.f32.mrf.mxu0
        %1234 = vdwg.mxu0
        %v1235 = vmul.f32 %v1230, 0.25
        %v1236 = vsel %vm1121, %v1235, -1e+09
        %v1237 = vsel %vm1123, %v1236, -inf
        %1238 = vmax.xlane.f32.xlu0 %v1237
        %v1239 = vpop.xlane.xlu0 %1238
        %v1240 = vsub.f32 %v1236, %v1239
        %v1241 = vmul.f32 %v1240, 1.442695
        %v1242 = vpow.pop %v1241
        %v1243 = vsel %vm1123, %v1242, 0.0
        %1244 = vadd.xlane.f32.xlu0 %v1243
        %v1245 = vpop.xlane.xlu0 %1244
        %v1246 = vrcp.pop %v1245
        %v1247 = vmul.f32 %v1242, %v1246
        %v1248 = vpack.c.bf16 %v1247, %v1247
        %1249 = vrot.lane.b32.xlu0 %v1069, 48
        %v1250 = vpop.permute.xlu0 %1249
        %v1252 = vsel %vm1123, %v1248, 0
        %v1255 = vsel %vm1141, %v1250, 0
        %1257 = vmatprep.subr.bf16.mxu0 0
        %1258 = vmatpush1.bf16.msra.mxu0 0
        %1259 = vmatprep.subr.bf16.mxu0 0
        %1260 = vmatpush1.bf16.msra.mxu0 0
        %1261 = vmatprep.subr.bf16.mxu0 0
        %1262 = vmatpush1.bf16.msra.mxu0 0
        %1263 = vmatprep.subr.bf16.mxu0 0
        %1264 = vmatpush1.bf16.msra.mxu0 0
        %1265 = vmatprep.subr.bf16.mxu0 0
        %1266 = vmatpush1.bf16.msra.mxu0 0
        %1267 = vmatprep.subr.bf16.mxu0 0
        %1268 = vmatpush1.bf16.msra.mxu0 0
        %1269 = vmatprep.subr.bf16.mxu0 0
        %1270 = vmatpush1.bf16.msra.mxu0 0
        %1271 = vmatprep.subr.bf16.mxu0 0
        %1272 = vmatpush1.bf16.msra.mxu0 %v1255
        %1273 = vmatprep.subr.bf16.mxu0 0
        %1274 = vmatpush2.bf16.msra.mxu0 0
        %1275 = vmatprep.subr.bf16.mxu0 0
        %1276 = vmatpush2.bf16.msra.mxu0 0
        %1277 = vmatprep.subr.bf16.mxu0 0
        %1278 = vmatpush2.bf16.msra.mxu0 0
        %1279 = vmatprep.subr.bf16.mxu0 0
        %1280 = vmatpush2.bf16.msra.mxu0 0
        %1281 = vmatprep.subr.bf16.mxu0 0
        %1282 = vmatpush2.bf16.msra.mxu0 0
        %1283 = vmatprep.subr.bf16.mxu0 0
        %1284 = vmatpush2.bf16.msra.mxu0 0
        %1285 = vmatprep.subr.bf16.mxu0 0
        %1286 = vmatpush2.bf16.msra.mxu0 0
        %1287 = vmatprep.subr.bf16.mxu0 0
        %1288 = vmatpush2.bf16.msra.mxu0 0
        %1289 = vmatprep.mubr.bf16.mxu0 0
        %1290 = vmatmul.mubr.bf16.gmra.mxu0 %v1252
        %v1291 = vpop.f32.mrf.mxu0
        %v1292 = vadd.f32 0.0, %v1291
        %v1293 = vpop.f32.mrf.mxu0
        %v1294 = vpop.f32.mrf.mxu0
        %v1295 = vpop.f32.mrf.mxu0
        %1296 = vdwg.mxu0
        %1298 = vrot.lane.b32.xlu0 %v1292, 16
        %v1299 = vpop.permute.xlu0 %1298
        %v1301 = vsel %vm1073, %v1180, %v1299
        %v1302 = vpack.c.bf16 %v1301, %v1301
        %v1303 = vld [vmem:[#allocation7] sm:$0xf]
        %v1304 = vld [vmem:[#allocation7 + $0x4] sm:$0xf]
        %v1305 = vld [vmem:[#allocation7 + $0x8] sm:$0xf]
        %v1306 = vld [vmem:[#allocation7 + $0xc] sm:$0xf]
        %v1307 = vld [vmem:[%s7] sm:$0x1]
        %v1309 = vlaneseq
        %v1310 = vshrl.u32 %v1309, 7
        %v1311 = vsub.s32 0, %v1310
        %v1312 = vrot.slane %v1307, %v1311
        %v1318 = vunpack.c.l.b16 %v1303
        %v1319 = vunpack.c.l.b16 %v1304
        %v1320 = vunpack.c.l.b16 %v1305
        %v1321 = vunpack.c.l.b16 %v1306
        %v1322 = vpack.c.b16 %v1319, %v1318
        %v1323 = vpack.c.b16 %v1321, %v1320
        %v1327 = vsel %vm958, %v1302, 0
        %1329 = vmatprep.subr.bf16.mxu0 0
        %1330 = vmatpush1.bf16.msra.mxu0 0
        %1331 = vmatprep.subr.bf16.mxu0 0
        %1332 = vmatpush1.bf16.msra.mxu0 0
        %1333 = vmatprep.subr.bf16.mxu0 0
        %1334 = vmatpush1.bf16.msra.mxu0 0
        %1335 = vmatprep.subr.bf16.mxu0 0
        %1336 = vmatpush1.bf16.msra.mxu0 0
        %1337 = vmatprep.subr.bf16.mxu0 0
        %1338 = vmatpush1.bf16.msra.mxu0 0
        %1339 = vmatprep.subr.bf16.mxu0 0
        %1340 = vmatpush1.bf16.msra.mxu0 0
        %1341 = vmatprep.subr.bf16.mxu0 0
        %1342 = vmatpush1.bf16.msra.mxu0 %v1323
        %1343 = vmatprep.subr.bf16.mxu0 0
        %1344 = vmatpush1.bf16.msra.mxu0 %v1322
        %1345 = vmatprep.subr.bf16.mxu0 0
        %1346 = vmatpush2.bf16.msra.mxu0 0
        %1347 = vmatprep.subr.bf16.mxu0 0
        %1348 = vmatpush2.bf16.msra.mxu0 0
        %1349 = vmatprep.subr.bf16.mxu0 0
        %1350 = vmatpush2.bf16.msra.mxu0 0
        %1351 = vmatprep.subr.bf16.mxu0 0
        %1352 = vmatpush2.bf16.msra.mxu0 0
        %1353 = vmatprep.subr.bf16.mxu0 0
        %1354 = vmatpush2.bf16.msra.mxu0 0
        %1355 = vmatprep.subr.bf16.mxu0 0
        %1356 = vmatpush2.bf16.msra.mxu0 0
        %1357 = vmatprep.subr.bf16.mxu0 0
        %1358 = vmatpush2.bf16.msra.mxu0 0
        %1359 = vmatprep.subr.bf16.mxu0 0
        %1360 = vmatpush2.bf16.msra.mxu0 0
        %1361 = vmatprep.mubr.bf16.mxu0 0
        %1362 = vmatmul.mubr.bf16.gmra.mxu0 %v1327
        %v1363 = vpop.f32.mrf.mxu0
        %v1364 = vadd.f32 %v1312, %v1363
        %v1365 = vpop.f32.mrf.mxu0
        %v1366 = vpop.f32.mrf.mxu0
        %v1367 = vpop.f32.mrf.mxu0
        %1368 = vdwg.mxu0
        %v1369 = vadd.f32 %v1364, %v930
        %v1370 = vsel %vm958, %v1369, 0.0
        %1371 = vadd.xlane.f32.xlu0 %v1370
        %v1372 = vpop.xlane.xlu0 %1371
        %v1373 = vrcp.pop 32.0
        %v1374 = vmul.f32 %v1372, %v1373
        %v1375 = vsub.f32 %v1369, %v1374
        %v1376 = vmul.f32 %v1375, %v1375
        %v1377 = vsel %vm958, %v1376, 0.0
        %1378 = vadd.xlane.f32.xlu0 %v1377
        %v1379 = vpop.xlane.xlu0 %1378
        %v1380 = vmul.f32 %v1379, %v1373
        %v1381 = vadd.f32 %v1380, 1e-05
        %v1382 = vrsqrt.pop %v1381
        %v1383 = vmul.f32 %v1375, %v1382
        %v1384 = vld [vmem:[%s18] sm:$0x1]
        %v1386 = vlaneseq
        %v1387 = vshrl.u32 %v1386, 7
        %v1388 = vsub.s32 0, %v1387
        %v1389 = vrot.slane %v1384, %v1388
        %v1391 = vmul.f32 %v1383, %v1389
        %v1392 = vld [vmem:[%s19] sm:$0x1]
        %v1394 = vlaneseq
        %v1395 = vshrl.u32 %v1394, 7
        %v1396 = vsub.s32 0, %v1395
        %v1397 = vrot.slane %v1392, %v1396
        %v1399 = vadd.f32 %v1391, %v1397
        %v1400 = vpack.c.bf16 %v1399, %v1399
        %v1401 = vld [vmem:[#allocation8] sm:$0xf]
        %v1402 = vld [vmem:[#allocation8 + $0x4] sm:$0xf]
        %v1403 = vld [vmem:[#allocation8 + $0x8] sm:$0xf]
        %v1404 = vld [vmem:[#allocation8 + $0xc] sm:$0xf]
        %v1405 = vld [vmem:[%s9] sm:$0x1]
        %v1407 = vlaneseq
        %v1408 = vshrl.u32 %v1407, 7
        %v1409 = vsub.s32 0, %v1408
        %v1410 = vrot.slane %v1405, %v1409
        %v1416 = vunpack.c.l.b16 %v1401
        %v1417 = vunpack.c.l.b16 %v1402
        %v1418 = vunpack.c.l.b16 %v1403
        %v1419 = vunpack.c.l.b16 %v1404
        %v1420 = vpack.c.b16 %v1417, %v1416
        %v1421 = vpack.c.b16 %v1419, %v1418
        %v1425 = vsel %vm958, %v1400, 0
        %1427 = vmatprep.subr.bf16.mxu0 0
        %1428 = vmatpush1.bf16.msra.mxu0 0
        %1429 = vmatprep.subr.bf16.mxu0 0
        %1430 = vmatpush1.bf16.msra.mxu0 0
        %1431 = vmatprep.subr.bf16.mxu0 0
        %1432 = vmatpush1.bf16.msra.mxu0 0
        %1433 = vmatprep.subr.bf16.mxu0 0
        %1434 = vmatpush1.bf16.msra.mxu0 0
        %1435 = vmatprep.subr.bf16.mxu0 0
        %1436 = vmatpush1.bf16.msra.mxu0 0
        %1437 = vmatprep.subr.bf16.mxu0 0
        %1438 = vmatpush1.bf16.msra.mxu0 0
        %1439 = vmatprep.subr.bf16.mxu0 0
        %1440 = vmatpush1.bf16.msra.mxu0 %v1421
        %1441 = vmatprep.subr.bf16.mxu0 0
        %1442 = vmatpush1.bf16.msra.mxu0 %v1420
        %1443 = vmatprep.subr.bf16.mxu0 0
        %1444 = vmatpush2.bf16.msra.mxu0 0
        %1445 = vmatprep.subr.bf16.mxu0 0
        %1446 = vmatpush2.bf16.msra.mxu0 0
        %1447 = vmatprep.subr.bf16.mxu0 0
        %1448 = vmatpush2.bf16.msra.mxu0 0
        %1449 = vmatprep.subr.bf16.mxu0 0
        %1450 = vmatpush2.bf16.msra.mxu0 0
        %1451 = vmatprep.subr.bf16.mxu0 0
        %1452 = vmatpush2.bf16.msra.mxu0 0
        %1453 = vmatprep.subr.bf16.mxu0 0
        %1454 = vmatpush2.bf16.msra.mxu0 0
        %1455 = vmatprep.subr.bf16.mxu0 0
        %1456 = vmatpush2.bf16.msra.mxu0 0
        %1457 = vmatprep.subr.bf16.mxu0 0
        %1458 = vmatpush2.bf16.msra.mxu0 0
        %1459 = vmatprep.mubr.bf16.mxu0 0
        %1460 = vmatmul.mubr.bf16.gmra.mxu0 %v1425
        %v1461 = vpop.f32.mrf.mxu0
        %v1462 = vadd.f32 %v1410, %v1461
        %v1463 = vpop.f32.mrf.mxu0
        %v1464 = vpop.f32.mrf.mxu0
        %v1465 = vpop.f32.mrf.mxu0
        %1466 = vdwg.mxu0
        %v1467 = vpack.c.bf16 %v1462, %v1462
        %v1468 = vpack.c.bf16 %v997, %v997
        %v1470 = vsel %vm1073, %v1467, 0
        %v1473 = vsel %vm1073, %v1468, 0
        %1475 = vmatprep.subr.bf16.mxu0 0
        %1476 = vmatpush1.bf16.xpose.msra.mxu0 0
        %1477 = vmatprep.subr.bf16.mxu0 0
        %1478 = vmatpush1.bf16.xpose.msra.mxu0 0
        %1479 = vmatprep.subr.bf16.mxu0 0
        %1480 = vmatpush1.bf16.xpose.msra.mxu0 0
        %1481 = vmatprep.subr.bf16.mxu0 0
        %1482 = vmatpush1.bf16.xpose.msra.mxu0 0
        %1483 = vmatprep.subr.bf16.mxu0 0
        %1484 = vmatpush1.bf16.xpose.msra.mxu0 0
        %1485 = vmatprep.subr.bf16.mxu0 0
        %1486 = vmatpush1.bf16.xpose.msra.mxu0 0
        %1487 = vmatprep.subr.bf16.mxu0 0
        %1488 = vmatpush1.bf16.xpose.msra.mxu0 0
        %1489 = vmatprep.subr.bf16.mxu0 0
        %1490 = vmatpush1.bf16.xpose.msra.mxu0 %v1473
        %1491 = vmatprep.subr.bf16.mxu0 0
        %1492 = vmatpush2.bf16.xpose.msra.mxu0 0
        %1493 = vmatprep.subr.bf16.mxu0 0
        %1494 = vmatpush2.bf16.xpose.msra.mxu0 0
        %1495 = vmatprep.subr.bf16.mxu0 0
        %1496 = vmatpush2.bf16.xpose.msra.mxu0 0
        %1497 = vmatprep.subr.bf16.mxu0 0
        %1498 = vmatpush2.bf16.xpose.msra.mxu0 0
        %1499 = vmatprep.subr.bf16.mxu0 0
        %1500 = vmatpush2.bf16.xpose.msra.mxu0 0
        %1501 = vmatprep.subr.bf16.mxu0 0
        %1502 = vmatpush2.bf16.xpose.msra.mxu0 0
        %1503 = vmatprep.subr.bf16.mxu0 0
        %1504 = vmatpush2.bf16.xpose.msra.mxu0 0
        %1505 = vmatprep.subr.bf16.mxu0 0
        %1506 = vmatpush2.bf16.xpose.msra.mxu0 0
        %1507 = vmatprep.mubr.bf16.mxu0 0
        %1508 = vmatmul.mubr.bf16.gmra.mxu0 %v1470
        %v1509 = vpop.f32.mrf.mxu0
        %v1510 = vadd.f32 0.0, %v1509
        %v1511 = vpop.f32.mrf.mxu0
        %v1512 = vpop.f32.mrf.mxu0
        %v1513 = vpop.f32.mrf.mxu0
        %1514 = vdwg.mxu0
        %v1515 = vmul.f32 %v1510, 0.25
        %vm1516 = vcmp.ne.f32.partialorder %v933, 0.0
        %v1517 = vsel %vm1516, %v1515, -1e+09
        %v1518 = vsel %vm1123, %v1517, -inf
        %1519 = vmax.xlane.f32.xlu0 %v1518
        %v1520 = vpop.xlane.xlu0 %1519
        %v1521 = vsub.f32 %v1517, %v1520
        %v1522 = vmul.f32 %v1521, 1.442695
        %v1523 = vpow.pop %v1522
        %v1524 = vsel %vm1123, %v1523, 0.0
        %1525 = vadd.xlane.f32.xlu0 %v1524
        %v1526 = vpop.xlane.xlu0 %1525
        %v1527 = vrcp.pop %v1526
        %v1528 = vmul.f32 %v1523, %v1527
        %v1529 = vpack.c.bf16 %v1528, %v1528
        %1531 = vrot.lane.b32.xlu0 %v1468, 96
        %v1532 = vpop.permute.xlu0 %1531
        %v1534 = vsel %vm1123, %v1529, 0
        %v1537 = vsel %vm1141, %v1532, 0
        %1539 = vmatprep.subr.bf16.mxu0 0
        %1540 = vmatpush1.bf16.msra.mxu0 0
        %1541 = vmatprep.subr.bf16.mxu0 0
        %1542 = vmatpush1.bf16.msra.mxu0 0
        %1543 = vmatprep.subr.bf16.mxu0 0
        %1544 = vmatpush1.bf16.msra.mxu0 0
        %1545 = vmatprep.subr.bf16.mxu0 0
        %1546 = vmatpush1.bf16.msra.mxu0 0
        %1547 = vmatprep.subr.bf16.mxu0 0
        %1548 = vmatpush1.bf16.msra.mxu0 0
        %1549 = vmatprep.subr.bf16.mxu0 0
        %1550 = vmatpush1.bf16.msra.mxu0 0
        %1551 = vmatprep.subr.bf16.mxu0 0
        %1552 = vmatpush1.bf16.msra.mxu0 0
        %1553 = vmatprep.subr.bf16.mxu0 0
        %1554 = vmatpush1.bf16.msra.mxu0 %v1537
        %1555 = vmatprep.subr.bf16.mxu0 0
        %1556 = vmatpush2.bf16.msra.mxu0 0
        %1557 = vmatprep.subr.bf16.mxu0 0
        %1558 = vmatpush2.bf16.msra.mxu0 0
        %1559 = vmatprep.subr.bf16.mxu0 0
        %1560 = vmatpush2.bf16.msra.mxu0 0
        %1561 = vmatprep.subr.bf16.mxu0 0
        %1562 = vmatpush2.bf16.msra.mxu0 0
        %1563 = vmatprep.subr.bf16.mxu0 0
        %1564 = vmatpush2.bf16.msra.mxu0 0
        %1565 = vmatprep.subr.bf16.mxu0 0
        %1566 = vmatpush2.bf16.msra.mxu0 0
        %1567 = vmatprep.subr.bf16.mxu0 0
        %1568 = vmatpush2.bf16.msra.mxu0 0
        %1569 = vmatprep.subr.bf16.mxu0 0
        %1570 = vmatpush2.bf16.msra.mxu0 0
        %1571 = vmatprep.mubr.bf16.mxu0 0
        %1572 = vmatmul.mubr.bf16.gmra.mxu0 %v1534
        %v1573 = vpop.f32.mrf.mxu0
        %v1574 = vadd.f32 0.0, %v1573
        %v1575 = vpop.f32.mrf.mxu0
        %v1576 = vpop.f32.mrf.mxu0
        %v1577 = vpop.f32.mrf.mxu0
        %1578 = vdwg.mxu0
        %1580 = vrot.lane.b32.xlu0 %v1467, 112
        %v1581 = vpop.permute.xlu0 %1580
        %1582 = vrot.lane.b32.xlu0 %v1468, 112
        %v1583 = vpop.permute.xlu0 %1582
        %v1585 = vsel %vm1073, %v1581, 0
        %v1588 = vsel %vm1073, %v1583, 0
        %1590 = vmatprep.subr.bf16.mxu0 0
        %1591 = vmatpush1.bf16.xpose.msra.mxu0 0
        %1592 = vmatprep.subr.bf16.mxu0 0
        %1593 = vmatpush1.bf16.xpose.msra.mxu0 0
        %1594 = vmatprep.subr.bf16.mxu0 0
        %1595 = vmatpush1.bf16.xpose.msra.mxu0 0
        %1596 = vmatprep.subr.bf16.mxu0 0
        %1597 = vmatpush1.bf16.xpose.msra.mxu0 0
        %1598 = vmatprep.subr.bf16.mxu0 0
        %1599 = vmatpush1.bf16.xpose.msra.mxu0 0
        %1600 = vmatprep.subr.bf16.mxu0 0
        %1601 = vmatpush1.bf16.xpose.msra.mxu0 0
        %1602 = vmatprep.subr.bf16.mxu0 0
        %1603 = vmatpush1.bf16.xpose.msra.mxu0 0
        %1604 = vmatprep.subr.bf16.mxu0 0
        %1605 = vmatpush1.bf16.xpose.msra.mxu0 %v1588
        %1606 = vmatprep.subr.bf16.mxu0 0
        %1607 = vmatpush2.bf16.xpose.msra.mxu0 0
        %1608 = vmatprep.subr.bf16.mxu0 0
        %1609 = vmatpush2.bf16.xpose.msra.mxu0 0
        %1610 = vmatprep.subr.bf16.mxu0 0
        %1611 = vmatpush2.bf16.xpose.msra.mxu0 0
        %1612 = vmatprep.subr.bf16.mxu0 0
        %1613 = vmatpush2.bf16.xpose.msra.mxu0 0
        %1614 = vmatprep.subr.bf16.mxu0 0
        %1615 = vmatpush2.bf16.xpose.msra.mxu0 0
        %1616 = vmatprep.subr.bf16.mxu0 0
        %1617 = vmatpush2.bf16.xpose.msra.mxu0 0
        %1618 = vmatprep.subr.bf16.mxu0 0
        %1619 = vmatpush2.bf16.xpose.msra.mxu0 0
        %1620 = vmatprep.subr.bf16.mxu0 0
        %1621 = vmatpush2.bf16.xpose.msra.mxu0 0
        %1622 = vmatprep.mubr.bf16.mxu0 0
        %1623 = vmatmul.mubr.bf16.gmra.mxu0 %v1585
        %v1624 = vpop.f32.mrf.mxu0
        %v1625 = vadd.f32 0.0, %v1624
        %v1626 = vpop.f32.mrf.mxu0
        %v1627 = vpop.f32.mrf.mxu0
        %v1628 = vpop.f32.mrf.mxu0
        %1629 = vdwg.mxu0
        %v1630 = vmul.f32 %v1625, 0.25
        %v1631 = vsel %vm1516, %v1630, -1e+09
        %v1632 = vsel %vm1123, %v1631, -inf
        %1633 = vmax.xlane.f32.xlu0 %v1632
        %v1634 = vpop.xlane.xlu0 %1633
        %v1635 = vsub.f32 %v1631, %v1634
        %v1636 = vmul.f32 %v1635, 1.442695
        %v1637 = vpow.pop %v1636
        %v1638 = vsel %vm1123, %v1637, 0.0
        %1639 = vadd.xlane.f32.xlu0 %v1638
        %v1640 = vpop.xlane.xlu0 %1639
        %v1641 = vrcp.pop %v1640
        %v1642 = vmul.f32 %v1637, %v1641
        %v1643 = vpack.c.bf16 %v1642, %v1642
        %1644 = vrot.lane.b32.xlu0 %v1468, 80
        %v1645 = vpop.permute.xlu0 %1644
        %v1647 = vsel %vm1123, %v1643, 0
        %v1650 = vsel %vm1141, %v1645, 0
        %1652 = vmatprep.subr.bf16.mxu0 0
        %1653 = vmatpush1.bf16.msra.mxu0 0
        %1654 = vmatprep.subr.bf16.mxu0 0
        %1655 = vmatpush1.bf16.msra.mxu0 0
        %1656 = vmatprep.subr.bf16.mxu0 0
        %1657 = vmatpush1.bf16.msra.mxu0 0
        %1658 = vmatprep.subr.bf16.mxu0 0
        %1659 = vmatpush1.bf16.msra.mxu0 0
        %1660 = vmatprep.subr.bf16.mxu0 0
        %1661 = vmatpush1.bf16.msra.mxu0 0
        %1662 = vmatprep.subr.bf16.mxu0 0
        %1663 = vmatpush1.bf16.msra.mxu0 0
        %1664 = vmatprep.subr.bf16.mxu0 0
        %1665 = vmatpush1.bf16.msra.mxu0 0
        %1666 = vmatprep.subr.bf16.mxu0 0
        %1667 = vmatpush1.bf16.msra.mxu0 %v1650
        %1668 = vmatprep.subr.bf16.mxu0 0
        %1669 = vmatpush2.bf16.msra.mxu0 0
        %1670 = vmatprep.subr.bf16.mxu0 0
        %1671 = vmatpush2.bf16.msra.mxu0 0
        %1672 = vmatprep.subr.bf16.mxu0 0
        %1673 = vmatpush2.bf16.msra.mxu0 0
        %1674 = vmatprep.subr.bf16.mxu0 0
        %1675 = vmatpush2.bf16.msra.mxu0 0
        %1676 = vmatprep.subr.bf16.mxu0 0
        %1677 = vmatpush2.bf16.msra.mxu0 0
        %1678 = vmatprep.subr.bf16.mxu0 0
        %1679 = vmatpush2.bf16.msra.mxu0 0
        %1680 = vmatprep.subr.bf16.mxu0 0
        %1681 = vmatpush2.bf16.msra.mxu0 0
        %1682 = vmatprep.subr.bf16.mxu0 0
        %1683 = vmatpush2.bf16.msra.mxu0 0
        %1684 = vmatprep.mubr.bf16.mxu0 0
        %1685 = vmatmul.mubr.bf16.gmra.mxu0 %v1647
        %v1686 = vpop.f32.mrf.mxu0
        %v1687 = vadd.f32 0.0, %v1686
        %v1688 = vpop.f32.mrf.mxu0
        %v1689 = vpop.f32.mrf.mxu0
        %v1690 = vpop.f32.mrf.mxu0
        %1691 = vdwg.mxu0
        %1693 = vrot.lane.b32.xlu0 %v1687, 16
        %v1694 = vpop.permute.xlu0 %1693
        %v1696 = vsel %vm1073, %v1574, %v1694
        %v1697 = vpack.c.bf16 %v1696, %v1696
        %v1698 = vld [vmem:[#allocation11] sm:$0xf]
        %v1699 = vld [vmem:[#allocation11 + $0x4] sm:$0xf]
        %v1700 = vld [vmem:[#allocation11 + $0x8] sm:$0xf]
        %v1701 = vld [vmem:[#allocation11 + $0xc] sm:$0xf]
        %v1702 = vld [vmem:[%s13] sm:$0x1]
        %v1704 = vlaneseq
        %v1705 = vshrl.u32 %v1704, 7
        %v1706 = vsub.s32 0, %v1705
        %v1707 = vrot.slane %v1702, %v1706
        %v1713 = vunpack.c.l.b16 %v1698
        %v1714 = vunpack.c.l.b16 %v1699
        %v1715 = vunpack.c.l.b16 %v1700
        %v1716 = vunpack.c.l.b16 %v1701
        %v1717 = vpack.c.b16 %v1714, %v1713
        %v1718 = vpack.c.b16 %v1716, %v1715
        %v1722 = vsel %vm958, %v1697, 0
        %1724 = vmatprep.subr.bf16.mxu0 0
        %1725 = vmatpush1.bf16.msra.mxu0 0
        %1726 = vmatprep.subr.bf16.mxu0 0
        %1727 = vmatpush1.bf16.msra.mxu0 0
        %1728 = vmatprep.subr.bf16.mxu0 0
        %1729 = vmatpush1.bf16.msra.mxu0 0
        %1730 = vmatprep.subr.bf16.mxu0 0
        %1731 = vmatpush1.bf16.msra.mxu0 0
        %1732 = vmatprep.subr.bf16.mxu0 0
        %1733 = vmatpush1.bf16.msra.mxu0 0
        %1734 = vmatprep.subr.bf16.mxu0 0
        %1735 = vmatpush1.bf16.msra.mxu0 0
        %1736 = vmatprep.subr.bf16.mxu0 0
        %1737 = vmatpush1.bf16.msra.mxu0 %v1718
        %1738 = vmatprep.subr.bf16.mxu0 0
        %1739 = vmatpush1.bf16.msra.mxu0 %v1717
        %1740 = vmatprep.subr.bf16.mxu0 0
        %1741 = vmatpush2.bf16.msra.mxu0 0
        %1742 = vmatprep.subr.bf16.mxu0 0
        %1743 = vmatpush2.bf16.msra.mxu0 0
        %1744 = vmatprep.subr.bf16.mxu0 0
        %1745 = vmatpush2.bf16.msra.mxu0 0
        %1746 = vmatprep.subr.bf16.mxu0 0
        %1747 = vmatpush2.bf16.msra.mxu0 0
        %1748 = vmatprep.subr.bf16.mxu0 0
        %1749 = vmatpush2.bf16.msra.mxu0 0
        %1750 = vmatprep.subr.bf16.mxu0 0
        %1751 = vmatpush2.bf16.msra.mxu0 0
        %1752 = vmatprep.subr.bf16.mxu0 0
        %1753 = vmatpush2.bf16.msra.mxu0 0
        %1754 = vmatprep.subr.bf16.mxu0 0
        %1755 = vmatpush2.bf16.msra.mxu0 0
        %1756 = vmatprep.mubr.bf16.mxu0 0
        %1757 = vmatmul.mubr.bf16.gmra.mxu0 %v1722
        %v1758 = vpop.f32.mrf.mxu0
        %v1759 = vadd.f32 %v1707, %v1758
        %v1760 = vpop.f32.mrf.mxu0
        %v1761 = vpop.f32.mrf.mxu0
        %v1762 = vpop.f32.mrf.mxu0
        %1763 = vdwg.mxu0
        %v1764 = vadd.f32 %v1759, %v1399
        %v1765 = vsel %vm958, %v1764, 0.0
        %1766 = vadd.xlane.f32.xlu0 %v1765
        %v1767 = vpop.xlane.xlu0 %1766
        %v1768 = vmul.f32 %v1767, %v1373
        %v1769 = vsub.f32 %v1764, %v1768
        %v1770 = vmul.f32 %v1769, %v1769
        %v1771 = vsel %vm958, %v1770, 0.0
        %1772 = vadd.xlane.f32.xlu0 %v1771
        %v1773 = vpop.xlane.xlu0 %1772
        %v1774 = vmul.f32 %v1773, %v1373
        %v1775 = vadd.f32 %v1774, 1e-05
        %v1776 = vrsqrt.pop %v1775
        %v1777 = vmul.f32 %v1769, %v1776
        %v1778 = vld [vmem:[%s20] sm:$0x1]
        %v1780 = vlaneseq
        %v1781 = vshrl.u32 %v1780, 7
        %v1782 = vsub.s32 0, %v1781
        %v1783 = vrot.slane %v1778, %v1782
        %v1785 = vmul.f32 %v1777, %v1783
        %v1786 = vld [vmem:[%s21] sm:$0x1]
        %v1788 = vlaneseq
        %v1789 = vshrl.u32 %v1788, 7
        %v1790 = vsub.s32 0, %v1789
        %v1791 = vrot.slane %v1786, %v1790
        %v1793 = vadd.f32 %v1785, %v1791
        %v1794 = vpack.c.bf16 %v1793, %v1793
        %v1795 = vld [vmem:[#allocation13] sm:$0xf]
        %v1796 = vld [vmem:[#allocation13 + $0x4] sm:$0xf]
        %v1797 = vld [vmem:[#allocation13 + $0x8] sm:$0xf]
        %v1798 = vld [vmem:[#allocation13 + $0xc] sm:$0xf]
        %v1799 = vld [vmem:[%s15] sm:$0x1]
        %v1801 = vlaneseq
        %v1802 = vshrl.u32 %v1801, 7
        %v1803 = vsub.s32 0, %v1802
        %v1804 = vrot.slane %v1799, %v1803
        %v1810 = vunpack.c.l.b16 %v1795
        %v1811 = vunpack.c.l.b16 %v1796
        %v1812 = vunpack.c.l.b16 %v1797
        %v1813 = vunpack.c.l.b16 %v1798
        %v1814 = vpack.c.b16 %v1811, %v1810
        %v1815 = vpack.c.b16 %v1813, %v1812
        %v1819 = vsel %vm958, %v1794, 0
        %1821 = vmatprep.subr.bf16.mxu0 0
        %1822 = vmatpush1.bf16.msra.mxu0 0
        %1823 = vmatprep.subr.bf16.mxu0 0
        %1824 = vmatpush1.bf16.msra.mxu0 0
        %1825 = vmatprep.subr.bf16.mxu0 0
        %1826 = vmatpush1.bf16.msra.mxu0 0
        %1827 = vmatprep.subr.bf16.mxu0 0
        %1828 = vmatpush1.bf16.msra.mxu0 0
        %1829 = vmatprep.subr.bf16.mxu0 0
        %1830 = vmatpush1.bf16.msra.mxu0 0
        %1831 = vmatprep.subr.bf16.mxu0 0
        %1832 = vmatpush1.bf16.msra.mxu0 0
        %1833 = vmatprep.subr.bf16.mxu0 0
        %1834 = vmatpush1.bf16.msra.mxu0 %v1815
        %1835 = vmatprep.subr.bf16.mxu0 0
        %1836 = vmatpush1.bf16.msra.mxu0 %v1814
        %1837 = vmatprep.subr.bf16.mxu0 0
        %1838 = vmatpush2.bf16.msra.mxu0 0
        %1839 = vmatprep.subr.bf16.mxu0 0
        %1840 = vmatpush2.bf16.msra.mxu0 0
        %1841 = vmatprep.subr.bf16.mxu0 0
        %1842 = vmatpush2.bf16.msra.mxu0 0
        %1843 = vmatprep.subr.bf16.mxu0 0
        %1844 = vmatpush2.bf16.msra.mxu0 0
        %1845 = vmatprep.subr.bf16.mxu0 0
        %1846 = vmatpush2.bf16.msra.mxu0 0
        %1847 = vmatprep.subr.bf16.mxu0 0
        %1848 = vmatpush2.bf16.msra.mxu0 0
        %1849 = vmatprep.subr.bf16.mxu0 0
        %1850 = vmatpush2.bf16.msra.mxu0 0
        %1851 = vmatprep.subr.bf16.mxu0 0
        %1852 = vmatpush2.bf16.msra.mxu0 0
        %1853 = vmatprep.mubr.bf16.mxu0 0
        %1854 = vmatmul.mubr.bf16.gmra.mxu0 %v1819
        %v1855 = vpop.f32.mrf.mxu0
        %v1856 = vadd.f32 %v1804, %v1855
        %v1857 = vpop.f32.mrf.mxu0
        %v1858 = vpop.f32.mrf.mxu0
        %v1859 = vpop.f32.mrf.mxu0
        %1860 = vdwg.mxu0
        %v1861 = vmax.f32 %v1856, 0.0
        %v1862 = vpack.c.bf16 %v1861, %v1861
        %v1863 = vld [vmem:[%s16] sm:$0xf]
        %v1864 = vld [vmem:[%s16 + $0x4] sm:$0xf]
        %v1865 = vld [vmem:[%s16 + $0x8] sm:$0xf]
        %v1866 = vld [vmem:[%s16 + $0xc] sm:$0xf]
        %v1867 = vld [vmem:[%s16 + $0x10] sm:$0xf]
        %v1868 = vld [vmem:[%s16 + $0x14] sm:$0xf]
        %v1869 = vld [vmem:[%s16 + $0x18] sm:$0xf]
        %v1870 = vld [vmem:[%s16 + $0x1c] sm:$0xf]
        %v1871 = vld [vmem:[%s17] sm:$0x1]
        %v1873 = vlaneseq
        %v1874 = vshrl.u32 %v1873, 7
        %v1875 = vsub.s32 0, %v1874
        %v1876 = vrot.slane %v1871, %v1875
        %v1886 = vunpack.c.l.b16 %v1863
        %v1887 = vunpack.c.l.b16 %v1864
        %v1888 = vunpack.c.l.b16 %v1865
        %v1889 = vunpack.c.l.b16 %v1866
        %v1890 = vunpack.c.l.b16 %v1867
        %v1891 = vunpack.c.l.b16 %v1868
        %v1892 = vunpack.c.l.b16 %v1869
        %v1893 = vunpack.c.l.b16 %v1870
        %v1894 = vpack.c.b16 %v1887, %v1886
        %v1895 = vpack.c.b16 %v1889, %v1888
        %v1896 = vpack.c.b16 %v1891, %v1890
        %v1897 = vpack.c.b16 %v1893, %v1892
        %vm1902 = vcmask 523264
        %v1904 = vsel %vm1902, %v1862, 0
        %1906 = vmatprep.subr.bf16.mxu0 0
        %1907 = vmatpush1.bf16.msra.mxu0 0
        %1908 = vmatprep.subr.bf16.mxu0 0
        %1909 = vmatpush1.bf16.msra.mxu0 0
        %1910 = vmatprep.subr.bf16.mxu0 0
        %1911 = vmatpush1.bf16.msra.mxu0 0
        %1912 = vmatprep.subr.bf16.mxu0 0
        %1913 = vmatpush1.bf16.msra.mxu0 0
        %1914 = vmatprep.subr.bf16.mxu0 0
        %1915 = vmatpush1.bf16.msra.mxu0 %v1897
        %1916 = vmatprep.subr.bf16.mxu0 0
        %1917 = vmatpush1.bf16.msra.mxu0 %v1896
        %1918 = vmatprep.subr.bf16.mxu0 0
        %1919 = vmatpush1.bf16.msra.mxu0 %v1895
        %1920 = vmatprep.subr.bf16.mxu0 0
        %1921 = vmatpush1.bf16.msra.mxu0 %v1894
        %1922 = vmatprep.subr.bf16.mxu0 0
        %1923 = vmatpush2.bf16.msra.mxu0 0
        %1924 = vmatprep.subr.bf16.mxu0 0
        %1925 = vmatpush2.bf16.msra.mxu0 0
        %1926 = vmatprep.subr.bf16.mxu0 0
        %1927 = vmatpush2.bf16.msra.mxu0 0
        %1928 = vmatprep.subr.bf16.mxu0 0
        %1929 = vmatpush2.bf16.msra.mxu0 0
        %1930 = vmatprep.subr.bf16.mxu0 0
        %1931 = vmatpush2.bf16.msra.mxu0 0
        %1932 = vmatprep.subr.bf16.mxu0 0
        %1933 = vmatpush2.bf16.msra.mxu0 0
        %1934 = vmatprep.subr.bf16.mxu0 0
        %1935 = vmatpush2.bf16.msra.mxu0 0
        %1936 = vmatprep.subr.bf16.mxu0 0
        %1937 = vmatpush2.bf16.msra.mxu0 0
        %1938 = vmatprep.mubr.bf16.mxu0 0
        %1939 = vmatmul.mubr.bf16.gmra.mxu0 %v1904
        %v1940 = vpop.f32.mrf.mxu0
        %v1941 = vadd.f32 %v1876, %v1940
        %v1942 = vpop.f32.mrf.mxu0
        %v1943 = vpop.f32.mrf.mxu0
        %v1944 = vpop.f32.mrf.mxu0
        %1945 = vdwg.mxu0
        %v1946 = vadd.f32 %v1941, %v1793
        %v1947 = vsel %vm958, %v1946, 0.0
        %1948 = vadd.xlane.f32.xlu0 %v1947
        %v1949 = vpop.xlane.xlu0 %1948
        %v1950 = vmul.f32 %v1949, %v1373
        %v1951 = vsub.f32 %v1946, %v1950
        %v1952 = vmul.f32 %v1951, %v1951
        %v1953 = vsel %vm958, %v1952, 0.0
        %1954 = vadd.xlane.f32.xlu0 %v1953
        %v1955 = vpop.xlane.xlu0 %1954
        %v1956 = vmul.f32 %v1955, %v1373
        %v1957 = vadd.f32 %v1956, 1e-05
        %v1958 = vrsqrt.pop %v1957
        %v1959 = vmul.f32 %v1951, %v1958
        %v1960 = vld [vmem:[%s22] sm:$0x1]
        %v1962 = vlaneseq
        %v1963 = vshrl.u32 %v1962, 7
        %v1964 = vsub.s32 0, %v1963
        %v1965 = vrot.slane %v1960, %v1964
        %v1967 = vmul.f32 %v1959, %v1965
        %v1968 = vld [vmem:[%s23] sm:$0x1]
        %v1970 = vlaneseq
        %v1971 = vshrl.u32 %v1970, 7
        %v1972 = vsub.s32 0, %v1971
        %v1973 = vrot.slane %v1968, %v1972
        %v1975 = vadd.f32 %v1967, %v1973
        %v1976 = vpack.c.bf16 %v1975, %v1975
        %v1978 = vsel %vm958, %v1976, 0
        %1980 = vmatprep.subr.bf16.mxu0 0
        %1981 = vmatpush1.bf16.msra.mxu0 0
        %1982 = vmatprep.subr.bf16.mxu0 0
        %1983 = vmatpush1.bf16.msra.mxu0 0
        %1984 = vmatprep.subr.bf16.mxu0 0
        %1985 = vmatpush1.bf16.msra.mxu0 0
        %1986 = vmatprep.subr.bf16.mxu0 0
        %1987 = vmatpush1.bf16.msra.mxu0 0
        %1988 = vmatprep.subr.bf16.mxu0 0
        %1989 = vmatpush1.bf16.msra.mxu0 0
        %1990 = vmatprep.subr.bf16.mxu0 0
        %1991 = vmatpush1.bf16.msra.mxu0 0
        %1992 = vmatprep.subr.bf16.mxu0 0
        %1993 = vmatpush1.bf16.msra.mxu0 %v1023
        %1994 = vmatprep.subr.bf16.mxu0 0
        %1995 = vmatpush1.bf16.msra.mxu0 %v1022
        %1996 = vmatprep.subr.bf16.mxu0 0
        %1997 = vmatpush2.bf16.msra.mxu0 0
        %1998 = vmatprep.subr.bf16.mxu0 0
        %1999 = vmatpush2.bf16.msra.mxu0 0
        %2000 = vmatprep.subr.bf16.mxu0 0
        %2001 = vmatpush2.bf16.msra.mxu0 0
        %2002 = vmatprep.subr.bf16.mxu0 0
        %2003 = vmatpush2.bf16.msra.mxu0 0
        %2004 = vmatprep.subr.bf16.mxu0 0
        %2005 = vmatpush2.bf16.msra.mxu0 0
        %2006 = vmatprep.subr.bf16.mxu0 0
        %2007 = vmatpush2.bf16.msra.mxu0 0
        %2008 = vmatprep.subr.bf16.mxu0 0
        %2009 = vmatpush2.bf16.msra.mxu0 0
        %2010 = vmatprep.subr.bf16.mxu0 0
        %2011 = vmatpush2.bf16.msra.mxu0 0
        %2012 = vmatprep.mubr.bf16.mxu0 0
        %2013 = vmatmul.mubr.bf16.gmra.mxu0 %v1978
        %v2014 = vpop.f32.mrf.mxu0
        %v2015 = vadd.f32 %v1012, %v2014
        %v2016 = vpop.f32.mrf.mxu0
        %v2017 = vpop.f32.mrf.mxu0
        %v2018 = vpop.f32.mrf.mxu0
        %2019 = vdwg.mxu0
        %v2020 = vpack.c.bf16 %v2015, %v2015
        %2022 = vrot.lane.b32.xlu0 %v2020, 96
        %v2023 = vpop.permute.xlu0 %2022
        %v2025 = vsel %vm1073, %v2020, 0
        %v2028 = vsel %vm1073, %v2023, 0
        %2030 = vmatprep.subr.bf16.mxu0 0
        %2031 = vmatpush1.bf16.xpose.msra.mxu0 0
        %2032 = vmatprep.subr.bf16.mxu0 0
        %2033 = vmatpush1.bf16.xpose.msra.mxu0 0
        %2034 = vmatprep.subr.bf16.mxu0 0
        %2035 = vmatpush1.bf16.xpose.msra.mxu0 0
        %2036 = vmatprep.subr.bf16.mxu0 0
        %2037 = vmatpush1.bf16.xpose.msra.mxu0 0
        %2038 = vmatprep.subr.bf16.mxu0 0
        %2039 = vmatpush1.bf16.xpose.msra.mxu0 0
        %2040 = vmatprep.subr.bf16.mxu0 0
        %2041 = vmatpush1.bf16.xpose.msra.mxu0 0
        %2042 = vmatprep.subr.bf16.mxu0 0
        %2043 = vmatpush1.bf16.xpose.msra.mxu0 0
        %2044 = vmatprep.subr.bf16.mxu0 0
        %2045 = vmatpush1.bf16.xpose.msra.mxu0 %v2028
        %2046 = vmatprep.subr.bf16.mxu0 0
        %2047 = vmatpush2.bf16.xpose.msra.mxu0 0
        %2048 = vmatprep.subr.bf16.mxu0 0
        %2049 = vmatpush2.bf16.xpose.msra.mxu0 0
        %2050 = vmatprep.subr.bf16.mxu0 0
        %2051 = vmatpush2.bf16.xpose.msra.mxu0 0
        %2052 = vmatprep.subr.bf16.mxu0 0
        %2053 = vmatpush2.bf16.xpose.msra.mxu0 0
        %2054 = vmatprep.subr.bf16.mxu0 0
        %2055 = vmatpush2.bf16.xpose.msra.mxu0 0
        %2056 = vmatprep.subr.bf16.mxu0 0
        %2057 = vmatpush2.bf16.xpose.msra.mxu0 0
        %2058 = vmatprep.subr.bf16.mxu0 0
        %2059 = vmatpush2.bf16.xpose.msra.mxu0 0
        %2060 = vmatprep.subr.bf16.mxu0 0
        %2061 = vmatpush2.bf16.xpose.msra.mxu0 0
        %2062 = vmatprep.mubr.bf16.mxu0 0
        %2063 = vmatmul.mubr.bf16.gmra.mxu0 %v2025
        %v2064 = vpop.f32.mrf.mxu0
        %v2065 = vadd.f32 0.0, %v2064
        %v2066 = vpop.f32.mrf.mxu0
        %v2067 = vpop.f32.mrf.mxu0
        %v2068 = vpop.f32.mrf.mxu0
        %2069 = vdwg.mxu0
        %v2070 = vmul.f32 %v2065, 0.25
        %v2071 = vsel %vm1121, %v2070, -1e+09
        %v2072 = vsel %vm1123, %v2071, -inf
        %2073 = vmax.xlane.f32.xlu0 %v2072
        %v2074 = vpop.xlane.xlu0 %2073
        %v2075 = vsub.f32 %v2071, %v2074
        %v2076 = vmul.f32 %v2075, 1.442695
        %v2077 = vpow.pop %v2076
        %v2078 = vsel %vm1123, %v2077, 0.0
        %2079 = vadd.xlane.f32.xlu0 %v2078
        %v2080 = vpop.xlane.xlu0 %2079
        %v2081 = vrcp.pop %v2080
        %v2082 = vmul.f32 %v2077, %v2081
        %v2083 = vpack.c.bf16 %v2082, %v2082
        %2084 = vrot.lane.b32.xlu0 %v2020, 64
        %v2085 = vpop.permute.xlu0 %2084
        %v2087 = vsel %vm1123, %v2083, 0
        %v2090 = vsel %vm1141, %v2085, 0
        %2092 = vmatprep.subr.bf16.mxu0 0
        %2093 = vmatpush1.bf16.msra.mxu0 0
        %2094 = vmatprep.subr.bf16.mxu0 0
        %2095 = vmatpush1.bf16.msra.mxu0 0
        %2096 = vmatprep.subr.bf16.mxu0 0
        %2097 = vmatpush1.bf16.msra.mxu0 0
        %2098 = vmatprep.subr.bf16.mxu0 0
        %2099 = vmatpush1.bf16.msra.mxu0 0
        %2100 = vmatprep.subr.bf16.mxu0 0
        %2101 = vmatpush1.bf16.msra.mxu0 0
        %2102 = vmatprep.subr.bf16.mxu0 0
        %2103 = vmatpush1.bf16.msra.mxu0 0
        %2104 = vmatprep.subr.bf16.mxu0 0
        %2105 = vmatpush1.bf16.msra.mxu0 0
        %2106 = vmatprep.subr.bf16.mxu0 0
        %2107 = vmatpush1.bf16.msra.mxu0 %v2090
        %2108 = vmatprep.subr.bf16.mxu0 0
        %2109 = vmatpush2.bf16.msra.mxu0 0
        %2110 = vmatprep.subr.bf16.mxu0 0
        %2111 = vmatpush2.bf16.msra.mxu0 0
        %2112 = vmatprep.subr.bf16.mxu0 0
        %2113 = vmatpush2.bf16.msra.mxu0 0
        %2114 = vmatprep.subr.bf16.mxu0 0
        %2115 = vmatpush2.bf16.msra.mxu0 0
        %2116 = vmatprep.subr.bf16.mxu0 0
        %2117 = vmatpush2.bf16.msra.mxu0 0
        %2118 = vmatprep.subr.bf16.mxu0 0
        %2119 = vmatpush2.bf16.msra.mxu0 0
        %2120 = vmatprep.subr.bf16.mxu0 0
        %2121 = vmatpush2.bf16.msra.mxu0 0
        %2122 = vmatprep.subr.bf16.mxu0 0
        %2123 = vmatpush2.bf16.msra.mxu0 0
        %2124 = vmatprep.mubr.bf16.mxu0 0
        %2125 = vmatmul.mubr.bf16.gmra.mxu0 %v2087
        %v2126 = vpop.f32.mrf.mxu0
        %v2127 = vadd.f32 0.0, %v2126
        %v2128 = vpop.f32.mrf.mxu0
        %v2129 = vpop.f32.mrf.mxu0
        %v2130 = vpop.f32.mrf.mxu0
        %2131 = vdwg.mxu0
        %2132 = vrot.lane.b32.xlu0 %v2020, 112
        %v2133 = vpop.permute.xlu0 %2132
        %2134 = vrot.lane.b32.xlu0 %v2020, 80
        %v2135 = vpop.permute.xlu0 %2134
        %v2137 = vsel %vm1073, %v2133, 0
        %v2140 = vsel %vm1073, %v2135, 0
        %2142 = vmatprep.subr.bf16.mxu0 0
        %2143 = vmatpush1.bf16.xpose.msra.mxu0 0
        %2144 = vmatprep.subr.bf16.mxu0 0
        %2145 = vmatpush1.bf16.xpose.msra.mxu0 0
        %2146 = vmatprep.subr.bf16.mxu0 0
        %2147 = vmatpush1.bf16.xpose.msra.mxu0 0
        %2148 = vmatprep.subr.bf16.mxu0 0
        %2149 = vmatpush1.bf16.xpose.msra.mxu0 0
        %2150 = vmatprep.subr.bf16.mxu0 0
        %2151 = vmatpush1.bf16.xpose.msra.mxu0 0
        %2152 = vmatprep.subr.bf16.mxu0 0
        %2153 = vmatpush1.bf16.xpose.msra.mxu0 0
        %2154 = vmatprep.subr.bf16.mxu0 0
        %2155 = vmatpush1.bf16.xpose.msra.mxu0 0
        %2156 = vmatprep.subr.bf16.mxu0 0
        %2157 = vmatpush1.bf16.xpose.msra.mxu0 %v2140
        %2158 = vmatprep.subr.bf16.mxu0 0
        %2159 = vmatpush2.bf16.xpose.msra.mxu0 0
        %2160 = vmatprep.subr.bf16.mxu0 0
        %2161 = vmatpush2.bf16.xpose.msra.mxu0 0
        %2162 = vmatprep.subr.bf16.mxu0 0
        %2163 = vmatpush2.bf16.xpose.msra.mxu0 0
        %2164 = vmatprep.subr.bf16.mxu0 0
        %2165 = vmatpush2.bf16.xpose.msra.mxu0 0
        %2166 = vmatprep.subr.bf16.mxu0 0
        %2167 = vmatpush2.bf16.xpose.msra.mxu0 0
        %2168 = vmatprep.subr.bf16.mxu0 0
        %2169 = vmatpush2.bf16.xpose.msra.mxu0 0
        %2170 = vmatprep.subr.bf16.mxu0 0
        %2171 = vmatpush2.bf16.xpose.msra.mxu0 0
        %2172 = vmatprep.subr.bf16.mxu0 0
        %2173 = vmatpush2.bf16.xpose.msra.mxu0 0
        %2174 = vmatprep.mubr.bf16.mxu0 0
        %2175 = vmatmul.mubr.bf16.gmra.mxu0 %v2137
        %v2176 = vpop.f32.mrf.mxu0
        %v2177 = vadd.f32 0.0, %v2176
        %v2178 = vpop.f32.mrf.mxu0
        %v2179 = vpop.f32.mrf.mxu0
        %v2180 = vpop.f32.mrf.mxu0
        %2181 = vdwg.mxu0
        %v2182 = vmul.f32 %v2177, 0.25
        %v2183 = vsel %vm1121, %v2182, -1e+09
        %v2184 = vsel %vm1123, %v2183, -inf
        %2185 = vmax.xlane.f32.xlu0 %v2184
        %v2186 = vpop.xlane.xlu0 %2185
        %v2187 = vsub.f32 %v2183, %v2186
        %v2188 = vmul.f32 %v2187, 1.442695
        %v2189 = vpow.pop %v2188
        %v2190 = vsel %vm1123, %v2189, 0.0
        %2191 = vadd.xlane.f32.xlu0 %v2190
        %v2192 = vpop.xlane.xlu0 %2191
        %v2193 = vrcp.pop %v2192
        %v2194 = vmul.f32 %v2189, %v2193
        %v2195 = vpack.c.bf16 %v2194, %v2194
        %2196 = vrot.lane.b32.xlu0 %v2020, 48
        %v2197 = vpop.permute.xlu0 %2196
        %v2199 = vsel %vm1123, %v2195, 0
        %v2202 = vsel %vm1141, %v2197, 0
        %2204 = vmatprep.subr.bf16.mxu0 0
        %2205 = vmatpush1.bf16.msra.mxu0 0
        %2206 = vmatprep.subr.bf16.mxu0 0
        %2207 = vmatpush1.bf16.msra.mxu0 0
        %2208 = vmatprep.subr.bf16.mxu0 0
        %2209 = vmatpush1.bf16.msra.mxu0 0
        %2210 = vmatprep.subr.bf16.mxu0 0
        %2211 = vmatpush1.bf16.msra.mxu0 0
        %2212 = vmatprep.subr.bf16.mxu0 0
        %2213 = vmatpush1.bf16.msra.mxu0 0
        %2214 = vmatprep.subr.bf16.mxu0 0
        %2215 = vmatpush1.bf16.msra.mxu0 0
        %2216 = vmatprep.subr.bf16.mxu0 0
        %2217 = vmatpush1.bf16.msra.mxu0 0
        %2218 = vmatprep.subr.bf16.mxu0 0
        %2219 = vmatpush1.bf16.msra.mxu0 %v2202
        %2220 = vmatprep.subr.bf16.mxu0 0
        %2221 = vmatpush2.bf16.msra.mxu0 0
        %2222 = vmatprep.subr.bf16.mxu0 0
        %2223 = vmatpush2.bf16.msra.mxu0 0
        %2224 = vmatprep.subr.bf16.mxu0 0
        %2225 = vmatpush2.bf16.msra.mxu0 0
        %2226 = vmatprep.subr.bf16.mxu0 0
        %2227 = vmatpush2.bf16.msra.mxu0 0
        %2228 = vmatprep.subr.bf16.mxu0 0
        %2229 = vmatpush2.bf16.msra.mxu0 0
        %2230 = vmatprep.subr.bf16.mxu0 0
        %2231 = vmatpush2.bf16.msra.mxu0 0
        %2232 = vmatprep.subr.bf16.mxu0 0
        %2233 = vmatpush2.bf16.msra.mxu0 0
        %2234 = vmatprep.subr.bf16.mxu0 0
        %2235 = vmatpush2.bf16.msra.mxu0 0
        %2236 = vmatprep.mubr.bf16.mxu0 0
        %2237 = vmatmul.mubr.bf16.gmra.mxu0 %v2199
        %v2238 = vpop.f32.mrf.mxu0
        %v2239 = vadd.f32 0.0, %v2238
        %v2240 = vpop.f32.mrf.mxu0
        %v2241 = vpop.f32.mrf.mxu0
        %v2242 = vpop.f32.mrf.mxu0
        %2243 = vdwg.mxu0
        %2245 = vrot.lane.b32.xlu0 %v2239, 16
        %v2246 = vpop.permute.xlu0 %2245
        %v2248 = vsel %vm1073, %v2127, %v2246
        %v2249 = vpack.c.bf16 %v2248, %v2248
        %v2251 = vsel %vm958, %v2249, 0
        %2253 = vmatprep.subr.bf16.mxu0 0
        %2254 = vmatpush1.bf16.msra.mxu0 0
        %2255 = vmatprep.subr.bf16.mxu0 0
        %2256 = vmatpush1.bf16.msra.mxu0 0
        %2257 = vmatprep.subr.bf16.mxu0 0
        %2258 = vmatpush1.bf16.msra.mxu0 0
        %2259 = vmatprep.subr.bf16.mxu0 0
        %2260 = vmatpush1.bf16.msra.mxu0 0
        %2261 = vmatprep.subr.bf16.mxu0 0
        %2262 = vmatpush1.bf16.msra.mxu0 0
        %2263 = vmatprep.subr.bf16.mxu0 0
        %2264 = vmatpush1.bf16.msra.mxu0 0
        %2265 = vmatprep.subr.bf16.mxu0 0
        %2266 = vmatpush1.bf16.msra.mxu0 %v1323
        %2267 = vmatprep.subr.bf16.mxu0 0
        %2268 = vmatpush1.bf16.msra.mxu0 %v1322
        %2269 = vmatprep.subr.bf16.mxu0 0
        %2270 = vmatpush2.bf16.msra.mxu0 0
        %2271 = vmatprep.subr.bf16.mxu0 0
        %2272 = vmatpush2.bf16.msra.mxu0 0
        %2273 = vmatprep.subr.bf16.mxu0 0
        %2274 = vmatpush2.bf16.msra.mxu0 0
        %2275 = vmatprep.subr.bf16.mxu0 0
        %2276 = vmatpush2.bf16.msra.mxu0 0
        %2277 = vmatprep.subr.bf16.mxu0 0
        %2278 = vmatpush2.bf16.msra.mxu0 0
        %2279 = vmatprep.subr.bf16.mxu0 0
        %2280 = vmatpush2.bf16.msra.mxu0 0
        %2281 = vmatprep.subr.bf16.mxu0 0
        %2282 = vmatpush2.bf16.msra.mxu0 0
        %2283 = vmatprep.subr.bf16.mxu0 0
        %2284 = vmatpush2.bf16.msra.mxu0 0
        %2285 = vmatprep.mubr.bf16.mxu0 0
        %2286 = vmatmul.mubr.bf16.gmra.mxu0 %v2251
        %v2287 = vpop.f32.mrf.mxu0
        %v2288 = vadd.f32 %v1312, %v2287
        %v2289 = vpop.f32.mrf.mxu0
        %v2290 = vpop.f32.mrf.mxu0
        %v2291 = vpop.f32.mrf.mxu0
        %2292 = vdwg.mxu0
        %v2293 = vadd.f32 %v2288, %v1975
        %v2294 = vsel %vm958, %v2293, 0.0
        %2295 = vadd.xlane.f32.xlu0 %v2294
        %v2296 = vpop.xlane.xlu0 %2295
        %v2297 = vmul.f32 %v2296, %v1373
        %v2298 = vsub.f32 %v2293, %v2297
        %v2299 = vmul.f32 %v2298, %v2298
        %v2300 = vsel %vm958, %v2299, 0.0
        %2301 = vadd.xlane.f32.xlu0 %v2300
        %v2302 = vpop.xlane.xlu0 %2301
        %v2303 = vmul.f32 %v2302, %v1373
        %v2304 = vadd.f32 %v2303, 1e-05
        %v2305 = vrsqrt.pop %v2304
        %v2306 = vmul.f32 %v2298, %v2305
        %v2307 = vmul.f32 %v2306, %v1389
        %v2308 = vadd.f32 %v2307, %v1397
        %v2309 = vpack.c.bf16 %v2308, %v2308
        %v2311 = vsel %vm958, %v2309, 0
        %2313 = vmatprep.subr.bf16.mxu0 0
        %2314 = vmatpush1.bf16.msra.mxu0 0
        %2315 = vmatprep.subr.bf16.mxu0 0
        %2316 = vmatpush1.bf16.msra.mxu0 0
        %2317 = vmatprep.subr.bf16.mxu0 0
        %2318 = vmatpush1.bf16.msra.mxu0 0
        %2319 = vmatprep.subr.bf16.mxu0 0
        %2320 = vmatpush1.bf16.msra.mxu0 0
        %2321 = vmatprep.subr.bf16.mxu0 0
        %2322 = vmatpush1.bf16.msra.mxu0 0
        %2323 = vmatprep.subr.bf16.mxu0 0
        %2324 = vmatpush1.bf16.msra.mxu0 0
        %2325 = vmatprep.subr.bf16.mxu0 0
        %2326 = vmatpush1.bf16.msra.mxu0 %v1421
        %2327 = vmatprep.subr.bf16.mxu0 0
        %2328 = vmatpush1.bf16.msra.mxu0 %v1420
        %2329 = vmatprep.subr.bf16.mxu0 0
        %2330 = vmatpush2.bf16.msra.mxu0 0
        %2331 = vmatprep.subr.bf16.mxu0 0
        %2332 = vmatpush2.bf16.msra.mxu0 0
        %2333 = vmatprep.subr.bf16.mxu0 0
        %2334 = vmatpush2.bf16.msra.mxu0 0
        %2335 = vmatprep.subr.bf16.mxu0 0
        %2336 = vmatpush2.bf16.msra.mxu0 0
        %2337 = vmatprep.subr.bf16.mxu0 0
        %2338 = vmatpush2.bf16.msra.mxu0 0
        %2339 = vmatprep.subr.bf16.mxu0 0
        %2340 = vmatpush2.bf16.msra.mxu0 0
        %2341 = vmatprep.subr.bf16.mxu0 0
        %2342 = vmatpush2.bf16.msra.mxu0 0
        %2343 = vmatprep.subr.bf16.mxu0 0
        %2344 = vmatpush2.bf16.msra.mxu0 0
        %2345 = vmatprep.mubr.bf16.mxu0 0
        %2346 = vmatmul.mubr.bf16.gmra.mxu0 %v2311
        %v2347 = vpop.f32.mrf.mxu0
        %v2348 = vadd.f32 %v1410, %v2347
        %v2349 = vpop.f32.mrf.mxu0
        %v2350 = vpop.f32.mrf.mxu0
        %v2351 = vpop.f32.mrf.mxu0
        %2352 = vdwg.mxu0
        %v2353 = vpack.c.bf16 %v2348, %v2348
        %v2355 = vsel %vm1073, %v2353, 0
        %2357 = vmatprep.subr.bf16.mxu0 0
        %2358 = vmatpush1.bf16.xpose.msra.mxu0 0
        %2359 = vmatprep.subr.bf16.mxu0 0
        %2360 = vmatpush1.bf16.xpose.msra.mxu0 0
        %2361 = vmatprep.subr.bf16.mxu0 0
        %2362 = vmatpush1.bf16.xpose.msra.mxu0 0
        %2363 = vmatprep.subr.bf16.mxu0 0
        %2364 = vmatpush1.bf16.xpose.msra.mxu0 0
        %2365 = vmatprep.subr.bf16.mxu0 0
        %2366 = vmatpush1.bf16.xpose.msra.mxu0 0
        %2367 = vmatprep.subr.bf16.mxu0 0
        %2368 = vmatpush1.bf16.xpose.msra.mxu0 0
        %2369 = vmatprep.subr.bf16.mxu0 0
        %2370 = vmatpush1.bf16.xpose.msra.mxu0 0
        %2371 = vmatprep.subr.bf16.mxu0 0
        %2372 = vmatpush1.bf16.xpose.msra.mxu0 %v1473
        %2373 = vmatprep.subr.bf16.mxu0 0
        %2374 = vmatpush2.bf16.xpose.msra.mxu0 0
        %2375 = vmatprep.subr.bf16.mxu0 0
        %2376 = vmatpush2.bf16.xpose.msra.mxu0 0
        %2377 = vmatprep.subr.bf16.mxu0 0
        %2378 = vmatpush2.bf16.xpose.msra.mxu0 0
        %2379 = vmatprep.subr.bf16.mxu0 0
        %2380 = vmatpush2.bf16.xpose.msra.mxu0 0
        %2381 = vmatprep.subr.bf16.mxu0 0
        %2382 = vmatpush2.bf16.xpose.msra.mxu0 0
        %2383 = vmatprep.subr.bf16.mxu0 0
        %2384 = vmatpush2.bf16.xpose.msra.mxu0 0
        %2385 = vmatprep.subr.bf16.mxu0 0
        %2386 = vmatpush2.bf16.xpose.msra.mxu0 0
        %2387 = vmatprep.subr.bf16.mxu0 0
        %2388 = vmatpush2.bf16.xpose.msra.mxu0 0
        %2389 = vmatprep.mubr.bf16.mxu0 0
        %2390 = vmatmul.mubr.bf16.gmra.mxu0 %v2355
        %v2391 = vpop.f32.mrf.mxu0
        %v2392 = vadd.f32 0.0, %v2391
        %v2393 = vpop.f32.mrf.mxu0
        %v2394 = vpop.f32.mrf.mxu0
        %v2395 = vpop.f32.mrf.mxu0
        %2396 = vdwg.mxu0
        %v2397 = vmul.f32 %v2392, 0.25
        %v2398 = vsel %vm1516, %v2397, -1e+09
        %v2399 = vsel %vm1123, %v2398, -inf
        %2400 = vmax.xlane.f32.xlu0 %v2399
        %v2401 = vpop.xlane.xlu0 %2400
        %v2402 = vsub.f32 %v2398, %v2401
        %v2403 = vmul.f32 %v2402, 1.442695
        %v2404 = vpow.pop %v2403
        %v2405 = vsel %vm1123, %v2404, 0.0
        %2406 = vadd.xlane.f32.xlu0 %v2405
        %v2407 = vpop.xlane.xlu0 %2406
        %v2408 = vrcp.pop %v2407
        %v2409 = vmul.f32 %v2404, %v2408
        %v2410 = vpack.c.bf16 %v2409, %v2409
        %v2412 = vsel %vm1123, %v2410, 0
        %2414 = vmatprep.subr.bf16.mxu0 0
        %2415 = vmatpush1.bf16.msra.mxu0 0
        %2416 = vmatprep.subr.bf16.mxu0 0
        %2417 = vmatpush1.bf16.msra.mxu0 0
        %2418 = vmatprep.subr.bf16.mxu0 0
        %2419 = vmatpush1.bf16.msra.mxu0 0
        %2420 = vmatprep.subr.bf16.mxu0 0
        %2421 = vmatpush1.bf16.msra.mxu0 0
        %2422 = vmatprep.subr.bf16.mxu0 0
        %2423 = vmatpush1.bf16.msra.mxu0 0
        %2424 = vmatprep.subr.bf16.mxu0 0
        %2425 = vmatpush1.bf16.msra.mxu0 0
        %2426 = vmatprep.subr.bf16.mxu0 0
        %2427 = vmatpush1.bf16.msra.mxu0 0
        %2428 = vmatprep.subr.bf16.mxu0 0
        %2429 = vmatpush1.bf16.msra.mxu0 %v1537
        %2430 = vmatprep.subr.bf16.mxu0 0
        %2431 = vmatpush2.bf16.msra.mxu0 0
        %2432 = vmatprep.subr.bf16.mxu0 0
        %2433 = vmatpush2.bf16.msra.mxu0 0
        %2434 = vmatprep.subr.bf16.mxu0 0
        %2435 = vmatpush2.bf16.msra.mxu0 0
        %2436 = vmatprep.subr.bf16.mxu0 0
        %2437 = vmatpush2.bf16.msra.mxu0 0
        %2438 = vmatprep.subr.bf16.mxu0 0
        %2439 = vmatpush2.bf16.msra.mxu0 0
        %2440 = vmatprep.subr.bf16.mxu0 0
        %2441 = vmatpush2.bf16.msra.mxu0 0
        %2442 = vmatprep.subr.bf16.mxu0 0
        %2443 = vmatpush2.bf16.msra.mxu0 0
        %2444 = vmatprep.subr.bf16.mxu0 0
        %2445 = vmatpush2.bf16.msra.mxu0 0
        %2446 = vmatprep.mubr.bf16.mxu0 0
        %2447 = vmatmul.mubr.bf16.gmra.mxu0 %v2412
        %v2448 = vpop.f32.mrf.mxu0
        %v2449 = vadd.f32 0.0, %v2448
        %v2450 = vpop.f32.mrf.mxu0
        %v2451 = vpop.f32.mrf.mxu0
        %v2452 = vpop.f32.mrf.mxu0
        %2453 = vdwg.mxu0
        %2454 = vst.msk [vmem:[%s916] sm:$0xff] %vm1123, %v2409
        %2456 = vrot.lane.b32.xlu0 %v2353, 112
        %v2457 = vpop.permute.xlu0 %2456
        %v2459 = vsel %vm1073, %v2457, 0
        %2461 = vmatprep.subr.bf16.mxu0 0
        %2462 = vmatpush1.bf16.xpose.msra.mxu0 0
        %2463 = vmatprep.subr.bf16.mxu0 0
        %2464 = vmatpush1.bf16.xpose.msra.mxu0 0
        %2465 = vmatprep.subr.bf16.mxu0 0
        %2466 = vmatpush1.bf16.xpose.msra.mxu0 0
        %2467 = vmatprep.subr.bf16.mxu0 0
        %2468 = vmatpush1.bf16.xpose.msra.mxu0 0
        %2469 = vmatprep.subr.bf16.mxu0 0
        %2470 = vmatpush1.bf16.xpose.msra.mxu0 0
        %2471 = vmatprep.subr.bf16.mxu0 0
        %2472 = vmatpush1.bf16.xpose.msra.mxu0 0
        %2473 = vmatprep.subr.bf16.mxu0 0
        %2474 = vmatpush1.bf16.xpose.msra.mxu0 0
        %2475 = vmatprep.subr.bf16.mxu0 0
        %2476 = vmatpush1.bf16.xpose.msra.mxu0 %v1588
        %2477 = vmatprep.subr.bf16.mxu0 0
        %2478 = vmatpush2.bf16.xpose.msra.mxu0 0
        %2479 = vmatprep.subr.bf16.mxu0 0
        %2480 = vmatpush2.bf16.xpose.msra.mxu0 0
        %2481 = vmatprep.subr.bf16.mxu0 0
        %2482 = vmatpush2.bf16.xpose.msra.mxu0 0
        %2483 = vmatprep.subr.bf16.mxu0 0
        %2484 = vmatpush2.bf16.xpose.msra.mxu0 0
        %2485 = vmatprep.subr.bf16.mxu0 0
        %2486 = vmatpush2.bf16.xpose.msra.mxu0 0
        %2487 = vmatprep.subr.bf16.mxu0 0
        %2488 = vmatpush2.bf16.xpose.msra.mxu0 0
        %2489 = vmatprep.subr.bf16.mxu0 0
        %2490 = vmatpush2.bf16.xpose.msra.mxu0 0
        %2491 = vmatprep.subr.bf16.mxu0 0
        %2492 = vmatpush2.bf16.xpose.msra.mxu0 0
        %2493 = vmatprep.mubr.bf16.mxu0 0
        %2494 = vmatmul.mubr.bf16.gmra.mxu0 %v2459
        %v2495 = vpop.f32.mrf.mxu0
        %v2496 = vadd.f32 0.0, %v2495
        %v2497 = vpop.f32.mrf.mxu0
        %v2498 = vpop.f32.mrf.mxu0
        %v2499 = vpop.f32.mrf.mxu0
        %2500 = vdwg.mxu0
        %v2501 = vmul.f32 %v2496, 0.25
        %v2502 = vsel %vm1516, %v2501, -1e+09
        %v2503 = vsel %vm1123, %v2502, -inf
        %2504 = vmax.xlane.f32.xlu0 %v2503
        %v2505 = vpop.xlane.xlu0 %2504
        %v2506 = vsub.f32 %v2502, %v2505
        %v2507 = vmul.f32 %v2506, 1.442695
        %v2508 = vpow.pop %v2507
        %v2509 = vsel %vm1123, %v2508, 0.0
        %2510 = vadd.xlane.f32.xlu0 %v2509
        %v2511 = vpop.xlane.xlu0 %2510
        %v2512 = vrcp.pop %v2511
        %v2513 = vmul.f32 %v2508, %v2512
        %v2514 = vpack.c.bf16 %v2513, %v2513
        %v2516 = vsel %vm1123, %v2514, 0
        %2518 = vmatprep.subr.bf16.mxu0 0
        %2519 = vmatpush1.bf16.msra.mxu0 0
        %2520 = vmatprep.subr.bf16.mxu0 0
        %2521 = vmatpush1.bf16.msra.mxu0 0
        %2522 = vmatprep.subr.bf16.mxu0 0
        %2523 = vmatpush1.bf16.msra.mxu0 0
        %2524 = vmatprep.subr.bf16.mxu0 0
        %2525 = vmatpush1.bf16.msra.mxu0 0
        %2526 = vmatprep.subr.bf16.mxu0 0
        %2527 = vmatpush1.bf16.msra.mxu0 0
        %2528 = vmatprep.subr.bf16.mxu0 0
        %2529 = vmatpush1.bf16.msra.mxu0 0
        %2530 = vmatprep.subr.bf16.mxu0 0
        %2531 = vmatpush1.bf16.msra.mxu0 0
        %2532 = vmatprep.subr.bf16.mxu0 0
        %2533 = vmatpush1.bf16.msra.mxu0 %v1650
        %2534 = vmatprep.subr.bf16.mxu0 0
        %2535 = vmatpush2.bf16.msra.mxu0 0
        %2536 = vmatprep.subr.bf16.mxu0 0
        %2537 = vmatpush2.bf16.msra.mxu0 0
        %2538 = vmatprep.subr.bf16.mxu0 0
        %2539 = vmatpush2.bf16.msra.mxu0 0
        %2540 = vmatprep.subr.bf16.mxu0 0
        %2541 = vmatpush2.bf16.msra.mxu0 0
        %2542 = vmatprep.subr.bf16.mxu0 0
        %2543 = vmatpush2.bf16.msra.mxu0 0
        %2544 = vmatprep.subr.bf16.mxu0 0
        %2545 = vmatpush2.bf16.msra.mxu0 0
        %2546 = vmatprep.subr.bf16.mxu0 0
        %2547 = vmatpush2.bf16.msra.mxu0 0
        %2548 = vmatprep.subr.bf16.mxu0 0
        %2549 = vmatpush2.bf16.msra.mxu0 0
        %2550 = vmatprep.mubr.bf16.mxu0 0
        %2551 = vmatmul.mubr.bf16.gmra.mxu0 %v2516
        %v2552 = vpop.f32.mrf.mxu0
        %v2553 = vadd.f32 0.0, %v2552
        %v2554 = vpop.f32.mrf.mxu0
        %v2555 = vpop.f32.mrf.mxu0
        %v2556 = vpop.f32.mrf.mxu0
        %2557 = vdwg.mxu0
        %s2558 = scalar_lea.vmem %s916, 8 [#allocation15]
        %2559 = vst.msk [vmem:[%s2558] sm:$0xff] %vm1123, %v2513
        %2561 = vrot.lane.b32.xlu0 %v2553, 16
        %v2562 = vpop.permute.xlu0 %2561
        %v2564 = vsel %vm1073, %v2449, %v2562
        %v2565 = vpack.c.bf16 %v2564, %v2564
        %v2566 = vld [vmem:[#allocation11] sm:$0xf]
        %v2567 = vld [vmem:[#allocation11 + $0x4] sm:$0xf]
        %v2568 = vld [vmem:[#allocation11 + $0x8] sm:$0xf]
        %v2569 = vld [vmem:[#allocation11 + $0xc] sm:$0xf]
        %v2570 = vld [vmem:[%s13] sm:$0x1]
        %v2572 = vlaneseq
        %v2573 = vshrl.u32 %v2572, 7
        %v2574 = vsub.s32 0, %v2573
        %v2575 = vrot.slane %v2570, %v2574
        %v2581 = vunpack.c.l.b16 %v2566
        %v2582 = vunpack.c.l.b16 %v2567
        %v2583 = vunpack.c.l.b16 %v2568
        %v2584 = vunpack.c.l.b16 %v2569
        %v2585 = vpack.c.b16 %v2582, %v2581
        %v2586 = vpack.c.b16 %v2584, %v2583
        %v2590 = vsel %vm958, %v2565, 0
        %2592 = vmatprep.subr.bf16.mxu0 0
        %2593 = vmatpush1.bf16.msra.mxu0 0
        %2594 = vmatprep.subr.bf16.mxu0 0
        %2595 = vmatpush1.bf16.msra.mxu0 0
        %2596 = vmatprep.subr.bf16.mxu0 0
        %2597 = vmatpush1.bf16.msra.mxu0 0
        %2598 = vmatprep.subr.bf16.mxu0 0
        %2599 = vmatpush1.bf16.msra.mxu0 0
        %2600 = vmatprep.subr.bf16.mxu0 0
        %2601 = vmatpush1.bf16.msra.mxu0 0
        %2602 = vmatprep.subr.bf16.mxu0 0
        %2603 = vmatpush1.bf16.msra.mxu0 0
        %2604 = vmatprep.subr.bf16.mxu0 0
        %2605 = vmatpush1.bf16.msra.mxu0 %v2586
        %2606 = vmatprep.subr.bf16.mxu0 0
        %2607 = vmatpush1.bf16.msra.mxu0 %v2585
        %2608 = vmatprep.subr.bf16.mxu0 0
        %2609 = vmatpush2.bf16.msra.mxu0 0
        %2610 = vmatprep.subr.bf16.mxu0 0
        %2611 = vmatpush2.bf16.msra.mxu0 0
        %2612 = vmatprep.subr.bf16.mxu0 0
        %2613 = vmatpush2.bf16.msra.mxu0 0
        %2614 = vmatprep.subr.bf16.mxu0 0
        %2615 = vmatpush2.bf16.msra.mxu0 0
        %2616 = vmatprep.subr.bf16.mxu0 0
        %2617 = vmatpush2.bf16.msra.mxu0 0
        %2618 = vmatprep.subr.bf16.mxu0 0
        %2619 = vmatpush2.bf16.msra.mxu0 0
        %2620 = vmatprep.subr.bf16.mxu0 0
        %2621 = vmatpush2.bf16.msra.mxu0 0
        %2622 = vmatprep.subr.bf16.mxu0 0
        %2623 = vmatpush2.bf16.msra.mxu0 0
        %2624 = vmatprep.mubr.bf16.mxu0 0
        %2625 = vmatmul.mubr.bf16.gmra.mxu0 %v2590
        %v2626 = vpop.f32.mrf.mxu0
        %v2627 = vadd.f32 %v2575, %v2626
        %v2628 = vpop.f32.mrf.mxu0
        %v2629 = vpop.f32.mrf.mxu0
        %v2630 = vpop.f32.mrf.mxu0
        %2631 = vdwg.mxu0
        %v2632 = vadd.f32 %v2627, %v2308
        %v2633 = vsel %vm958, %v2632, 0.0
        %2634 = vadd.xlane.f32.xlu0 %v2633
        %v2635 = vpop.xlane.xlu0 %2634
        %v2636 = vmul.f32 %v2635, %v1373
        %v2637 = vsub.f32 %v2632, %v2636
        %v2638 = vmul.f32 %v2637, %v2637
        %v2639 = vsel %vm958, %v2638, 0.0
        %2640 = vadd.xlane.f32.xlu0 %v2639
        %v2641 = vpop.xlane.xlu0 %2640
        %v2642 = vmul.f32 %v2641, %v1373
        %v2643 = vadd.f32 %v2642, 1e-05
        %v2644 = vrsqrt.pop %v2643
        %v2645 = vmul.f32 %v2637, %v2644
        %v2646 = vld [vmem:[%s20] sm:$0x1]
        %v2648 = vlaneseq
        %v2649 = vshrl.u32 %v2648, 7
        %v2650 = vsub.s32 0, %v2649
        %v2651 = vrot.slane %v2646, %v2650
        %v2653 = vmul.f32 %v2645, %v2651
        %v2654 = vld [vmem:[%s21] sm:$0x1]
        %v2656 = vlaneseq
        %v2657 = vshrl.u32 %v2656, 7
        %v2658 = vsub.s32 0, %v2657
        %v2659 = vrot.slane %v2654, %v2658
        %v2661 = vadd.f32 %v2653, %v2659
        %v2662 = vpack.c.bf16 %v2661, %v2661
        %v2663 = vld [vmem:[#allocation13] sm:$0xf]
        %v2664 = vld [vmem:[#allocation13 + $0x4] sm:$0xf]
        %v2665 = vld [vmem:[#allocation13 + $0x8] sm:$0xf]
        %v2666 = vld [vmem:[#allocation13 + $0xc] sm:$0xf]
        %v2667 = vld [vmem:[%s15] sm:$0x1]
        %v2669 = vlaneseq
        %v2670 = vshrl.u32 %v2669, 7
        %v2671 = vsub.s32 0, %v2670
        %v2672 = vrot.slane %v2667, %v2671
        %v2678 = vunpack.c.l.b16 %v2663
        %v2679 = vunpack.c.l.b16 %v2664
        %v2680 = vunpack.c.l.b16 %v2665
        %v2681 = vunpack.c.l.b16 %v2666
        %v2682 = vpack.c.b16 %v2679, %v2678
        %v2683 = vpack.c.b16 %v2681, %v2680
        %v2687 = vsel %vm958, %v2662, 0
        %2689 = vmatprep.subr.bf16.mxu0 0
        %2690 = vmatpush1.bf16.msra.mxu0 0
        %2691 = vmatprep.subr.bf16.mxu0 0
        %2692 = vmatpush1.bf16.msra.mxu0 0
        %2693 = vmatprep.subr.bf16.mxu0 0
        %2694 = vmatpush1.bf16.msra.mxu0 0
        %2695 = vmatprep.subr.bf16.mxu0 0
        %2696 = vmatpush1.bf16.msra.mxu0 0
        %2697 = vmatprep.subr.bf16.mxu0 0
        %2698 = vmatpush1.bf16.msra.mxu0 0
        %2699 = vmatprep.subr.bf16.mxu0 0
        %2700 = vmatpush1.bf16.msra.mxu0 0
        %2701 = vmatprep.subr.bf16.mxu0 0
        %2702 = vmatpush1.bf16.msra.mxu0 %v2683
        %2703 = vmatprep.subr.bf16.mxu0 0
        %2704 = vmatpush1.bf16.msra.mxu0 %v2682
        %2705 = vmatprep.subr.bf16.mxu0 0
        %2706 = vmatpush2.bf16.msra.mxu0 0
        %2707 = vmatprep.subr.bf16.mxu0 0
        %2708 = vmatpush2.bf16.msra.mxu0 0
        %2709 = vmatprep.subr.bf16.mxu0 0
        %2710 = vmatpush2.bf16.msra.mxu0 0
        %2711 = vmatprep.subr.bf16.mxu0 0
        %2712 = vmatpush2.bf16.msra.mxu0 0
        %2713 = vmatprep.subr.bf16.mxu0 0
        %2714 = vmatpush2.bf16.msra.mxu0 0
        %2715 = vmatprep.subr.bf16.mxu0 0
        %2716 = vmatpush2.bf16.msra.mxu0 0
        %2717 = vmatprep.subr.bf16.mxu0 0
        %2718 = vmatpush2.bf16.msra.mxu0 0
        %2719 = vmatprep.subr.bf16.mxu0 0
        %2720 = vmatpush2.bf16.msra.mxu0 0
        %2721 = vmatprep.mubr.bf16.mxu0 0
        %2722 = vmatmul.mubr.bf16.gmra.mxu0 %v2687
        %v2723 = vpop.f32.mrf.mxu0
        %v2724 = vadd.f32 %v2672, %v2723
        %v2725 = vpop.f32.mrf.mxu0
        %v2726 = vpop.f32.mrf.mxu0
        %v2727 = vpop.f32.mrf.mxu0
        %2728 = vdwg.mxu0
        %v2729 = vmax.f32 %v2724, 0.0
        %v2730 = vpack.c.bf16 %v2729, %v2729
        %v2731 = vld [vmem:[%s16] sm:$0xf]
        %v2732 = vld [vmem:[%s16 + $0x4] sm:$0xf]
        %v2733 = vld [vmem:[%s16 + $0x8] sm:$0xf]
        %v2734 = vld [vmem:[%s16 + $0xc] sm:$0xf]
        %v2735 = vld [vmem:[%s16 + $0x10] sm:$0xf]
        %v2736 = vld [vmem:[%s16 + $0x14] sm:$0xf]
        %v2737 = vld [vmem:[%s16 + $0x18] sm:$0xf]
        %v2738 = vld [vmem:[%s16 + $0x1c] sm:$0xf]
        %v2739 = vld [vmem:[%s17] sm:$0x1]
        %v2741 = vlaneseq
        %v2742 = vshrl.u32 %v2741, 7
        %v2743 = vsub.s32 0, %v2742
        %v2744 = vrot.slane %v2739, %v2743
        %v2754 = vunpack.c.l.b16 %v2731
        %v2755 = vunpack.c.l.b16 %v2732
        %v2756 = vunpack.c.l.b16 %v2733
        %v2757 = vunpack.c.l.b16 %v2734
        %v2758 = vunpack.c.l.b16 %v2735
        %v2759 = vunpack.c.l.b16 %v2736
        %v2760 = vunpack.c.l.b16 %v2737
        %v2761 = vunpack.c.l.b16 %v2738
        %v2762 = vpack.c.b16 %v2755, %v2754
        %v2763 = vpack.c.b16 %v2757, %v2756
        %v2764 = vpack.c.b16 %v2759, %v2758
        %v2765 = vpack.c.b16 %v2761, %v2760
        %v2771 = vsel %vm1902, %v2730, 0
        %2773 = vmatprep.subr.bf16.mxu0 0
        %2774 = vmatpush1.bf16.msra.mxu0 0
        %2775 = vmatprep.subr.bf16.mxu0 0
        %2776 = vmatpush1.bf16.msra.mxu0 0
        %2777 = vmatprep.subr.bf16.mxu0 0
        %2778 = vmatpush1.bf16.msra.mxu0 0
        %2779 = vmatprep.subr.bf16.mxu0 0
        %2780 = vmatpush1.bf16.msra.mxu0 0
        %2781 = vmatprep.subr.bf16.mxu0 0
        %2782 = vmatpush1.bf16.msra.mxu0 %v2765
        %2783 = vmatprep.subr.bf16.mxu0 0
        %2784 = vmatpush1.bf16.msra.mxu0 %v2764
        %2785 = vmatprep.subr.bf16.mxu0 0
        %2786 = vmatpush1.bf16.msra.mxu0 %v2763
        %2787 = vmatprep.subr.bf16.mxu0 0
        %2788 = vmatpush1.bf16.msra.mxu0 %v2762
        %2789 = vmatprep.subr.bf16.mxu0 0
        %2790 = vmatpush2.bf16.msra.mxu0 0
        %2791 = vmatprep.subr.bf16.mxu0 0
        %2792 = vmatpush2.bf16.msra.mxu0 0
        %2793 = vmatprep.subr.bf16.mxu0 0
        %2794 = vmatpush2.bf16.msra.mxu0 0
        %2795 = vmatprep.subr.bf16.mxu0 0
        %2796 = vmatpush2.bf16.msra.mxu0 0
        %2797 = vmatprep.subr.bf16.mxu0 0
        %2798 = vmatpush2.bf16.msra.mxu0 0
        %2799 = vmatprep.subr.bf16.mxu0 0
        %2800 = vmatpush2.bf16.msra.mxu0 0
        %2801 = vmatprep.subr.bf16.mxu0 0
        %2802 = vmatpush2.bf16.msra.mxu0 0
        %2803 = vmatprep.subr.bf16.mxu0 0
        %2804 = vmatpush2.bf16.msra.mxu0 0
        %2805 = vmatprep.mubr.bf16.mxu0 0
        %2806 = vmatmul.mubr.bf16.gmra.mxu0 %v2771
        %v2807 = vpop.f32.mrf.mxu0
        %v2808 = vadd.f32 %v2744, %v2807
        %v2809 = vpop.f32.mrf.mxu0
        %v2810 = vpop.f32.mrf.mxu0
        %v2811 = vpop.f32.mrf.mxu0
        %2812 = vdwg.mxu0
        %v2813 = vadd.f32 %v2808, %v2661
        %v2814 = vsel %vm958, %v2813, 0.0
        %2815 = vadd.xlane.f32.xlu0 %v2814
        %v2816 = vpop.xlane.xlu0 %2815
        %v2817 = vmul.f32 %v2816, %v1373
        %v2818 = vsub.f32 %v2813, %v2817
        %v2819 = vmul.f32 %v2818, %v2818
        %v2820 = vsel %vm958, %v2819, 0.0
        %2821 = vadd.xlane.f32.xlu0 %v2820
        %v2822 = vpop.xlane.xlu0 %2821
        %v2823 = vmul.f32 %v2822, %v1373
        %v2824 = vadd.f32 %v2823, 1e-05
        %v2825 = vrsqrt.pop %v2824
        %v2826 = vmul.f32 %v2818, %v2825
        %v2827 = vld [vmem:[%s22] sm:$0x1]
        %v2829 = vlaneseq
        %v2830 = vshrl.u32 %v2829, 7
        %v2831 = vsub.s32 0, %v2830
        %v2832 = vrot.slane %v2827, %v2831
        %v2834 = vmul.f32 %v2826, %v2832
        %v2835 = vld [vmem:[%s23] sm:$0x1]
        %v2837 = vlaneseq
        %v2838 = vshrl.u32 %v2837, 7
        %v2839 = vsub.s32 0, %v2838
        %v2840 = vrot.slane %v2835, %v2839
        %v2842 = vadd.f32 %v2834, %v2840
        %2843 = vst.msk [vmem:[%s909] sm:$0xff] %vm958, %v2842
        %s2844 = sand.u32 %s581, 1
        %s2845 = scalar_lea.sflag [#allocation4], %s2844
        %s2846 = sand.u32 %s581, 1
        %s2847 = smul.addr %s2846, 8
        %s2848 = scalar_lea.vmem [#allocation14], %s2847
        %s2849 = sand.u32 %s607, 1
        %s2850 = scalar_lea.sflag [#allocation16], %s2849
        %s2851 = sand.u32 %s607, 1
        %s2852 = smul.addr %s2851, 16
        %s2853 = scalar_lea.vmem [#allocation15], %s2852
        // Predicated region
        $region145: #{tpu_custom_call.1} parent=115 // pred_check
          %p2854 = pneg %p591
        $region146: #{tpu_custom_call.1} parent=115 // pred_check_branch
          %2856 = sbr.rel (%p2854) target = $region148
        $region147: #{tpu_custom_call.1} parent=115 // pred_region
          %s2858 = ssub.s32 128, 128
          %2859 = vsyncadd %s2845, %s2858
          %s2860 = smul.addr %s49, 128
          %s2861 = scalar_lea.hbm %s24, %s2860
          %s2863 = sshll.u32 %s2848, 4
          %s2864 = int_to_ptr.vmem [resolvable:$true] %s2863
          %2866 = dma.vmem_to_hbm [thread:$0]  %s2864, 128, %s2861, %s2845
        $region148: #{tpu_custom_call.1} parent=115 // pred_fallthru
          _
        // Predicated region
        $region149: #{tpu_custom_call.1} parent=115 // pred_check
          %p2867 = pneg %p617
        $region150: #{tpu_custom_call.1} parent=115 // pred_check_branch
          %2869 = sbr.rel (%p2867) target = $region152
        $region151: #{tpu_custom_call.1} parent=115 // pred_region
          %s2871 = ssub.s32 256, 256
          %2872 = vsyncadd %s2850, %s2871
          %s2873 = smul.addr %s49, 2
          %s2874 = smul.addr %s2873, 128
          %s2875 = scalar_lea.hbm %s25, %s2874
          %s2876 = sshll.u32 %s2853, 4
          %s2877 = int_to_ptr.vmem [resolvable:$true] %s2876
          %2882 = dma.vmem_to_hbm [thread:$0]  %s2877, 256, %s2875, %s2850, 128, 128, 8
        $region152: #{tpu_custom_call.1} parent=115 // pred_fallthru
          _
      $region116: #{tpu_custom_call.1} parent=5 // pred_fallthru
        _
      %p2883 = scmp.le.s32.totalorder 2, %s44
      // Predicated region
      $region153: #{tpu_custom_call.1} parent=5 // pred_check
        %p2884 = pneg %p2883
      $region154: #{tpu_custom_call.1} parent=5 // pred_check_branch
        %2886 = sbr.rel (%p2884) target = $region156
      $region155: #{tpu_custom_call.1} parent=5 // pred_region
        %s2887 = ssub.s32 %s44, 2
        // Predicated region
        $region157: #{tpu_custom_call.1} parent=155 // pred_check
          %p2888 = pneg %p597
        $region158: #{tpu_custom_call.1} parent=155 // pred_check_branch
          %2890 = sbr.rel (%p2888) target = $region160
        $region159: #{tpu_custom_call.1} parent=155 // pred_region
          %s2891 = sand.u32 %s582, 1
          %s2892 = scalar_lea.sflag [#allocation4], %s2891
          %s2893 = sand.u32 %s582, 1
          %s2894 = smul.addr %s2893, 8
          %s2895 = scalar_lea.vmem [#allocation14], %s2894
          %2896 = dma.done %s2892, 128
        $region160: #{tpu_custom_call.1} parent=155 // pred_fallthru
          _
        // Predicated region
        $region161: #{tpu_custom_call.1} parent=155 // pred_check
          %p2897 = pneg %p623
        $region162: #{tpu_custom_call.1} parent=155 // pred_check_branch
          %2899 = sbr.rel (%p2897) target = $region164
        $region163: #{tpu_custom_call.1} parent=155 // pred_region
          %s2900 = sand.u32 %s608, 1
          %s2901 = scalar_lea.sflag [#allocation16], %s2900
          %s2902 = sand.u32 %s608, 1
          %s2903 = smul.addr %s2902, 16
          %s2904 = scalar_lea.vmem [#allocation15], %s2903
          %2905 = dma.done %s2901, 256
        $region164: #{tpu_custom_call.1} parent=155 // pred_fallthru
          _
      $region156: #{tpu_custom_call.1} parent=5 // pred_fallthru
        _
    $region6: #{tpu_custom_call.1} parent=1 // loop_footer
      %s48 = sadd.s32 1, %s44
    $region7: #{tpu_custom_call.1} parent=1 // loop_footer_branch
      %43 = sbr.rel target = $region3
    $region8: #{tpu_custom_call.1} parent=1 // loop_exit
      _
    %2906 = vsyncpa [#allocation3], 1
    %s2907 = scalar_lea.sflag [#allocation3], 1
    %2908 = vsyncpa %s2907, 1
    %2909 = vsyncpa [#allocation6], 1
    %2910 = vsyncpa [#allocation9], 1
    %2911 = vsyncpa [#allocation12], 1
    %2912 = vsyncpa [#allocation4], 1
    %s2913 = scalar_lea.sflag [#allocation4], 1
    %2914 = vsyncpa %s2913, 1
    %2915 = vsyncpa [#allocation16], 1
    %s2916 = scalar_lea.sflag [#allocation16], 1
    %2917 = vsyncpa %s2916, 1

</llo_original>
